<compile_context>
chip_gen: v7x
topology: tpu7x:2x2x1
jax: 0.10.0
libtpu: 0.0.40
codegen_flags: <defaults>
</compile_context>

<pallas_src>
import jax
import jax.numpy as jnp
from jax.experimental import pallas as pl
from jax.experimental.pallas import tpu as pltpu

NEG_SLOPE = 0.3
BN_EPS = 1e-5
MAX_SHIFT = 3          # largest kernel is 7x7 -> H shifts in [-3, 3]


def _leaky(v):
    return jnp.where(v > 0, v, NEG_SLOPE * v)


# ----------------------------- Pallas kernel ------------------------------- #
def _make_idblock_kernel(H, max_shift=MAX_SHIFT):
    """Builds the kernel with the static image height H closed over."""

    def shift_rows(v, s):
        # Zero-padded shift inside each H-row block: out[r] = v[r+s] if the
        # source row stays inside the same image, else 0.  pltpu.roll runs on
        # the XLU and the mask on the VPU -- zero MXU cost.
        if s == 0:
            return v
        M = v.shape[0]
        rolled = pltpu.roll(v, shift=(-s) % M, axis=0)
        y = jax.lax.broadcasted_iota(jnp.int32, v.shape, 0) % H
        valid = (y < (H - s)) if s > 0 else (y >= (-s))
        return jnp.where(valid, rolled, 0.0)

    def kernel(x_ref, t1a_ref, t1b_ref, t2a_ref, t2b_ref, t3a_ref, t3b_ref,
               wf_ref, bias_ref, o_ref):
        # x_ref   : (M, C*W)            f32    M = nb*H, cols ordered (c, x)
        # t*_ref  : (k, Cin*W, Cout*W)  bf16   per-kernel-row Toeplitz blocks
        # wf_ref  : (8C*W, C*W)         bf16   1x1-conv block weights (BN folded)
        # bias_ref: (7, BPAD)           f32    per-stage folded-BN bias rows
        # o_ref   : (M, C*W)            f32 / bf16
        x = x_ref[...]                                    # f32 (M, C*W)

        def conv_stage(shifted, t_ref, stage):
            # one ConvGDN(kxk) + LeakyReLU; `shifted` holds the bf16
            # row-shifted input slab for every kernel row dy.
            out_w = t_ref.shape[2]
            acc = jnp.zeros((x.shape[0], out_w), jnp.float32)
            for dy in range(t_ref.shape[0]):              # static unroll
                acc = acc + jnp.dot(shifted[dy], t_ref[dy],
                                    preferred_element_type=jnp.float32)
            return _leaky(acc + bias_ref[stage:stage + 1, 0:out_w])   # f32

        # hoisted: the 7 unique zero-padded row shifts of x (stage-1 inputs)
        xsh = {s: shift_rows(x, s).astype(jnp.bfloat16)
               for s in range(-max_shift, max_shift + 1)}

        def stage1_in(k):
            pad = (k - 1) // 2
            return [xsh[s] for s in range(-pad, pad + 1)]

        def stage2_in(v, k):
            pad = (k - 1) // 2
            return [shift_rows(v, s).astype(jnp.bfloat16)
                    for s in range(-pad, pad + 1)]

        k1 = t1b_ref.shape[2]
        k2 = t2b_ref.shape[2]
        k3 = t3b_ref.shape[2]
        dw = wf_ref.shape[1]

        # path 1 (3x3, 4*dim) -- consumed immediately by its 1x1 partial dot
        h = conv_stage(stage1_in(3), t1a_ref, 0)
        h = conv_stage(stage2_in(h, 3), t1b_ref, 1)
        out = jnp.dot(h.astype(jnp.bfloat16), wf_ref[0:k1, :],
                      preferred_element_type=jnp.float32)
        # path 2 (5x5, 2*dim)
        h = conv_stage(stage1_in(5), t2a_ref, 2)
        h = conv_stage(stage2_in(h, 5), t2b_ref, 3)
        out = out + jnp.dot(h.astype(jnp.bfloat16), wf_ref[k1:k1 + k2, :],
                            preferred_element_type=jnp.float32)
        # path 3 (7x7, 2*dim)
        h = conv_stage(stage1_in(7), t3a_ref, 4)
        h = conv_stage(stage2_in(h, 7), t3b_ref, 5)
        out = out + jnp.dot(h.astype(jnp.bfloat16),
                            wf_ref[k1 + k2:k1 + k2 + k3, :],
                            preferred_element_type=jnp.float32)

        out = out + bias_ref[6:7, 0:dw]      # folded-BN shift of the 1x1 conv
        out = out + x                        # residual (identity), exact f32
        o_ref[...] = _leaky(out).astype(o_ref.dtype)

    return kernel


# --------------------------- parameter plumbing ----------------------------- #
def fold_bn(gamma, beta, mean, var):
    s = gamma / jnp.sqrt(var + BN_EPS)
    return s, beta - mean * s


def conv_tmats(w, scale, W):
    """Per-kernel-row banded Toeplitz block matrices with BN scale folded in.

    w: (Cout, Cin, k, k) cross-correlation taps; scale: (Cout,).
    Returns (k, Cin*W, Cout*W) bf16 with
      T[dy, ci*W + xi, co*W + xo] = w[co, ci, dy, xi - xo + pad] * scale[co]
    inside the band (zero-padded 'same' conv along W), else 0.
    """
    Cout, Cin, k, _ = w.shape
    pad = (k - 1) // 2
    xi = jnp.arange(W)[:, None]
    xo = jnp.arange(W)[None, :]
    dx = xi - xo + pad
    valid = (dx >= 0) & (dx < k)
    dxc = jnp.clip(dx, 0, k - 1)
    ws = w * scale[:, None, None, None]
    t = ws[:, :, :, dxc]                                  # (Cout, Cin, k, W, W)
    t = jnp.where(valid[None, None, None], t, 0.0)
    t = jnp.transpose(t, (2, 1, 3, 0, 4)).reshape(k, Cin * W, Cout * W)
    return t.astype(jnp.bfloat16)


def _pick_batch_block(N, H):
    """Pick nb (divisor of N): fill MXU rows (M in [128,512]) and, once that
    is satisfied, keep the grid >= 2 so v7x's second TensorCore gets work."""
    best, best_key = 1, None
    for nb in range(1, N + 1):
        if N % nb:
            continue
        M = nb * H
        key = (128 <= M <= 512,              # good MXU row fill, bounded tile
               (N // nb) >= 2 and M >= 128,  # >=2 parallel steps (v7x megacore)
               M <= 512,                     # keep per-step VMEM bounded
               M)                            # otherwise: larger is better
        if best_key is None or key > best_key:
            best, best_key = nb, key
    return best


def idblock_pallas(x, params, batch_block=None, out_dtype=None):
    N, C, H, W = x.shape
    dim = C
    Dout = dim
    out_dtype = out_dtype or x.dtype   # pass jnp.bfloat16 if downstream is bf16
    nb = batch_block or _pick_batch_block(N, H)
    assert N % nb == 0
    M = nb * H

    # --- fold BN + build MXU operands (runs once; pure layout plumbing) ---
    t_list, bias_rows = [], []
    for name in ("p1_w0", "p1_w1", "p2_w0", "p2_w1", "p3_w0", "p3_w1"):
        w = params[name]
        s, b = fold_bn(*params[name.replace("_w", "_bn")])
        t_list.append(conv_tmats(w, s, W))
        bias_rows.append(jnp.repeat(b, W))                # (Cout*W,) col bias

    sf, bf = fold_bn(*params["bnf"])
    wf = params["wf"].reshape(Dout, 8 * dim) * sf[:, None]
    eye_w = jnp.eye(W, dtype=jnp.float32)
    # Wf_big[(c, xi), (co, xo)] = wf[co, c] * (xi == xo)
    wf_big = (wf.T[:, None, :, None] * eye_w[None, :, None, :]
              ).reshape(8 * dim * W, Dout * W).astype(jnp.bfloat16)
    bias_rows.append(jnp.repeat(bf, W))

    bpad = max(r.shape[0] for r in bias_rows)
    bias = jnp.stack([jnp.pad(r, (0, bpad - r.shape[0])) for r in bias_rows]
                     ).astype(jnp.float32)                # (7, bpad)

    # lane-dense slab: rows (n, y), cols (c, x); kept f32 so in-kernel row
    # rolls and the residual are exact; bf16 casts happen at each MXU operand
    x2d = x.transpose(0, 2, 1, 3).reshape(N * H, C * W).astype(jnp.float32)

    # --- advisory cost + VMEM sizing -------------------------------------- #
    CW = C * W
    mm = ([(CW, 4 * CW)] * 3 + [(CW, 2 * CW)] * 5 + [(CW, 2 * CW)] * 7
          + [(4 * CW, 4 * CW)] * 3 + [(2 * CW, 2 * CW)] * 5
          + [(2 * CW, 2 * CW)] * 7
          + [(4 * CW, Dout * W), (2 * CW, Dout * W), (2 * CW, Dout * W)])
    flops = 2 * N * H * sum(k * n for k, n in mm)
    out_isz = jnp.dtype(out_dtype).itemsize
    weight_bytes = (sum(int(t.size) for t in t_list) + int(wf_big.size)) * 2 \
        + int(bias.size) * 4
    io_bytes = M * CW * 4 + M * Dout * W * out_isz
    bytes_accessed = int(x2d.size) * 4 + weight_bytes + N * H * Dout * W * out_isz
    # resident weights (constant index maps) + double-buffered IO + slack
    vmem_limit = int(min(100 << 20, max(32 << 20, 2 * weight_bytes + 8 * io_bytes)))
    # TODO(synk): at production dims (dim >= ~32) add a grid axis over Cout*W
    #             column blocks of the Toeplitz slabs so the weight-resident
    #             layout also fits v7x's 64 MiB VMEM.

    const3 = lambda i: (0, 0, 0)
    const2 = lambda i: (0, 0)
    out2d = pl.pallas_call(
        _make_idblock_kernel(H),
        out_shape=jax.ShapeDtypeStruct((N * H, Dout * W), out_dtype),
        grid_spec=pltpu.PrefetchScalarGridSpec(
            num_scalar_prefetch=0,
            grid=(N // nb,),
            in_specs=[pl.BlockSpec((M, C * W), lambda i: (i, 0))]
                     + [pl.BlockSpec(t.shape, const3) for t in t_list]
                     + [pl.BlockSpec(wf_big.shape, const2),
                        pl.BlockSpec(bias.shape, const2)],
            out_specs=pl.BlockSpec((M, Dout * W), lambda i: (i, 0)),
        ),
        compiler_params=pltpu.CompilerParams(
            dimension_semantics=("parallel",),
            vmem_limit_bytes=vmem_limit),
        cost_estimate=pl.CostEstimate(flops=flops, transcendentals=0,
                                      bytes_accessed=int(bytes_accessed)),
    )(x2d, *t_list, wf_big, bias)

    return out2d.reshape(N, H, Dout, W).transpose(0, 2, 1, 3)


# ------------------------------ JAX reference ------------------------------- #
def idblock_ref(x, params):
    def convgdn(h, w, bnp, pad):
        y = jax.lax.conv_general_dilated(
            h, w, (1, 1), ((pad, pad), (pad, pad)),
            dimension_numbers=("NCHW", "OIHW", "NCHW"),
            precision=jax.lax.Precision.HIGHEST)
        s, b = fold_bn(*bnp)
        return y * s[None, :, None, None] + b[None, :, None, None]

    outs = []
    for name, k in (("p1", 3), ("p2", 5), ("p3", 7)):
        pad = (k - 1) // 2
        h = _leaky(convgdn(x, params[f"{name}_w0"], params[f"{name}_bn0"], pad))
        h = _leaky(convgdn(h, params[f"{name}_w1"], params[f"{name}_bn1"], pad))
        outs.append(h)
    cat = jnp.concatenate(outs, axis=1)
    out = convgdn(cat, params["wf"], params["bnf"], 0)
    return _leaky(out + x)


# ------------------------------- param init --------------------------------- #
def make_params(key, dim):
    def conv_w(k, shape):
        fan_in = shape[1] * shape[2] * shape[3]
        return jax.random.normal(k, shape, jnp.float32) / jnp.sqrt(fan_in)

    def bn_p(k, c):
        k1, k2, k3, k4 = jax.random.split(k, 4)
        gamma = jax.random.uniform(k1, (c,), jnp.float32, 0.8, 1.2)
        beta = 0.1 * jax.random.normal(k2, (c,), jnp.float32)
        mean = 0.1 * jax.random.normal(k3, (c,), jnp.float32)
        var = jax.random.uniform(k4, (c,), jnp.float32, 0.5, 1.5)
        return (gamma, beta, mean, var)

    keys = iter(jax.random.split(key, 16))
    p = {}
    chans = {"p1": 4 * dim, "p2": 2 * dim, "p3": 2 * dim}
    ks = {"p1": 3, "p2": 5, "p3": 7}
    for name in ("p1", "p2", "p3"):
        c, k = chans[name], ks[name]
        p[f"{name}_w0"] = conv_w(next(keys), (c, dim, k, k))
        p[f"{name}_bn0"] = bn_p(next(keys), c)
        p[f"{name}_w1"] = conv_w(next(keys), (c, c, k, k))
        p[f"{name}_bn1"] = bn_p(next(keys), c)
    p["wf"] = conv_w(next(keys), (dim, 8 * dim, 1, 1))
    p["bnf"] = bn_p(next(keys), dim)
    return p


if __name__ == "__main__":
    key = jax.random.PRNGKey(0)
    kx, kp = jax.random.split(key)

    N, dim, H, W = 2, 4, 16, 16                      # IDBlock(dim=4), NCHW
    x = jax.random.normal(kx, (N, dim, H, W), jnp.float32)
    params = make_params(kp, dim)

    y = jax.block_until_ready(idblock_pallas(x, params))
    y_ref = idblock_ref(x, params)

    assert y.shape == (N, dim, H, W)
    # bf16 matmul operands with f32 accumulation -> use a relative tolerance
    err = float(jnp.max(jnp.abs(y - y_ref) / (1.0 + jnp.abs(y_ref))))
    assert err < 2e-2, f"mismatch vs reference: {err}"
    print("KERNEL_OK")
</pallas_src>

<mosaic_0001>
module attributes {stable_mosaic.version = 11 : i64} {
  func.func @kernel(%arg0: i32, %arg1: memref<32x64xf32, #tpu.memory_space<vmem>>, %arg2: memref<3x64x256xbf16, #tpu.memory_space<vmem>>, %arg3: memref<3x256x256xbf16, #tpu.memory_space<vmem>>, %arg4: memref<5x64x128xbf16, #tpu.memory_space<vmem>>, %arg5: memref<5x128x128xbf16, #tpu.memory_space<vmem>>, %arg6: memref<7x64x128xbf16, #tpu.memory_space<vmem>>, %arg7: memref<7x128x128xbf16, #tpu.memory_space<vmem>>, %arg8: memref<512x64xbf16, #tpu.memory_space<vmem>>, %arg9: memref<7x256xf32, #tpu.memory_space<vmem>>, %arg10: memref<32x64xf32, #tpu.memory_space<vmem>>) attributes {dimension_semantics = [#tpu.dimension_semantics<parallel>], iteration_bounds = array<i64: 1>, scalar_prefetch = 0 : i64, scratch_operands = 0 : i64, tpu.core_type = #tpu.core_type<tc>, window_params = [{transform_indices = @transform_0, window_bounds = array<i64: 32, 64>}, {pipeline_mode = #tpu.pipeline_mode<synchronous>, transform_indices = @transform_1, window_bounds = array<i64: 3, 64, 256>}, {pipeline_mode = #tpu.pipeline_mode<synchronous>, transform_indices = @transform_2, window_bounds = array<i64: 3, 256, 256>}, {pipeline_mode = #tpu.pipeline_mode<synchronous>, transform_indices = @transform_3, window_bounds = array<i64: 5, 64, 128>}, {pipeline_mode = #tpu.pipeline_mode<synchronous>, transform_indices = @transform_4, window_bounds = array<i64: 5, 128, 128>}, {pipeline_mode = #tpu.pipeline_mode<synchronous>, transform_indices = @transform_5, window_bounds = array<i64: 7, 64, 128>}, {pipeline_mode = #tpu.pipeline_mode<synchronous>, transform_indices = @transform_6, window_bounds = array<i64: 7, 128, 128>}, {pipeline_mode = #tpu.pipeline_mode<synchronous>, transform_indices = @transform_7, window_bounds = array<i64: 512, 64>}, {pipeline_mode = #tpu.pipeline_mode<synchronous>, transform_indices = @transform_8, window_bounds = array<i64: 7, 256>}, {transform_indices = @transform_9, window_bounds = array<i64: 32, 64>}]} {
    %c0 = arith.constant 0 : index
    %c0_0 = arith.constant 0 : index
    %0 = vector.load %arg1[%c0, %c0_0] : memref<32x64xf32, #tpu.memory_space<vmem>>, vector<32x64xf32>
    %c3_i32 = arith.constant 3 : i32
    %1 = tpu.dynamic_rotate %0 by %c3_i32 dim 0 : vector<32x64xf32>, i32 -> vector<32x64xf32>
    %2 = tpu.iota {dimensions = array<i32: 0>} : vector<32x64xi32>
    %c16_i32 = arith.constant 16 : i32
    %c0_i32 = arith.constant 0 : i32
    %3 = arith.cmpi eq, %c16_i32, %c0_i32 : i32
    %c1_i32 = arith.constant 1 : i32
    %4 = arith.select %3, %c1_i32, %c16_i32 : i32
    %5 = vector.broadcast %4 : i32 to vector<32x64xi32>
    %6 = arith.remsi %2, %5 : vector<32x64xi32>
    %c0_i32_1 = arith.constant 0 : i32
    %7 = vector.broadcast %c0_i32_1 : i32 to vector<32x64xi32>
    %8 = arith.cmpi ne, %6, %7 : vector<32x64xi32>
    %c0_i32_2 = arith.constant 0 : i32
    %9 = vector.broadcast %c0_i32_2 : i32 to vector<32x64xi32>
    %10 = arith.cmpi slt, %6, %9 : vector<32x64xi32>
    %c0_i32_3 = arith.constant 0 : i32
    %11 = arith.cmpi slt, %4, %c0_i32_3 : i32
    %12 = vector.broadcast %11 : i1 to vector<32x64xi1>
    %13 = vector.broadcast %12 : vector<32x64xi1> to vector<32x64xi1>
    %14 = arith.xori %10, %13 : vector<32x64xi1>
    %15 = arith.andi %14, %8 : vector<32x64xi1>
    %16 = vector.broadcast %4 : i32 to vector<32x64xi32>
    %17 = arith.addi %6, %16 : vector<32x64xi32>
    %18 = arith.select %15, %17, %6 : vector<32x64xi1>, vector<32x64xi32>
    %c3_i32_4 = arith.constant 3 : i32
    %19 = vector.broadcast %c3_i32_4 : i32 to vector<32x64xi32>
    %20 = arith.cmpi sge, %18, %19 : vector<32x64xi32>
    %cst = arith.constant 0.000000e+00 : f32
    %21 = vector.broadcast %cst : f32 to vector<32x64xf32>
    %22 = arith.select %20, %1, %21 : vector<32x64xi1>, vector<32x64xf32>
    %23 = arith.truncf %22 : vector<32x64xf32> to vector<32x64xbf16>
    %c2_i32 = arith.constant 2 : i32
    %24 = tpu.dynamic_rotate %0 by %c2_i32 dim 0 : vector<32x64xf32>, i32 -> vector<32x64xf32>
    %25 = tpu.iota {dimensions = array<i32: 0>} : vector<32x64xi32>
    %c16_i32_5 = arith.constant 16 : i32
    %c0_i32_6 = arith.constant 0 : i32
    %26 = arith.cmpi eq, %c16_i32_5, %c0_i32_6 : i32
    %c1_i32_7 = arith.constant 1 : i32
    %27 = arith.select %26, %c1_i32_7, %c16_i32_5 : i32
    %28 = vector.broadcast %27 : i32 to vector<32x64xi32>
    %29 = arith.remsi %25, %28 : vector<32x64xi32>
    %c0_i32_8 = arith.constant 0 : i32
    %30 = vector.broadcast %c0_i32_8 : i32 to vector<32x64xi32>
    %31 = arith.cmpi ne, %29, %30 : vector<32x64xi32>
    %c0_i32_9 = arith.constant 0 : i32
    %32 = vector.broadcast %c0_i32_9 : i32 to vector<32x64xi32>
    %33 = arith.cmpi slt, %29, %32 : vector<32x64xi32>
    %c0_i32_10 = arith.constant 0 : i32
    %34 = arith.cmpi slt, %27, %c0_i32_10 : i32
    %35 = vector.broadcast %34 : i1 to vector<32x64xi1>
    %36 = vector.broadcast %35 : vector<32x64xi1> to vector<32x64xi1>
    %37 = arith.xori %33, %36 : vector<32x64xi1>
    %38 = arith.andi %37, %31 : vector<32x64xi1>
    %39 = vector.broadcast %27 : i32 to vector<32x64xi32>
    %40 = arith.addi %29, %39 : vector<32x64xi32>
    %41 = arith.select %38, %40, %29 : vector<32x64xi1>, vector<32x64xi32>
    %c2_i32_11 = arith.constant 2 : i32
    %42 = vector.broadcast %c2_i32_11 : i32 to vector<32x64xi32>
    %43 = arith.cmpi sge, %41, %42 : vector<32x64xi32>
    %cst_12 = arith.constant 0.000000e+00 : f32
    %44 = vector.broadcast %cst_12 : f32 to vector<32x64xf32>
    %45 = arith.select %43, %24, %44 : vector<32x64xi1>, vector<32x64xf32>
    %46 = arith.truncf %45 : vector<32x64xf32> to vector<32x64xbf16>
    %c1_i32_13 = arith.constant 1 : i32
    %47 = tpu.dynamic_rotate %0 by %c1_i32_13 dim 0 : vector<32x64xf32>, i32 -> vector<32x64xf32>
    %48 = tpu.iota {dimensions = array<i32: 0>} : vector<32x64xi32>
    %c16_i32_14 = arith.constant 16 : i32
    %c0_i32_15 = arith.constant 0 : i32
    %49 = arith.cmpi eq, %c16_i32_14, %c0_i32_15 : i32
    %c1_i32_16 = arith.constant 1 : i32
    %50 = arith.select %49, %c1_i32_16, %c16_i32_14 : i32
    %51 = vector.broadcast %50 : i32 to vector<32x64xi32>
    %52 = arith.remsi %48, %51 : vector<32x64xi32>
    %c0_i32_17 = arith.constant 0 : i32
    %53 = vector.broadcast %c0_i32_17 : i32 to vector<32x64xi32>
    %54 = arith.cmpi ne, %52, %53 : vector<32x64xi32>
    %c0_i32_18 = arith.constant 0 : i32
    %55 = vector.broadcast %c0_i32_18 : i32 to vector<32x64xi32>
    %56 = arith.cmpi slt, %52, %55 : vector<32x64xi32>
    %c0_i32_19 = arith.constant 0 : i32
    %57 = arith.cmpi slt, %50, %c0_i32_19 : i32
    %58 = vector.broadcast %57 : i1 to vector<32x64xi1>
    %59 = vector.broadcast %58 : vector<32x64xi1> to vector<32x64xi1>
    %60 = arith.xori %56, %59 : vector<32x64xi1>
    %61 = arith.andi %60, %54 : vector<32x64xi1>
    %62 = vector.broadcast %50 : i32 to vector<32x64xi32>
    %63 = arith.addi %52, %62 : vector<32x64xi32>
    %64 = arith.select %61, %63, %52 : vector<32x64xi1>, vector<32x64xi32>
    %c1_i32_20 = arith.constant 1 : i32
    %65 = vector.broadcast %c1_i32_20 : i32 to vector<32x64xi32>
    %66 = arith.cmpi sge, %64, %65 : vector<32x64xi32>
    %cst_21 = arith.constant 0.000000e+00 : f32
    %67 = vector.broadcast %cst_21 : f32 to vector<32x64xf32>
    %68 = arith.select %66, %47, %67 : vector<32x64xi1>, vector<32x64xf32>
    %69 = arith.truncf %68 : vector<32x64xf32> to vector<32x64xbf16>
    %70 = arith.truncf %0 : vector<32x64xf32> to vector<32x64xbf16>
    %c31_i32 = arith.constant 31 : i32
    %71 = tpu.dynamic_rotate %0 by %c31_i32 dim 0 : vector<32x64xf32>, i32 -> vector<32x64xf32>
    %72 = tpu.iota {dimensions = array<i32: 0>} : vector<32x64xi32>
    %c16_i32_22 = arith.constant 16 : i32
    %c0_i32_23 = arith.constant 0 : i32
    %73 = arith.cmpi eq, %c16_i32_22, %c0_i32_23 : i32
    %c1_i32_24 = arith.constant 1 : i32
    %74 = arith.select %73, %c1_i32_24, %c16_i32_22 : i32
    %75 = vector.broadcast %74 : i32 to vector<32x64xi32>
    %76 = arith.remsi %72, %75 : vector<32x64xi32>
    %c0_i32_25 = arith.constant 0 : i32
    %77 = vector.broadcast %c0_i32_25 : i32 to vector<32x64xi32>
    %78 = arith.cmpi ne, %76, %77 : vector<32x64xi32>
    %c0_i32_26 = arith.constant 0 : i32
    %79 = vector.broadcast %c0_i32_26 : i32 to vector<32x64xi32>
    %80 = arith.cmpi slt, %76, %79 : vector<32x64xi32>
    %c0_i32_27 = arith.constant 0 : i32
    %81 = arith.cmpi slt, %74, %c0_i32_27 : i32
    %82 = vector.broadcast %81 : i1 to vector<32x64xi1>
    %83 = vector.broadcast %82 : vector<32x64xi1> to vector<32x64xi1>
    %84 = arith.xori %80, %83 : vector<32x64xi1>
    %85 = arith.andi %84, %78 : vector<32x64xi1>
    %86 = vector.broadcast %74 : i32 to vector<32x64xi32>
    %87 = arith.addi %76, %86 : vector<32x64xi32>
    %88 = arith.select %85, %87, %76 : vector<32x64xi1>, vector<32x64xi32>
    %c15_i32 = arith.constant 15 : i32
    %89 = vector.broadcast %c15_i32 : i32 to vector<32x64xi32>
    %90 = arith.cmpi slt, %88, %89 : vector<32x64xi32>
    %cst_28 = arith.constant 0.000000e+00 : f32
    %91 = vector.broadcast %cst_28 : f32 to vector<32x64xf32>
    %92 = arith.select %90, %71, %91 : vector<32x64xi1>, vector<32x64xf32>
    %93 = arith.truncf %92 : vector<32x64xf32> to vector<32x64xbf16>
    %c30_i32 = arith.constant 30 : i32
    %94 = tpu.dynamic_rotate %0 by %c30_i32 dim 0 : vector<32x64xf32>, i32 -> vector<32x64xf32>
    %95 = tpu.iota {dimensions = array<i32: 0>} : vector<32x64xi32>
    %c16_i32_29 = arith.constant 16 : i32
    %c0_i32_30 = arith.constant 0 : i32
    %96 = arith.cmpi eq, %c16_i32_29, %c0_i32_30 : i32
    %c1_i32_31 = arith.constant 1 : i32
    %97 = arith.select %96, %c1_i32_31, %c16_i32_29 : i32
    %98 = vector.broadcast %97 : i32 to vector<32x64xi32>
    %99 = arith.remsi %95, %98 : vector<32x64xi32>
    %c0_i32_32 = arith.constant 0 : i32
    %100 = vector.broadcast %c0_i32_32 : i32 to vector<32x64xi32>
    %101 = arith.cmpi ne, %99, %100 : vector<32x64xi32>
    %c0_i32_33 = arith.constant 0 : i32
    %102 = vector.broadcast %c0_i32_33 : i32 to vector<32x64xi32>
    %103 = arith.cmpi slt, %99, %102 : vector<32x64xi32>
    %c0_i32_34 = arith.constant 0 : i32
    %104 = arith.cmpi slt, %97, %c0_i32_34 : i32
    %105 = vector.broadcast %104 : i1 to vector<32x64xi1>
    %106 = vector.broadcast %105 : vector<32x64xi1> to vector<32x64xi1>
    %107 = arith.xori %103, %106 : vector<32x64xi1>
    %108 = arith.andi %107, %101 : vector<32x64xi1>
    %109 = vector.broadcast %97 : i32 to vector<32x64xi32>
    %110 = arith.addi %99, %109 : vector<32x64xi32>
    %111 = arith.select %108, %110, %99 : vector<32x64xi1>, vector<32x64xi32>
    %c14_i32 = arith.constant 14 : i32
    %112 = vector.broadcast %c14_i32 : i32 to vector<32x64xi32>
    %113 = arith.cmpi slt, %111, %112 : vector<32x64xi32>
    %cst_35 = arith.constant 0.000000e+00 : f32
    %114 = vector.broadcast %cst_35 : f32 to vector<32x64xf32>
    %115 = arith.select %113, %94, %114 : vector<32x64xi1>, vector<32x64xf32>
    %116 = arith.truncf %115 : vector<32x64xf32> to vector<32x64xbf16>
    %c29_i32 = arith.constant 29 : i32
    %117 = tpu.dynamic_rotate %0 by %c29_i32 dim 0 : vector<32x64xf32>, i32 -> vector<32x64xf32>
    %118 = tpu.iota {dimensions = array<i32: 0>} : vector<32x64xi32>
    %c16_i32_36 = arith.constant 16 : i32
    %c0_i32_37 = arith.constant 0 : i32
    %119 = arith.cmpi eq, %c16_i32_36, %c0_i32_37 : i32
    %c1_i32_38 = arith.constant 1 : i32
    %120 = arith.select %119, %c1_i32_38, %c16_i32_36 : i32
    %121 = vector.broadcast %120 : i32 to vector<32x64xi32>
    %122 = arith.remsi %118, %121 : vector<32x64xi32>
    %c0_i32_39 = arith.constant 0 : i32
    %123 = vector.broadcast %c0_i32_39 : i32 to vector<32x64xi32>
    %124 = arith.cmpi ne, %122, %123 : vector<32x64xi32>
    %c0_i32_40 = arith.constant 0 : i32
    %125 = vector.broadcast %c0_i32_40 : i32 to vector<32x64xi32>
    %126 = arith.cmpi slt, %122, %125 : vector<32x64xi32>
    %c0_i32_41 = arith.constant 0 : i32
    %127 = arith.cmpi slt, %120, %c0_i32_41 : i32
    %128 = vector.broadcast %127 : i1 to vector<32x64xi1>
    %129 = vector.broadcast %128 : vector<32x64xi1> to vector<32x64xi1>
    %130 = arith.xori %126, %129 : vector<32x64xi1>
    %131 = arith.andi %130, %124 : vector<32x64xi1>
    %132 = vector.broadcast %120 : i32 to vector<32x64xi32>
    %133 = arith.addi %122, %132 : vector<32x64xi32>
    %134 = arith.select %131, %133, %122 : vector<32x64xi1>, vector<32x64xi32>
    %c13_i32 = arith.constant 13 : i32
    %135 = vector.broadcast %c13_i32 : i32 to vector<32x64xi32>
    %136 = arith.cmpi slt, %134, %135 : vector<32x64xi32>
    %cst_42 = arith.constant 0.000000e+00 : f32
    %137 = vector.broadcast %cst_42 : f32 to vector<32x64xf32>
    %138 = arith.select %136, %117, %137 : vector<32x64xi1>, vector<32x64xf32>
    %139 = arith.truncf %138 : vector<32x64xf32> to vector<32x64xbf16>
    %cst_43 = arith.constant 0.000000e+00 : f32
    %140 = vector.broadcast %cst_43 : f32 to vector<32x256xf32>
    %c0_44 = arith.constant 0 : index
    %c0_45 = arith.constant 0 : index
    %c0_46 = arith.constant 0 : index
    %141 = vector.load %arg2[%c0_44, %c0_45, %c0_46] : memref<3x64x256xbf16, #tpu.memory_space<vmem>>, vector<1x64x256xbf16>
    %142 = vector.shape_cast %141 : vector<1x64x256xbf16> to vector<64x256xbf16>
    %cst_47 = arith.constant dense<0.000000e+00> : vector<32x256xf32>
    %143 = tpu.matmul %69, %142, %cst_47 {dimension_numbers = #tpu.dot_dimension_numbers<[1], [0], [0], [1], [0, 0, 1, 1], [], []>} : vector<32x64xbf16>, vector<64x256xbf16>, vector<32x256xf32> -> vector<32x256xf32>
    %144 = arith.addf %140, %143 : vector<32x256xf32>
    %c1 = arith.constant 1 : index
    %c0_48 = arith.constant 0 : index
    %c0_49 = arith.constant 0 : index
    %145 = vector.load %arg2[%c1, %c0_48, %c0_49] : memref<3x64x256xbf16, #tpu.memory_space<vmem>>, vector<1x64x256xbf16>
    %146 = vector.shape_cast %145 : vector<1x64x256xbf16> to vector<64x256xbf16>
    %cst_50 = arith.constant dense<0.000000e+00> : vector<32x256xf32>
    %147 = tpu.matmul %70, %146, %cst_50 {dimension_numbers = #tpu.dot_dimension_numbers<[1], [0], [0], [1], [0, 0, 1, 1], [], []>} : vector<32x64xbf16>, vector<64x256xbf16>, vector<32x256xf32> -> vector<32x256xf32>
    %148 = arith.addf %144, %147 : vector<32x256xf32>
    %c2 = arith.constant 2 : index
    %c0_51 = arith.constant 0 : index
    %c0_52 = arith.constant 0 : index
    %149 = vector.load %arg2[%c2, %c0_51, %c0_52] : memref<3x64x256xbf16, #tpu.memory_space<vmem>>, vector<1x64x256xbf16>
    %150 = vector.shape_cast %149 : vector<1x64x256xbf16> to vector<64x256xbf16>
    %cst_53 = arith.constant dense<0.000000e+00> : vector<32x256xf32>
    %151 = tpu.matmul %93, %150, %cst_53 {dimension_numbers = #tpu.dot_dimension_numbers<[1], [0], [0], [1], [0, 0, 1, 1], [], []>} : vector<32x64xbf16>, vector<64x256xbf16>, vector<32x256xf32> -> vector<32x256xf32>
    %152 = arith.addf %148, %151 : vector<32x256xf32>
    %c0_54 = arith.constant 0 : index
    %c0_55 = arith.constant 0 : index
    %153 = vector.load %arg9[%c0_54, %c0_55] : memref<7x256xf32, #tpu.memory_space<vmem>>, vector<1x256xf32>
    %154 = vector.broadcast %153 : vector<1x256xf32> to vector<32x256xf32>
    %155 = arith.addf %152, %154 : vector<32x256xf32>
    %cst_56 = arith.constant 0.000000e+00 : f32
    %156 = vector.broadcast %cst_56 : f32 to vector<32x256xf32>
    %157 = arith.cmpf ogt, %155, %156 : vector<32x256xf32>
    %cst_57 = arith.constant 3.000000e-01 : f32
    %158 = vector.broadcast %cst_57 : f32 to vector<32x256xf32>
    %159 = arith.mulf %158, %155 : vector<32x256xf32>
    %160 = arith.select %157, %155, %159 : vector<32x256xi1>, vector<32x256xf32>
    %c1_i32_58 = arith.constant 1 : i32
    %161 = tpu.dynamic_rotate %160 by %c1_i32_58 dim 0 : vector<32x256xf32>, i32 -> vector<32x256xf32>
    %162 = tpu.iota {dimensions = array<i32: 0>} : vector<32x256xi32>
    %c16_i32_59 = arith.constant 16 : i32
    %c0_i32_60 = arith.constant 0 : i32
    %163 = arith.cmpi eq, %c16_i32_59, %c0_i32_60 : i32
    %c1_i32_61 = arith.constant 1 : i32
    %164 = arith.select %163, %c1_i32_61, %c16_i32_59 : i32
    %165 = vector.broadcast %164 : i32 to vector<32x256xi32>
    %166 = arith.remsi %162, %165 : vector<32x256xi32>
    %c0_i32_62 = arith.constant 0 : i32
    %167 = vector.broadcast %c0_i32_62 : i32 to vector<32x256xi32>
    %168 = arith.cmpi ne, %166, %167 : vector<32x256xi32>
    %c0_i32_63 = arith.constant 0 : i32
    %169 = vector.broadcast %c0_i32_63 : i32 to vector<32x256xi32>
    %170 = arith.cmpi slt, %166, %169 : vector<32x256xi32>
    %c0_i32_64 = arith.constant 0 : i32
    %171 = arith.cmpi slt, %164, %c0_i32_64 : i32
    %172 = vector.broadcast %171 : i1 to vector<32x256xi1>
    %173 = vector.broadcast %172 : vector<32x256xi1> to vector<32x256xi1>
    %174 = arith.xori %170, %173 : vector<32x256xi1>
    %175 = arith.andi %174, %168 : vector<32x256xi1>
    %176 = vector.broadcast %164 : i32 to vector<32x256xi32>
    %177 = arith.addi %166, %176 : vector<32x256xi32>
    %178 = arith.select %175, %177, %166 : vector<32x256xi1>, vector<32x256xi32>
    %c1_i32_65 = arith.constant 1 : i32
    %179 = vector.broadcast %c1_i32_65 : i32 to vector<32x256xi32>
    %180 = arith.cmpi sge, %178, %179 : vector<32x256xi32>
    %cst_66 = arith.constant 0.000000e+00 : f32
    %181 = vector.broadcast %cst_66 : f32 to vector<32x256xf32>
    %182 = arith.select %180, %161, %181 : vector<32x256xi1>, vector<32x256xf32>
    %183 = arith.truncf %182 : vector<32x256xf32> to vector<32x256xbf16>
    %184 = arith.truncf %160 : vector<32x256xf32> to vector<32x256xbf16>
    %c31_i32_67 = arith.constant 31 : i32
    %185 = tpu.dynamic_rotate %160 by %c31_i32_67 dim 0 : vector<32x256xf32>, i32 -> vector<32x256xf32>
    %186 = tpu.iota {dimensions = array<i32: 0>} : vector<32x256xi32>
    %c16_i32_68 = arith.constant 16 : i32
    %c0_i32_69 = arith.constant 0 : i32
    %187 = arith.cmpi eq, %c16_i32_68, %c0_i32_69 : i32
    %c1_i32_70 = arith.constant 1 : i32
    %188 = arith.select %187, %c1_i32_70, %c16_i32_68 : i32
    %189 = vector.broadcast %188 : i32 to vector<32x256xi32>
    %190 = arith.remsi %186, %189 : vector<32x256xi32>
    %c0_i32_71 = arith.constant 0 : i32
    %191 = vector.broadcast %c0_i32_71 : i32 to vector<32x256xi32>
    %192 = arith.cmpi ne, %190, %191 : vector<32x256xi32>
    %c0_i32_72 = arith.constant 0 : i32
    %193 = vector.broadcast %c0_i32_72 : i32 to vector<32x256xi32>
    %194 = arith.cmpi slt, %190, %193 : vector<32x256xi32>
    %c0_i32_73 = arith.constant 0 : i32
    %195 = arith.cmpi slt, %188, %c0_i32_73 : i32
    %196 = vector.broadcast %195 : i1 to vector<32x256xi1>
    %197 = vector.broadcast %196 : vector<32x256xi1> to vector<32x256xi1>
    %198 = arith.xori %194, %197 : vector<32x256xi1>
    %199 = arith.andi %198, %192 : vector<32x256xi1>
    %200 = vector.broadcast %188 : i32 to vector<32x256xi32>
    %201 = arith.addi %190, %200 : vector<32x256xi32>
    %202 = arith.select %199, %201, %190 : vector<32x256xi1>, vector<32x256xi32>
    %c15_i32_74 = arith.constant 15 : i32
    %203 = vector.broadcast %c15_i32_74 : i32 to vector<32x256xi32>
    %204 = arith.cmpi slt, %202, %203 : vector<32x256xi32>
    %cst_75 = arith.constant 0.000000e+00 : f32
    %205 = vector.broadcast %cst_75 : f32 to vector<32x256xf32>
    %206 = arith.select %204, %185, %205 : vector<32x256xi1>, vector<32x256xf32>
    %207 = arith.truncf %206 : vector<32x256xf32> to vector<32x256xbf16>
    %cst_76 = arith.constant 0.000000e+00 : f32
    %208 = vector.broadcast %cst_76 : f32 to vector<32x256xf32>
    %c0_77 = arith.constant 0 : index
    %c0_78 = arith.constant 0 : index
    %c0_79 = arith.constant 0 : index
    %209 = vector.load %arg3[%c0_77, %c0_78, %c0_79] : memref<3x256x256xbf16, #tpu.memory_space<vmem>>, vector<1x256x256xbf16>
    %210 = vector.shape_cast %209 : vector<1x256x256xbf16> to vector<256x256xbf16>
    %cst_80 = arith.constant dense<0.000000e+00> : vector<32x256xf32>
    %211 = tpu.matmul %183, %210, %cst_80 {dimension_numbers = #tpu.dot_dimension_numbers<[1], [0], [0], [1], [0, 0, 1, 1], [], []>} : vector<32x256xbf16>, vector<256x256xbf16>, vector<32x256xf32> -> vector<32x256xf32>
    %212 = arith.addf %208, %211 : vector<32x256xf32>
    %c1_81 = arith.constant 1 : index
    %c0_82 = arith.constant 0 : index
    %c0_83 = arith.constant 0 : index
    %213 = vector.load %arg3[%c1_81, %c0_82, %c0_83] : memref<3x256x256xbf16, #tpu.memory_space<vmem>>, vector<1x256x256xbf16>
    %214 = vector.shape_cast %213 : vector<1x256x256xbf16> to vector<256x256xbf16>
    %cst_84 = arith.constant dense<0.000000e+00> : vector<32x256xf32>
    %215 = tpu.matmul %184, %214, %cst_84 {dimension_numbers = #tpu.dot_dimension_numbers<[1], [0], [0], [1], [0, 0, 1, 1], [], []>} : vector<32x256xbf16>, vector<256x256xbf16>, vector<32x256xf32> -> vector<32x256xf32>
    %216 = arith.addf %212, %215 : vector<32x256xf32>
    %c2_85 = arith.constant 2 : index
    %c0_86 = arith.constant 0 : index
    %c0_87 = arith.constant 0 : index
    %217 = vector.load %arg3[%c2_85, %c0_86, %c0_87] : memref<3x256x256xbf16, #tpu.memory_space<vmem>>, vector<1x256x256xbf16>
    %218 = vector.shape_cast %217 : vector<1x256x256xbf16> to vector<256x256xbf16>
    %cst_88 = arith.constant dense<0.000000e+00> : vector<32x256xf32>
    %219 = tpu.matmul %207, %218, %cst_88 {dimension_numbers = #tpu.dot_dimension_numbers<[1], [0], [0], [1], [0, 0, 1, 1], [], []>} : vector<32x256xbf16>, vector<256x256xbf16>, vector<32x256xf32> -> vector<32x256xf32>
    %220 = arith.addf %216, %219 : vector<32x256xf32>
    %c1_89 = arith.constant 1 : index
    %c0_90 = arith.constant 0 : index
    %221 = vector.load %arg9[%c1_89, %c0_90] : memref<7x256xf32, #tpu.memory_space<vmem>>, vector<1x256xf32>
    %222 = vector.broadcast %221 : vector<1x256xf32> to vector<32x256xf32>
    %223 = arith.addf %220, %222 : vector<32x256xf32>
    %cst_91 = arith.constant 0.000000e+00 : f32
    %224 = vector.broadcast %cst_91 : f32 to vector<32x256xf32>
    %225 = arith.cmpf ogt, %223, %224 : vector<32x256xf32>
    %cst_92 = arith.constant 3.000000e-01 : f32
    %226 = vector.broadcast %cst_92 : f32 to vector<32x256xf32>
    %227 = arith.mulf %226, %223 : vector<32x256xf32>
    %228 = arith.select %225, %223, %227 : vector<32x256xi1>, vector<32x256xf32>
    %229 = arith.truncf %228 : vector<32x256xf32> to vector<32x256xbf16>
    %c0_93 = arith.constant 0 : index
    %c0_94 = arith.constant 0 : index
    %230 = vector.load %arg8[%c0_93, %c0_94] : memref<512x64xbf16, #tpu.memory_space<vmem>>, vector<256x64xbf16>
    %cst_95 = arith.constant dense<0.000000e+00> : vector<32x64xf32>
    %231 = tpu.matmul %229, %230, %cst_95 {dimension_numbers = #tpu.dot_dimension_numbers<[1], [0], [0], [1], [0, 0, 1, 1], [], []>} : vector<32x256xbf16>, vector<256x64xbf16>, vector<32x64xf32> -> vector<32x64xf32>
    %cst_96 = arith.constant 0.000000e+00 : f32
    %232 = vector.broadcast %cst_96 : f32 to vector<32x128xf32>
    %c0_97 = arith.constant 0 : index
    %c0_98 = arith.constant 0 : index
    %c0_99 = arith.constant 0 : index
    %233 = vector.load %arg4[%c0_97, %c0_98, %c0_99] : memref<5x64x128xbf16, #tpu.memory_space<vmem>>, vector<1x64x128xbf16>
    %234 = vector.shape_cast %233 : vector<1x64x128xbf16> to vector<64x128xbf16>
    %cst_100 = arith.constant dense<0.000000e+00> : vector<32x128xf32>
    %235 = tpu.matmul %46, %234, %cst_100 {dimension_numbers = #tpu.dot_dimension_numbers<[1], [0], [0], [1], [0, 0, 1, 1], [], []>} : vector<32x64xbf16>, vector<64x128xbf16>, vector<32x128xf32> -> vector<32x128xf32>
    %236 = arith.addf %232, %235 : vector<32x128xf32>
    %c1_101 = arith.constant 1 : index
    %c0_102 = arith.constant 0 : index
    %c0_103 = arith.constant 0 : index
    %237 = vector.load %arg4[%c1_101, %c0_102, %c0_103] : memref<5x64x128xbf16, #tpu.memory_space<vmem>>, vector<1x64x128xbf16>
    %238 = vector.shape_cast %237 : vector<1x64x128xbf16> to vector<64x128xbf16>
    %cst_104 = arith.constant dense<0.000000e+00> : vector<32x128xf32>
    %239 = tpu.matmul %69, %238, %cst_104 {dimension_numbers = #tpu.dot_dimension_numbers<[1], [0], [0], [1], [0, 0, 1, 1], [], []>} : vector<32x64xbf16>, vector<64x128xbf16>, vector<32x128xf32> -> vector<32x128xf32>
    %240 = arith.addf %236, %239 : vector<32x128xf32>
    %c2_105 = arith.constant 2 : index
    %c0_106 = arith.constant 0 : index
    %c0_107 = arith.constant 0 : index
    %241 = vector.load %arg4[%c2_105, %c0_106, %c0_107] : memref<5x64x128xbf16, #tpu.memory_space<vmem>>, vector<1x64x128xbf16>
    %242 = vector.shape_cast %241 : vector<1x64x128xbf16> to vector<64x128xbf16>
    %cst_108 = arith.constant dense<0.000000e+00> : vector<32x128xf32>
    %243 = tpu.matmul %70, %242, %cst_108 {dimension_numbers = #tpu.dot_dimension_numbers<[1], [0], [0], [1], [0, 0, 1, 1], [], []>} : vector<32x64xbf16>, vector<64x128xbf16>, vector<32x128xf32> -> vector<32x128xf32>
    %244 = arith.addf %240, %243 : vector<32x128xf32>
    %c3 = arith.constant 3 : index
    %c0_109 = arith.constant 0 : index
    %c0_110 = arith.constant 0 : index
    %245 = vector.load %arg4[%c3, %c0_109, %c0_110] : memref<5x64x128xbf16, #tpu.memory_space<vmem>>, vector<1x64x128xbf16>
    %246 = vector.shape_cast %245 : vector<1x64x128xbf16> to vector<64x128xbf16>
    %cst_111 = arith.constant dense<0.000000e+00> : vector<32x128xf32>
    %247 = tpu.matmul %93, %246, %cst_111 {dimension_numbers = #tpu.dot_dimension_numbers<[1], [0], [0], [1], [0, 0, 1, 1], [], []>} : vector<32x64xbf16>, vector<64x128xbf16>, vector<32x128xf32> -> vector<32x128xf32>
    %248 = arith.addf %244, %247 : vector<32x128xf32>
    %c4 = arith.constant 4 : index
    %c0_112 = arith.constant 0 : index
    %c0_113 = arith.constant 0 : index
    %249 = vector.load %arg4[%c4, %c0_112, %c0_113] : memref<5x64x128xbf16, #tpu.memory_space<vmem>>, vector<1x64x128xbf16>
    %250 = vector.shape_cast %249 : vector<1x64x128xbf16> to vector<64x128xbf16>
    %cst_114 = arith.constant dense<0.000000e+00> : vector<32x128xf32>
    %251 = tpu.matmul %116, %250, %cst_114 {dimension_numbers = #tpu.dot_dimension_numbers<[1], [0], [0], [1], [0, 0, 1, 1], [], []>} : vector<32x64xbf16>, vector<64x128xbf16>, vector<32x128xf32> -> vector<32x128xf32>
    %252 = arith.addf %248, %251 : vector<32x128xf32>
    %c2_115 = arith.constant 2 : index
    %c0_116 = arith.constant 0 : index
    %253 = vector.load %arg9[%c2_115, %c0_116] : memref<7x256xf32, #tpu.memory_space<vmem>>, vector<1x128xf32>
    %254 = vector.broadcast %253 : vector<1x128xf32> to vector<32x128xf32>
    %255 = arith.addf %252, %254 : vector<32x128xf32>
    %cst_117 = arith.constant 0.000000e+00 : f32
    %256 = vector.broadcast %cst_117 : f32 to vector<32x128xf32>
    %257 = arith.cmpf ogt, %255, %256 : vector<32x128xf32>
    %cst_118 = arith.constant 3.000000e-01 : f32
    %258 = vector.broadcast %cst_118 : f32 to vector<32x128xf32>
    %259 = arith.mulf %258, %255 : vector<32x128xf32>
    %260 = arith.select %257, %255, %259 : vector<32x128xi1>, vector<32x128xf32>
    %c2_i32_119 = arith.constant 2 : i32
    %261 = tpu.dynamic_rotate %260 by %c2_i32_119 dim 0 : vector<32x128xf32>, i32 -> vector<32x128xf32>
    %262 = tpu.iota {dimensions = array<i32: 0>} : vector<32x128xi32>
    %c16_i32_120 = arith.constant 16 : i32
    %c0_i32_121 = arith.constant 0 : i32
    %263 = arith.cmpi eq, %c16_i32_120, %c0_i32_121 : i32
    %c1_i32_122 = arith.constant 1 : i32
    %264 = arith.select %263, %c1_i32_122, %c16_i32_120 : i32
    %265 = vector.broadcast %264 : i32 to vector<32x128xi32>
    %266 = arith.remsi %262, %265 : vector<32x128xi32>
    %c0_i32_123 = arith.constant 0 : i32
    %267 = vector.broadcast %c0_i32_123 : i32 to vector<32x128xi32>
    %268 = arith.cmpi ne, %266, %267 : vector<32x128xi32>
    %c0_i32_124 = arith.constant 0 : i32
    %269 = vector.broadcast %c0_i32_124 : i32 to vector<32x128xi32>
    %270 = arith.cmpi slt, %266, %269 : vector<32x128xi32>
    %c0_i32_125 = arith.constant 0 : i32
    %271 = arith.cmpi slt, %264, %c0_i32_125 : i32
    %272 = vector.broadcast %271 : i1 to vector<32x128xi1>
    %273 = vector.broadcast %272 : vector<32x128xi1> to vector<32x128xi1>
    %274 = arith.xori %270, %273 : vector<32x128xi1>
    %275 = arith.andi %274, %268 : vector<32x128xi1>
    %276 = vector.broadcast %264 : i32 to vector<32x128xi32>
    %277 = arith.addi %266, %276 : vector<32x128xi32>
    %278 = arith.select %275, %277, %266 : vector<32x128xi1>, vector<32x128xi32>
    %c2_i32_126 = arith.constant 2 : i32
    %279 = vector.broadcast %c2_i32_126 : i32 to vector<32x128xi32>
    %280 = arith.cmpi sge, %278, %279 : vector<32x128xi32>
    %cst_127 = arith.constant 0.000000e+00 : f32
    %281 = vector.broadcast %cst_127 : f32 to vector<32x128xf32>
    %282 = arith.select %280, %261, %281 : vector<32x128xi1>, vector<32x128xf32>
    %283 = arith.truncf %282 : vector<32x128xf32> to vector<32x128xbf16>
    %c1_i32_128 = arith.constant 1 : i32
    %284 = tpu.dynamic_rotate %260 by %c1_i32_128 dim 0 : vector<32x128xf32>, i32 -> vector<32x128xf32>
    %285 = tpu.iota {dimensions = array<i32: 0>} : vector<32x128xi32>
    %c16_i32_129 = arith.constant 16 : i32
    %c0_i32_130 = arith.constant 0 : i32
    %286 = arith.cmpi eq, %c16_i32_129, %c0_i32_130 : i32
    %c1_i32_131 = arith.constant 1 : i32
    %287 = arith.select %286, %c1_i32_131, %c16_i32_129 : i32
    %288 = vector.broadcast %287 : i32 to vector<32x128xi32>
    %289 = arith.remsi %285, %288 : vector<32x128xi32>
    %c0_i32_132 = arith.constant 0 : i32
    %290 = vector.broadcast %c0_i32_132 : i32 to vector<32x128xi32>
    %291 = arith.cmpi ne, %289, %290 : vector<32x128xi32>
    %c0_i32_133 = arith.constant 0 : i32
    %292 = vector.broadcast %c0_i32_133 : i32 to vector<32x128xi32>
    %293 = arith.cmpi slt, %289, %292 : vector<32x128xi32>
    %c0_i32_134 = arith.constant 0 : i32
    %294 = arith.cmpi slt, %287, %c0_i32_134 : i32
    %295 = vector.broadcast %294 : i1 to vector<32x128xi1>
    %296 = vector.broadcast %295 : vector<32x128xi1> to vector<32x128xi1>
    %297 = arith.xori %293, %296 : vector<32x128xi1>
    %298 = arith.andi %297, %291 : vector<32x128xi1>
    %299 = vector.broadcast %287 : i32 to vector<32x128xi32>
    %300 = arith.addi %289, %299 : vector<32x128xi32>
    %301 = arith.select %298, %300, %289 : vector<32x128xi1>, vector<32x128xi32>
    %c1_i32_135 = arith.constant 1 : i32
    %302 = vector.broadcast %c1_i32_135 : i32 to vector<32x128xi32>
    %303 = arith.cmpi sge, %301, %302 : vector<32x128xi32>
    %cst_136 = arith.constant 0.000000e+00 : f32
    %304 = vector.broadcast %cst_136 : f32 to vector<32x128xf32>
    %305 = arith.select %303, %284, %304 : vector<32x128xi1>, vector<32x128xf32>
    %306 = arith.truncf %305 : vector<32x128xf32> to vector<32x128xbf16>
    %307 = arith.truncf %260 : vector<32x128xf32> to vector<32x128xbf16>
    %c31_i32_137 = arith.constant 31 : i32
    %308 = tpu.dynamic_rotate %260 by %c31_i32_137 dim 0 : vector<32x128xf32>, i32 -> vector<32x128xf32>
    %309 = tpu.iota {dimensions = array<i32: 0>} : vector<32x128xi32>
    %c16_i32_138 = arith.constant 16 : i32
    %c0_i32_139 = arith.constant 0 : i32
    %310 = arith.cmpi eq, %c16_i32_138, %c0_i32_139 : i32
    %c1_i32_140 = arith.constant 1 : i32
    %311 = arith.select %310, %c1_i32_140, %c16_i32_138 : i32
    %312 = vector.broadcast %311 : i32 to vector<32x128xi32>
    %313 = arith.remsi %309, %312 : vector<32x128xi32>
    %c0_i32_141 = arith.constant 0 : i32
    %314 = vector.broadcast %c0_i32_141 : i32 to vector<32x128xi32>
    %315 = arith.cmpi ne, %313, %314 : vector<32x128xi32>
    %c0_i32_142 = arith.constant 0 : i32
    %316 = vector.broadcast %c0_i32_142 : i32 to vector<32x128xi32>
    %317 = arith.cmpi slt, %313, %316 : vector<32x128xi32>
    %c0_i32_143 = arith.constant 0 : i32
    %318 = arith.cmpi slt, %311, %c0_i32_143 : i32
    %319 = vector.broadcast %318 : i1 to vector<32x128xi1>
    %320 = vector.broadcast %319 : vector<32x128xi1> to vector<32x128xi1>
    %321 = arith.xori %317, %320 : vector<32x128xi1>
    %322 = arith.andi %321, %315 : vector<32x128xi1>
    %323 = vector.broadcast %311 : i32 to vector<32x128xi32>
    %324 = arith.addi %313, %323 : vector<32x128xi32>
    %325 = arith.select %322, %324, %313 : vector<32x128xi1>, vector<32x128xi32>
    %c15_i32_144 = arith.constant 15 : i32
    %326 = vector.broadcast %c15_i32_144 : i32 to vector<32x128xi32>
    %327 = arith.cmpi slt, %325, %326 : vector<32x128xi32>
    %cst_145 = arith.constant 0.000000e+00 : f32
    %328 = vector.broadcast %cst_145 : f32 to vector<32x128xf32>
    %329 = arith.select %327, %308, %328 : vector<32x128xi1>, vector<32x128xf32>
    %330 = arith.truncf %329 : vector<32x128xf32> to vector<32x128xbf16>
    %c30_i32_146 = arith.constant 30 : i32
    %331 = tpu.dynamic_rotate %260 by %c30_i32_146 dim 0 : vector<32x128xf32>, i32 -> vector<32x128xf32>
    %332 = tpu.iota {dimensions = array<i32: 0>} : vector<32x128xi32>
    %c16_i32_147 = arith.constant 16 : i32
    %c0_i32_148 = arith.constant 0 : i32
    %333 = arith.cmpi eq, %c16_i32_147, %c0_i32_148 : i32
    %c1_i32_149 = arith.constant 1 : i32
    %334 = arith.select %333, %c1_i32_149, %c16_i32_147 : i32
    %335 = vector.broadcast %334 : i32 to vector<32x128xi32>
    %336 = arith.remsi %332, %335 : vector<32x128xi32>
    %c0_i32_150 = arith.constant 0 : i32
    %337 = vector.broadcast %c0_i32_150 : i32 to vector<32x128xi32>
    %338 = arith.cmpi ne, %336, %337 : vector<32x128xi32>
    %c0_i32_151 = arith.constant 0 : i32
    %339 = vector.broadcast %c0_i32_151 : i32 to vector<32x128xi32>
    %340 = arith.cmpi slt, %336, %339 : vector<32x128xi32>
    %c0_i32_152 = arith.constant 0 : i32
    %341 = arith.cmpi slt, %334, %c0_i32_152 : i32
    %342 = vector.broadcast %341 : i1 to vector<32x128xi1>
    %343 = vector.broadcast %342 : vector<32x128xi1> to vector<32x128xi1>
    %344 = arith.xori %340, %343 : vector<32x128xi1>
    %345 = arith.andi %344, %338 : vector<32x128xi1>
    %346 = vector.broadcast %334 : i32 to vector<32x128xi32>
    %347 = arith.addi %336, %346 : vector<32x128xi32>
    %348 = arith.select %345, %347, %336 : vector<32x128xi1>, vector<32x128xi32>
    %c14_i32_153 = arith.constant 14 : i32
    %349 = vector.broadcast %c14_i32_153 : i32 to vector<32x128xi32>
    %350 = arith.cmpi slt, %348, %349 : vector<32x128xi32>
    %cst_154 = arith.constant 0.000000e+00 : f32
    %351 = vector.broadcast %cst_154 : f32 to vector<32x128xf32>
    %352 = arith.select %350, %331, %351 : vector<32x128xi1>, vector<32x128xf32>
    %353 = arith.truncf %352 : vector<32x128xf32> to vector<32x128xbf16>
    %cst_155 = arith.constant 0.000000e+00 : f32
    %354 = vector.broadcast %cst_155 : f32 to vector<32x128xf32>
    %c0_156 = arith.constant 0 : index
    %c0_157 = arith.constant 0 : index
    %c0_158 = arith.constant 0 : index
    %355 = vector.load %arg5[%c0_156, %c0_157, %c0_158] : memref<5x128x128xbf16, #tpu.memory_space<vmem>>, vector<1x128x128xbf16>
    %356 = vector.shape_cast %355 : vector<1x128x128xbf16> to vector<128x128xbf16>
    %cst_159 = arith.constant dense<0.000000e+00> : vector<32x128xf32>
    %357 = tpu.matmul %283, %356, %cst_159 {dimension_numbers = #tpu.dot_dimension_numbers<[1], [0], [0], [1], [0, 0, 1, 1], [], []>} : vector<32x128xbf16>, vector<128x128xbf16>, vector<32x128xf32> -> vector<32x128xf32>
    %358 = arith.addf %354, %357 : vector<32x128xf32>
    %c1_160 = arith.constant 1 : index
    %c0_161 = arith.constant 0 : index
    %c0_162 = arith.constant 0 : index
    %359 = vector.load %arg5[%c1_160, %c0_161, %c0_162] : memref<5x128x128xbf16, #tpu.memory_space<vmem>>, vector<1x128x128xbf16>
    %360 = vector.shape_cast %359 : vector<1x128x128xbf16> to vector<128x128xbf16>
    %cst_163 = arith.constant dense<0.000000e+00> : vector<32x128xf32>
    %361 = tpu.matmul %306, %360, %cst_163 {dimension_numbers = #tpu.dot_dimension_numbers<[1], [0], [0], [1], [0, 0, 1, 1], [], []>} : vector<32x128xbf16>, vector<128x128xbf16>, vector<32x128xf32> -> vector<32x128xf32>
    %362 = arith.addf %358, %361 : vector<32x128xf32>
    %c2_164 = arith.constant 2 : index
    %c0_165 = arith.constant 0 : index
    %c0_166 = arith.constant 0 : index
    %363 = vector.load %arg5[%c2_164, %c0_165, %c0_166] : memref<5x128x128xbf16, #tpu.memory_space<vmem>>, vector<1x128x128xbf16>
    %364 = vector.shape_cast %363 : vector<1x128x128xbf16> to vector<128x128xbf16>
    %cst_167 = arith.constant dense<0.000000e+00> : vector<32x128xf32>
    %365 = tpu.matmul %307, %364, %cst_167 {dimension_numbers = #tpu.dot_dimension_numbers<[1], [0], [0], [1], [0, 0, 1, 1], [], []>} : vector<32x128xbf16>, vector<128x128xbf16>, vector<32x128xf32> -> vector<32x128xf32>
    %366 = arith.addf %362, %365 : vector<32x128xf32>
    %c3_168 = arith.constant 3 : index
    %c0_169 = arith.constant 0 : index
    %c0_170 = arith.constant 0 : index
    %367 = vector.load %arg5[%c3_168, %c0_169, %c0_170] : memref<5x128x128xbf16, #tpu.memory_space<vmem>>, vector<1x128x128xbf16>
    %368 = vector.shape_cast %367 : vector<1x128x128xbf16> to vector<128x128xbf16>
    %cst_171 = arith.constant dense<0.000000e+00> : vector<32x128xf32>
    %369 = tpu.matmul %330, %368, %cst_171 {dimension_numbers = #tpu.dot_dimension_numbers<[1], [0], [0], [1], [0, 0, 1, 1], [], []>} : vector<32x128xbf16>, vector<128x128xbf16>, vector<32x128xf32> -> vector<32x128xf32>
    %370 = arith.addf %366, %369 : vector<32x128xf32>
    %c4_172 = arith.constant 4 : index
    %c0_173 = arith.constant 0 : index
    %c0_174 = arith.constant 0 : index
    %371 = vector.load %arg5[%c4_172, %c0_173, %c0_174] : memref<5x128x128xbf16, #tpu.memory_space<vmem>>, vector<1x128x128xbf16>
    %372 = vector.shape_cast %371 : vector<1x128x128xbf16> to vector<128x128xbf16>
    %cst_175 = arith.constant dense<0.000000e+00> : vector<32x128xf32>
    %373 = tpu.matmul %353, %372, %cst_175 {dimension_numbers = #tpu.dot_dimension_numbers<[1], [0], [0], [1], [0, 0, 1, 1], [], []>} : vector<32x128xbf16>, vector<128x128xbf16>, vector<32x128xf32> -> vector<32x128xf32>
    %374 = arith.addf %370, %373 : vector<32x128xf32>
    %c3_176 = arith.constant 3 : index
    %c0_177 = arith.constant 0 : index
    %375 = vector.load %arg9[%c3_176, %c0_177] : memref<7x256xf32, #tpu.memory_space<vmem>>, vector<1x128xf32>
    %376 = vector.broadcast %375 : vector<1x128xf32> to vector<32x128xf32>
    %377 = arith.addf %374, %376 : vector<32x128xf32>
    %cst_178 = arith.constant 0.000000e+00 : f32
    %378 = vector.broadcast %cst_178 : f32 to vector<32x128xf32>
    %379 = arith.cmpf ogt, %377, %378 : vector<32x128xf32>
    %cst_179 = arith.constant 3.000000e-01 : f32
    %380 = vector.broadcast %cst_179 : f32 to vector<32x128xf32>
    %381 = arith.mulf %380, %377 : vector<32x128xf32>
    %382 = arith.select %379, %377, %381 : vector<32x128xi1>, vector<32x128xf32>
    %383 = arith.truncf %382 : vector<32x128xf32> to vector<32x128xbf16>
    %c256 = arith.constant 256 : index
    %c0_180 = arith.constant 0 : index
    %384 = vector.load %arg8[%c256, %c0_180] : memref<512x64xbf16, #tpu.memory_space<vmem>>, vector<128x64xbf16>
    %cst_181 = arith.constant dense<0.000000e+00> : vector<32x64xf32>
    %385 = tpu.matmul %383, %384, %cst_181 {dimension_numbers = #tpu.dot_dimension_numbers<[1], [0], [0], [1], [0, 0, 1, 1], [], []>} : vector<32x128xbf16>, vector<128x64xbf16>, vector<32x64xf32> -> vector<32x64xf32>
    %386 = arith.addf %231, %385 : vector<32x64xf32>
    %cst_182 = arith.constant 0.000000e+00 : f32
    %387 = vector.broadcast %cst_182 : f32 to vector<32x128xf32>
    %c0_183 = arith.constant 0 : index
    %c0_184 = arith.constant 0 : index
    %c0_185 = arith.constant 0 : index
    %388 = vector.load %arg6[%c0_183, %c0_184, %c0_185] : memref<7x64x128xbf16, #tpu.memory_space<vmem>>, vector<1x64x128xbf16>
    %389 = vector.shape_cast %388 : vector<1x64x128xbf16> to vector<64x128xbf16>
    %cst_186 = arith.constant dense<0.000000e+00> : vector<32x128xf32>
    %390 = tpu.matmul %23, %389, %cst_186 {dimension_numbers = #tpu.dot_dimension_numbers<[1], [0], [0], [1], [0, 0, 1, 1], [], []>} : vector<32x64xbf16>, vector<64x128xbf16>, vector<32x128xf32> -> vector<32x128xf32>
    %391 = arith.addf %387, %390 : vector<32x128xf32>
    %c1_187 = arith.constant 1 : index
    %c0_188 = arith.constant 0 : index
    %c0_189 = arith.constant 0 : index
    %392 = vector.load %arg6[%c1_187, %c0_188, %c0_189] : memref<7x64x128xbf16, #tpu.memory_space<vmem>>, vector<1x64x128xbf16>
    %393 = vector.shape_cast %392 : vector<1x64x128xbf16> to vector<64x128xbf16>
    %cst_190 = arith.constant dense<0.000000e+00> : vector<32x128xf32>
    %394 = tpu.matmul %46, %393, %cst_190 {dimension_numbers = #tpu.dot_dimension_numbers<[1], [0], [0], [1], [0, 0, 1, 1], [], []>} : vector<32x64xbf16>, vector<64x128xbf16>, vector<32x128xf32> -> vector<32x128xf32>
    %395 = arith.addf %391, %394 : vector<32x128xf32>
    %c2_191 = arith.constant 2 : index
    %c0_192 = arith.constant 0 : index
    %c0_193 = arith.constant 0 : index
    %396 = vector.load %arg6[%c2_191, %c0_192, %c0_193] : memref<7x64x128xbf16, #tpu.memory_space<vmem>>, vector<1x64x128xbf16>
    %397 = vector.shape_cast %396 : vector<1x64x128xbf16> to vector<64x128xbf16>
    %cst_194 = arith.constant dense<0.000000e+00> : vector<32x128xf32>
    %398 = tpu.matmul %69, %397, %cst_194 {dimension_numbers = #tpu.dot_dimension_numbers<[1], [0], [0], [1], [0, 0, 1, 1], [], []>} : vector<32x64xbf16>, vector<64x128xbf16>, vector<32x128xf32> -> vector<32x128xf32>
    %399 = arith.addf %395, %398 : vector<32x128xf32>
    %c3_195 = arith.constant 3 : index
    %c0_196 = arith.constant 0 : index
    %c0_197 = arith.constant 0 : index
    %400 = vector.load %arg6[%c3_195, %c0_196, %c0_197] : memref<7x64x128xbf16, #tpu.memory_space<vmem>>, vector<1x64x128xbf16>
    %401 = vector.shape_cast %400 : vector<1x64x128xbf16> to vector<64x128xbf16>
    %cst_198 = arith.constant dense<0.000000e+00> : vector<32x128xf32>
    %402 = tpu.matmul %70, %401, %cst_198 {dimension_numbers = #tpu.dot_dimension_numbers<[1], [0], [0], [1], [0, 0, 1, 1], [], []>} : vector<32x64xbf16>, vector<64x128xbf16>, vector<32x128xf32> -> vector<32x128xf32>
    %403 = arith.addf %399, %402 : vector<32x128xf32>
    %c4_199 = arith.constant 4 : index
    %c0_200 = arith.constant 0 : index
    %c0_201 = arith.constant 0 : index
    %404 = vector.load %arg6[%c4_199, %c0_200, %c0_201] : memref<7x64x128xbf16, #tpu.memory_space<vmem>>, vector<1x64x128xbf16>
    %405 = vector.shape_cast %404 : vector<1x64x128xbf16> to vector<64x128xbf16>
    %cst_202 = arith.constant dense<0.000000e+00> : vector<32x128xf32>
    %406 = tpu.matmul %93, %405, %cst_202 {dimension_numbers = #tpu.dot_dimension_numbers<[1], [0], [0], [1], [0, 0, 1, 1], [], []>} : vector<32x64xbf16>, vector<64x128xbf16>, vector<32x128xf32> -> vector<32x128xf32>
    %407 = arith.addf %403, %406 : vector<32x128xf32>
    %c5 = arith.constant 5 : index
    %c0_203 = arith.constant 0 : index
    %c0_204 = arith.constant 0 : index
    %408 = vector.load %arg6[%c5, %c0_203, %c0_204] : memref<7x64x128xbf16, #tpu.memory_space<vmem>>, vector<1x64x128xbf16>
    %409 = vector.shape_cast %408 : vector<1x64x128xbf16> to vector<64x128xbf16>
    %cst_205 = arith.constant dense<0.000000e+00> : vector<32x128xf32>
    %410 = tpu.matmul %116, %409, %cst_205 {dimension_numbers = #tpu.dot_dimension_numbers<[1], [0], [0], [1], [0, 0, 1, 1], [], []>} : vector<32x64xbf16>, vector<64x128xbf16>, vector<32x128xf32> -> vector<32x128xf32>
    %411 = arith.addf %407, %410 : vector<32x128xf32>
    %c6 = arith.constant 6 : index
    %c0_206 = arith.constant 0 : index
    %c0_207 = arith.constant 0 : index
    %412 = vector.load %arg6[%c6, %c0_206, %c0_207] : memref<7x64x128xbf16, #tpu.memory_space<vmem>>, vector<1x64x128xbf16>
    %413 = vector.shape_cast %412 : vector<1x64x128xbf16> to vector<64x128xbf16>
    %cst_208 = arith.constant dense<0.000000e+00> : vector<32x128xf32>
    %414 = tpu.matmul %139, %413, %cst_208 {dimension_numbers = #tpu.dot_dimension_numbers<[1], [0], [0], [1], [0, 0, 1, 1], [], []>} : vector<32x64xbf16>, vector<64x128xbf16>, vector<32x128xf32> -> vector<32x128xf32>
    %415 = arith.addf %411, %414 : vector<32x128xf32>
    %c4_209 = arith.constant 4 : index
    %c0_210 = arith.constant 0 : index
    %416 = vector.load %arg9[%c4_209, %c0_210] : memref<7x256xf32, #tpu.memory_space<vmem>>, vector<1x128xf32>
    %417 = vector.broadcast %416 : vector<1x128xf32> to vector<32x128xf32>
    %418 = arith.addf %415, %417 : vector<32x128xf32>
    %cst_211 = arith.constant 0.000000e+00 : f32
    %419 = vector.broadcast %cst_211 : f32 to vector<32x128xf32>
    %420 = arith.cmpf ogt, %418, %419 : vector<32x128xf32>
    %cst_212 = arith.constant 3.000000e-01 : f32
    %421 = vector.broadcast %cst_212 : f32 to vector<32x128xf32>
    %422 = arith.mulf %421, %418 : vector<32x128xf32>
    %423 = arith.select %420, %418, %422 : vector<32x128xi1>, vector<32x128xf32>
    %c3_i32_213 = arith.constant 3 : i32
    %424 = tpu.dynamic_rotate %423 by %c3_i32_213 dim 0 : vector<32x128xf32>, i32 -> vector<32x128xf32>
    %425 = tpu.iota {dimensions = array<i32: 0>} : vector<32x128xi32>
    %c16_i32_214 = arith.constant 16 : i32
    %c0_i32_215 = arith.constant 0 : i32
    %426 = arith.cmpi eq, %c16_i32_214, %c0_i32_215 : i32
    %c1_i32_216 = arith.constant 1 : i32
    %427 = arith.select %426, %c1_i32_216, %c16_i32_214 : i32
    %428 = vector.broadcast %427 : i32 to vector<32x128xi32>
    %429 = arith.remsi %425, %428 : vector<32x128xi32>
    %c0_i32_217 = arith.constant 0 : i32
    %430 = vector.broadcast %c0_i32_217 : i32 to vector<32x128xi32>
    %431 = arith.cmpi ne, %429, %430 : vector<32x128xi32>
    %c0_i32_218 = arith.constant 0 : i32
    %432 = vector.broadcast %c0_i32_218 : i32 to vector<32x128xi32>
    %433 = arith.cmpi slt, %429, %432 : vector<32x128xi32>
    %c0_i32_219 = arith.constant 0 : i32
    %434 = arith.cmpi slt, %427, %c0_i32_219 : i32
    %435 = vector.broadcast %434 : i1 to vector<32x128xi1>
    %436 = vector.broadcast %435 : vector<32x128xi1> to vector<32x128xi1>
    %437 = arith.xori %433, %436 : vector<32x128xi1>
    %438 = arith.andi %437, %431 : vector<32x128xi1>
    %439 = vector.broadcast %427 : i32 to vector<32x128xi32>
    %440 = arith.addi %429, %439 : vector<32x128xi32>
    %441 = arith.select %438, %440, %429 : vector<32x128xi1>, vector<32x128xi32>
    %c3_i32_220 = arith.constant 3 : i32
    %442 = vector.broadcast %c3_i32_220 : i32 to vector<32x128xi32>
    %443 = arith.cmpi sge, %441, %442 : vector<32x128xi32>
    %cst_221 = arith.constant 0.000000e+00 : f32
    %444 = vector.broadcast %cst_221 : f32 to vector<32x128xf32>
    %445 = arith.select %443, %424, %444 : vector<32x128xi1>, vector<32x128xf32>
    %446 = arith.truncf %445 : vector<32x128xf32> to vector<32x128xbf16>
    %c2_i32_222 = arith.constant 2 : i32
    %447 = tpu.dynamic_rotate %423 by %c2_i32_222 dim 0 : vector<32x128xf32>, i32 -> vector<32x128xf32>
    %448 = tpu.iota {dimensions = array<i32: 0>} : vector<32x128xi32>
    %c16_i32_223 = arith.constant 16 : i32
    %c0_i32_224 = arith.constant 0 : i32
    %449 = arith.cmpi eq, %c16_i32_223, %c0_i32_224 : i32
    %c1_i32_225 = arith.constant 1 : i32
    %450 = arith.select %449, %c1_i32_225, %c16_i32_223 : i32
    %451 = vector.broadcast %450 : i32 to vector<32x128xi32>
    %452 = arith.remsi %448, %451 : vector<32x128xi32>
    %c0_i32_226 = arith.constant 0 : i32
    %453 = vector.broadcast %c0_i32_226 : i32 to vector<32x128xi32>
    %454 = arith.cmpi ne, %452, %453 : vector<32x128xi32>
    %c0_i32_227 = arith.constant 0 : i32
    %455 = vector.broadcast %c0_i32_227 : i32 to vector<32x128xi32>
    %456 = arith.cmpi slt, %452, %455 : vector<32x128xi32>
    %c0_i32_228 = arith.constant 0 : i32
    %457 = arith.cmpi slt, %450, %c0_i32_228 : i32
    %458 = vector.broadcast %457 : i1 to vector<32x128xi1>
    %459 = vector.broadcast %458 : vector<32x128xi1> to vector<32x128xi1>
    %460 = arith.xori %456, %459 : vector<32x128xi1>
    %461 = arith.andi %460, %454 : vector<32x128xi1>
    %462 = vector.broadcast %450 : i32 to vector<32x128xi32>
    %463 = arith.addi %452, %462 : vector<32x128xi32>
    %464 = arith.select %461, %463, %452 : vector<32x128xi1>, vector<32x128xi32>
    %c2_i32_229 = arith.constant 2 : i32
    %465 = vector.broadcast %c2_i32_229 : i32 to vector<32x128xi32>
    %466 = arith.cmpi sge, %464, %465 : vector<32x128xi32>
    %cst_230 = arith.constant 0.000000e+00 : f32
    %467 = vector.broadcast %cst_230 : f32 to vector<32x128xf32>
    %468 = arith.select %466, %447, %467 : vector<32x128xi1>, vector<32x128xf32>
    %469 = arith.truncf %468 : vector<32x128xf32> to vector<32x128xbf16>
    %c1_i32_231 = arith.constant 1 : i32
    %470 = tpu.dynamic_rotate %423 by %c1_i32_231 dim 0 : vector<32x128xf32>, i32 -> vector<32x128xf32>
    %471 = tpu.iota {dimensions = array<i32: 0>} : vector<32x128xi32>
    %c16_i32_232 = arith.constant 16 : i32
    %c0_i32_233 = arith.constant 0 : i32
    %472 = arith.cmpi eq, %c16_i32_232, %c0_i32_233 : i32
    %c1_i32_234 = arith.constant 1 : i32
    %473 = arith.select %472, %c1_i32_234, %c16_i32_232 : i32
    %474 = vector.broadcast %473 : i32 to vector<32x128xi32>
    %475 = arith.remsi %471, %474 : vector<32x128xi32>
    %c0_i32_235 = arith.constant 0 : i32
    %476 = vector.broadcast %c0_i32_235 : i32 to vector<32x128xi32>
    %477 = arith.cmpi ne, %475, %476 : vector<32x128xi32>
    %c0_i32_236 = arith.constant 0 : i32
    %478 = vector.broadcast %c0_i32_236 : i32 to vector<32x128xi32>
    %479 = arith.cmpi slt, %475, %478 : vector<32x128xi32>
    %c0_i32_237 = arith.constant 0 : i32
    %480 = arith.cmpi slt, %473, %c0_i32_237 : i32
    %481 = vector.broadcast %480 : i1 to vector<32x128xi1>
    %482 = vector.broadcast %481 : vector<32x128xi1> to vector<32x128xi1>
    %483 = arith.xori %479, %482 : vector<32x128xi1>
    %484 = arith.andi %483, %477 : vector<32x128xi1>
    %485 = vector.broadcast %473 : i32 to vector<32x128xi32>
    %486 = arith.addi %475, %485 : vector<32x128xi32>
    %487 = arith.select %484, %486, %475 : vector<32x128xi1>, vector<32x128xi32>
    %c1_i32_238 = arith.constant 1 : i32
    %488 = vector.broadcast %c1_i32_238 : i32 to vector<32x128xi32>
    %489 = arith.cmpi sge, %487, %488 : vector<32x128xi32>
    %cst_239 = arith.constant 0.000000e+00 : f32
    %490 = vector.broadcast %cst_239 : f32 to vector<32x128xf32>
    %491 = arith.select %489, %470, %490 : vector<32x128xi1>, vector<32x128xf32>
    %492 = arith.truncf %491 : vector<32x128xf32> to vector<32x128xbf16>
    %493 = arith.truncf %423 : vector<32x128xf32> to vector<32x128xbf16>
    %c31_i32_240 = arith.constant 31 : i32
    %494 = tpu.dynamic_rotate %423 by %c31_i32_240 dim 0 : vector<32x128xf32>, i32 -> vector<32x128xf32>
    %495 = tpu.iota {dimensions = array<i32: 0>} : vector<32x128xi32>
    %c16_i32_241 = arith.constant 16 : i32
    %c0_i32_242 = arith.constant 0 : i32
    %496 = arith.cmpi eq, %c16_i32_241, %c0_i32_242 : i32
    %c1_i32_243 = arith.constant 1 : i32
    %497 = arith.select %496, %c1_i32_243, %c16_i32_241 : i32
    %498 = vector.broadcast %497 : i32 to vector<32x128xi32>
    %499 = arith.remsi %495, %498 : vector<32x128xi32>
    %c0_i32_244 = arith.constant 0 : i32
    %500 = vector.broadcast %c0_i32_244 : i32 to vector<32x128xi32>
    %501 = arith.cmpi ne, %499, %500 : vector<32x128xi32>
    %c0_i32_245 = arith.constant 0 : i32
    %502 = vector.broadcast %c0_i32_245 : i32 to vector<32x128xi32>
    %503 = arith.cmpi slt, %499, %502 : vector<32x128xi32>
    %c0_i32_246 = arith.constant 0 : i32
    %504 = arith.cmpi slt, %497, %c0_i32_246 : i32
    %505 = vector.broadcast %504 : i1 to vector<32x128xi1>
    %506 = vector.broadcast %505 : vector<32x128xi1> to vector<32x128xi1>
    %507 = arith.xori %503, %506 : vector<32x128xi1>
    %508 = arith.andi %507, %501 : vector<32x128xi1>
    %509 = vector.broadcast %497 : i32 to vector<32x128xi32>
    %510 = arith.addi %499, %509 : vector<32x128xi32>
    %511 = arith.select %508, %510, %499 : vector<32x128xi1>, vector<32x128xi32>
    %c15_i32_247 = arith.constant 15 : i32
    %512 = vector.broadcast %c15_i32_247 : i32 to vector<32x128xi32>
    %513 = arith.cmpi slt, %511, %512 : vector<32x128xi32>
    %cst_248 = arith.constant 0.000000e+00 : f32
    %514 = vector.broadcast %cst_248 : f32 to vector<32x128xf32>
    %515 = arith.select %513, %494, %514 : vector<32x128xi1>, vector<32x128xf32>
    %516 = arith.truncf %515 : vector<32x128xf32> to vector<32x128xbf16>
    %c30_i32_249 = arith.constant 30 : i32
    %517 = tpu.dynamic_rotate %423 by %c30_i32_249 dim 0 : vector<32x128xf32>, i32 -> vector<32x128xf32>
    %518 = tpu.iota {dimensions = array<i32: 0>} : vector<32x128xi32>
    %c16_i32_250 = arith.constant 16 : i32
    %c0_i32_251 = arith.constant 0 : i32
    %519 = arith.cmpi eq, %c16_i32_250, %c0_i32_251 : i32
    %c1_i32_252 = arith.constant 1 : i32
    %520 = arith.select %519, %c1_i32_252, %c16_i32_250 : i32
    %521 = vector.broadcast %520 : i32 to vector<32x128xi32>
    %522 = arith.remsi %518, %521 : vector<32x128xi32>
    %c0_i32_253 = arith.constant 0 : i32
    %523 = vector.broadcast %c0_i32_253 : i32 to vector<32x128xi32>
    %524 = arith.cmpi ne, %522, %523 : vector<32x128xi32>
    %c0_i32_254 = arith.constant 0 : i32
    %525 = vector.broadcast %c0_i32_254 : i32 to vector<32x128xi32>
    %526 = arith.cmpi slt, %522, %525 : vector<32x128xi32>
    %c0_i32_255 = arith.constant 0 : i32
    %527 = arith.cmpi slt, %520, %c0_i32_255 : i32
    %528 = vector.broadcast %527 : i1 to vector<32x128xi1>
    %529 = vector.broadcast %528 : vector<32x128xi1> to vector<32x128xi1>
    %530 = arith.xori %526, %529 : vector<32x128xi1>
    %531 = arith.andi %530, %524 : vector<32x128xi1>
    %532 = vector.broadcast %520 : i32 to vector<32x128xi32>
    %533 = arith.addi %522, %532 : vector<32x128xi32>
    %534 = arith.select %531, %533, %522 : vector<32x128xi1>, vector<32x128xi32>
    %c14_i32_256 = arith.constant 14 : i32
    %535 = vector.broadcast %c14_i32_256 : i32 to vector<32x128xi32>
    %536 = arith.cmpi slt, %534, %535 : vector<32x128xi32>
    %cst_257 = arith.constant 0.000000e+00 : f32
    %537 = vector.broadcast %cst_257 : f32 to vector<32x128xf32>
    %538 = arith.select %536, %517, %537 : vector<32x128xi1>, vector<32x128xf32>
    %539 = arith.truncf %538 : vector<32x128xf32> to vector<32x128xbf16>
    %c29_i32_258 = arith.constant 29 : i32
    %540 = tpu.dynamic_rotate %423 by %c29_i32_258 dim 0 : vector<32x128xf32>, i32 -> vector<32x128xf32>
    %541 = tpu.iota {dimensions = array<i32: 0>} : vector<32x128xi32>
    %c16_i32_259 = arith.constant 16 : i32
    %c0_i32_260 = arith.constant 0 : i32
    %542 = arith.cmpi eq, %c16_i32_259, %c0_i32_260 : i32
    %c1_i32_261 = arith.constant 1 : i32
    %543 = arith.select %542, %c1_i32_261, %c16_i32_259 : i32
    %544 = vector.broadcast %543 : i32 to vector<32x128xi32>
    %545 = arith.remsi %541, %544 : vector<32x128xi32>
    %c0_i32_262 = arith.constant 0 : i32
    %546 = vector.broadcast %c0_i32_262 : i32 to vector<32x128xi32>
    %547 = arith.cmpi ne, %545, %546 : vector<32x128xi32>
    %c0_i32_263 = arith.constant 0 : i32
    %548 = vector.broadcast %c0_i32_263 : i32 to vector<32x128xi32>
    %549 = arith.cmpi slt, %545, %548 : vector<32x128xi32>
    %c0_i32_264 = arith.constant 0 : i32
    %550 = arith.cmpi slt, %543, %c0_i32_264 : i32
    %551 = vector.broadcast %550 : i1 to vector<32x128xi1>
    %552 = vector.broadcast %551 : vector<32x128xi1> to vector<32x128xi1>
    %553 = arith.xori %549, %552 : vector<32x128xi1>
    %554 = arith.andi %553, %547 : vector<32x128xi1>
    %555 = vector.broadcast %543 : i32 to vector<32x128xi32>
    %556 = arith.addi %545, %555 : vector<32x128xi32>
    %557 = arith.select %554, %556, %545 : vector<32x128xi1>, vector<32x128xi32>
    %c13_i32_265 = arith.constant 13 : i32
    %558 = vector.broadcast %c13_i32_265 : i32 to vector<32x128xi32>
    %559 = arith.cmpi slt, %557, %558 : vector<32x128xi32>
    %cst_266 = arith.constant 0.000000e+00 : f32
    %560 = vector.broadcast %cst_266 : f32 to vector<32x128xf32>
    %561 = arith.select %559, %540, %560 : vector<32x128xi1>, vector<32x128xf32>
    %562 = arith.truncf %561 : vector<32x128xf32> to vector<32x128xbf16>
    %cst_267 = arith.constant 0.000000e+00 : f32
    %563 = vector.broadcast %cst_267 : f32 to vector<32x128xf32>
    %c0_268 = arith.constant 0 : index
    %c0_269 = arith.constant 0 : index
    %c0_270 = arith.constant 0 : index
    %564 = vector.load %arg7[%c0_268, %c0_269, %c0_270] : memref<7x128x128xbf16, #tpu.memory_space<vmem>>, vector<1x128x128xbf16>
    %565 = vector.shape_cast %564 : vector<1x128x128xbf16> to vector<128x128xbf16>
    %cst_271 = arith.constant dense<0.000000e+00> : vector<32x128xf32>
    %566 = tpu.matmul %446, %565, %cst_271 {dimension_numbers = #tpu.dot_dimension_numbers<[1], [0], [0], [1], [0, 0, 1, 1], [], []>} : vector<32x128xbf16>, vector<128x128xbf16>, vector<32x128xf32> -> vector<32x128xf32>
    %567 = arith.addf %563, %566 : vector<32x128xf32>
    %c1_272 = arith.constant 1 : index
    %c0_273 = arith.constant 0 : index
    %c0_274 = arith.constant 0 : index
    %568 = vector.load %arg7[%c1_272, %c0_273, %c0_274] : memref<7x128x128xbf16, #tpu.memory_space<vmem>>, vector<1x128x128xbf16>
    %569 = vector.shape_cast %568 : vector<1x128x128xbf16> to vector<128x128xbf16>
    %cst_275 = arith.constant dense<0.000000e+00> : vector<32x128xf32>
    %570 = tpu.matmul %469, %569, %cst_275 {dimension_numbers = #tpu.dot_dimension_numbers<[1], [0], [0], [1], [0, 0, 1, 1], [], []>} : vector<32x128xbf16>, vector<128x128xbf16>, vector<32x128xf32> -> vector<32x128xf32>
    %571 = arith.addf %567, %570 : vector<32x128xf32>
    %c2_276 = arith.constant 2 : index
    %c0_277 = arith.constant 0 : index
    %c0_278 = arith.constant 0 : index
    %572 = vector.load %arg7[%c2_276, %c0_277, %c0_278] : memref<7x128x128xbf16, #tpu.memory_space<vmem>>, vector<1x128x128xbf16>
    %573 = vector.shape_cast %572 : vector<1x128x128xbf16> to vector<128x128xbf16>
    %cst_279 = arith.constant dense<0.000000e+00> : vector<32x128xf32>
    %574 = tpu.matmul %492, %573, %cst_279 {dimension_numbers = #tpu.dot_dimension_numbers<[1], [0], [0], [1], [0, 0, 1, 1], [], []>} : vector<32x128xbf16>, vector<128x128xbf16>, vector<32x128xf32> -> vector<32x128xf32>
    %575 = arith.addf %571, %574 : vector<32x128xf32>
    %c3_280 = arith.constant 3 : index
    %c0_281 = arith.constant 0 : index
    %c0_282 = arith.constant 0 : index
    %576 = vector.load %arg7[%c3_280, %c0_281, %c0_282] : memref<7x128x128xbf16, #tpu.memory_space<vmem>>, vector<1x128x128xbf16>
    %577 = vector.shape_cast %576 : vector<1x128x128xbf16> to vector<128x128xbf16>
    %cst_283 = arith.constant dense<0.000000e+00> : vector<32x128xf32>
    %578 = tpu.matmul %493, %577, %cst_283 {dimension_numbers = #tpu.dot_dimension_numbers<[1], [0], [0], [1], [0, 0, 1, 1], [], []>} : vector<32x128xbf16>, vector<128x128xbf16>, vector<32x128xf32> -> vector<32x128xf32>
    %579 = arith.addf %575, %578 : vector<32x128xf32>
    %c4_284 = arith.constant 4 : index
    %c0_285 = arith.constant 0 : index
    %c0_286 = arith.constant 0 : index
    %580 = vector.load %arg7[%c4_284, %c0_285, %c0_286] : memref<7x128x128xbf16, #tpu.memory_space<vmem>>, vector<1x128x128xbf16>
    %581 = vector.shape_cast %580 : vector<1x128x128xbf16> to vector<128x128xbf16>
    %cst_287 = arith.constant dense<0.000000e+00> : vector<32x128xf32>
    %582 = tpu.matmul %516, %581, %cst_287 {dimension_numbers = #tpu.dot_dimension_numbers<[1], [0], [0], [1], [0, 0, 1, 1], [], []>} : vector<32x128xbf16>, vector<128x128xbf16>, vector<32x128xf32> -> vector<32x128xf32>
    %583 = arith.addf %579, %582 : vector<32x128xf32>
    %c5_288 = arith.constant 5 : index
    %c0_289 = arith.constant 0 : index
    %c0_290 = arith.constant 0 : index
    %584 = vector.load %arg7[%c5_288, %c0_289, %c0_290] : memref<7x128x128xbf16, #tpu.memory_space<vmem>>, vector<1x128x128xbf16>
    %585 = vector.shape_cast %584 : vector<1x128x128xbf16> to vector<128x128xbf16>
    %cst_291 = arith.constant dense<0.000000e+00> : vector<32x128xf32>
    %586 = tpu.matmul %539, %585, %cst_291 {dimension_numbers = #tpu.dot_dimension_numbers<[1], [0], [0], [1], [0, 0, 1, 1], [], []>} : vector<32x128xbf16>, vector<128x128xbf16>, vector<32x128xf32> -> vector<32x128xf32>
    %587 = arith.addf %583, %586 : vector<32x128xf32>
    %c6_292 = arith.constant 6 : index
    %c0_293 = arith.constant 0 : index
    %c0_294 = arith.constant 0 : index
    %588 = vector.load %arg7[%c6_292, %c0_293, %c0_294] : memref<7x128x128xbf16, #tpu.memory_space<vmem>>, vector<1x128x128xbf16>
    %589 = vector.shape_cast %588 : vector<1x128x128xbf16> to vector<128x128xbf16>
    %cst_295 = arith.constant dense<0.000000e+00> : vector<32x128xf32>
    %590 = tpu.matmul %562, %589, %cst_295 {dimension_numbers = #tpu.dot_dimension_numbers<[1], [0], [0], [1], [0, 0, 1, 1], [], []>} : vector<32x128xbf16>, vector<128x128xbf16>, vector<32x128xf32> -> vector<32x128xf32>
    %591 = arith.addf %587, %590 : vector<32x128xf32>
    %c5_296 = arith.constant 5 : index
    %c0_297 = arith.constant 0 : index
    %592 = vector.load %arg9[%c5_296, %c0_297] : memref<7x256xf32, #tpu.memory_space<vmem>>, vector<1x128xf32>
    %593 = vector.broadcast %592 : vector<1x128xf32> to vector<32x128xf32>
    %594 = arith.addf %591, %593 : vector<32x128xf32>
    %cst_298 = arith.constant 0.000000e+00 : f32
    %595 = vector.broadcast %cst_298 : f32 to vector<32x128xf32>
    %596 = arith.cmpf ogt, %594, %595 : vector<32x128xf32>
    %cst_299 = arith.constant 3.000000e-01 : f32
    %597 = vector.broadcast %cst_299 : f32 to vector<32x128xf32>
    %598 = arith.mulf %597, %594 : vector<32x128xf32>
    %599 = arith.select %596, %594, %598 : vector<32x128xi1>, vector<32x128xf32>
    %600 = arith.truncf %599 : vector<32x128xf32> to vector<32x128xbf16>
    %c384 = arith.constant 384 : index
    %c0_300 = arith.constant 0 : index
    %601 = vector.load %arg8[%c384, %c0_300] : memref<512x64xbf16, #tpu.memory_space<vmem>>, vector<128x64xbf16>
    %cst_301 = arith.constant dense<0.000000e+00> : vector<32x64xf32>
    %602 = tpu.matmul %600, %601, %cst_301 {dimension_numbers = #tpu.dot_dimension_numbers<[1], [0], [0], [1], [0, 0, 1, 1], [], []>} : vector<32x128xbf16>, vector<128x64xbf16>, vector<32x64xf32> -> vector<32x64xf32>
    %603 = arith.addf %386, %602 : vector<32x64xf32>
    %c6_302 = arith.constant 6 : index
    %c0_303 = arith.constant 0 : index
    %604 = vector.load %arg9[%c6_302, %c0_303] : memref<7x256xf32, #tpu.memory_space<vmem>>, vector<1x64xf32>
    %605 = vector.broadcast %604 : vector<1x64xf32> to vector<32x64xf32>
    %606 = arith.addf %603, %605 : vector<32x64xf32>
    %607 = arith.addf %606, %0 : vector<32x64xf32>
    %cst_304 = arith.constant 0.000000e+00 : f32
    %608 = vector.broadcast %cst_304 : f32 to vector<32x64xf32>
    %609 = arith.cmpf ogt, %607, %608 : vector<32x64xf32>
    %cst_305 = arith.constant 3.000000e-01 : f32
    %610 = vector.broadcast %cst_305 : f32 to vector<32x64xf32>
    %611 = arith.mulf %610, %607 : vector<32x64xf32>
    %612 = arith.select %609, %607, %611 : vector<32x64xi1>, vector<32x64xf32>
    %c0_306 = arith.constant 0 : index
    %c0_307 = arith.constant 0 : index
    %613 = vector.load %arg10[%c0_306, %c0_307] : memref<32x64xf32, #tpu.memory_space<vmem>>, vector<32x64xf32>
    tpu.vector_store %arg10[%c0_306, %c0_307], %612 {strides = array<i32>} : memref<32x64xf32, #tpu.memory_space<vmem>>, vector<32x64xf32>,
    return
  }
  func.func @transform_0(%arg0: i32) -> (i32, i32) {
    %c0_i32 = arith.constant 0 : i32
    %c0_i32_0 = arith.constant 0 : i32
    return %arg0, %c0_i32 : i32, i32
  }
  func.func @transform_1(%arg0: i32) -> (i32, i32, i32) {
    %c0_i32 = arith.constant 0 : i32
    %c0_i32_0 = arith.constant 0 : i32
    %c0_i32_1 = arith.constant 0 : i32
    %c0_i32_2 = arith.constant 0 : i32
    return %c0_i32, %c0_i32_0, %c0_i32_1 : i32, i32, i32
  }
  func.func @transform_2(%arg0: i32) -> (i32, i32, i32) {
    %c0_i32 = arith.constant 0 : i32
    %c0_i32_0 = arith.constant 0 : i32
    %c0_i32_1 = arith.constant 0 : i32
    %c0_i32_2 = arith.constant 0 : i32
    return %c0_i32, %c0_i32_0, %c0_i32_1 : i32, i32, i32
  }
  func.func @transform_3(%arg0: i32) -> (i32, i32, i32) {
    %c0_i32 = arith.constant 0 : i32
    %c0_i32_0 = arith.constant 0 : i32
    %c0_i32_1 = arith.constant 0 : i32
    %c0_i32_2 = arith.constant 0 : i32
    return %c0_i32, %c0_i32_0, %c0_i32_1 : i32, i32, i32
  }
  func.func @transform_4(%arg0: i32) -> (i32, i32, i32) {
    %c0_i32 = arith.constant 0 : i32
    %c0_i32_0 = arith.constant 0 : i32
    %c0_i32_1 = arith.constant 0 : i32
    %c0_i32_2 = arith.constant 0 : i32
    return %c0_i32, %c0_i32_0, %c0_i32_1 : i32, i32, i32
  }
  func.func @transform_5(%arg0: i32) -> (i32, i32, i32) {
    %c0_i32 = arith.constant 0 : i32
    %c0_i32_0 = arith.constant 0 : i32
    %c0_i32_1 = arith.constant 0 : i32
    %c0_i32_2 = arith.constant 0 : i32
    return %c0_i32, %c0_i32_0, %c0_i32_1 : i32, i32, i32
  }
  func.func @transform_6(%arg0: i32) -> (i32, i32, i32) {
    %c0_i32 = arith.constant 0 : i32
    %c0_i32_0 = arith.constant 0 : i32
    %c0_i32_1 = arith.constant 0 : i32
    %c0_i32_2 = arith.constant 0 : i32
    return %c0_i32, %c0_i32_0, %c0_i32_1 : i32, i32, i32
  }
  func.func @transform_7(%arg0: i32) -> (i32, i32) {
    %c0_i32 = arith.constant 0 : i32
    %c0_i32_0 = arith.constant 0 : i32
    %c0_i32_1 = arith.constant 0 : i32
    return %c0_i32, %c0_i32_0 : i32, i32
  }
  func.func @transform_8(%arg0: i32) -> (i32, i32) {
    %c0_i32 = arith.constant 0 : i32
    %c0_i32_0 = arith.constant 0 : i32
    %c0_i32_1 = arith.constant 0 : i32
    return %c0_i32, %c0_i32_0 : i32, i32
  }
  func.func @transform_9(%arg0: i32) -> (i32, i32) {
    %c0_i32 = arith.constant 0 : i32
    %c0_i32_0 = arith.constant 0 : i32
    return %arg0, %c0_i32 : i32, i32
  }
}

</mosaic_0001>

<llo_original>
// kernel: tpu_custom_call.1
$region0: #{tpu_custom_call.1}
  #allocation0 [shape = 'u32[]', space=smem, size = 0x4, offset = 0x4, fixed_abs, tag = 'smem constant byte address 0x4 - core index']
  #allocation1 [shape = 'u32[144,128]{1,0:T(1,128)}', space=vmem, size = 0x12000, scoped, tag = 'internal scratch']
  %s0 = inlined_call_operand.vmem [shape: f32[32,64], index: 0, kind: input, shape index: {}]
  %s1 = inlined_call_operand.hbm [shape: bf16[3,64,256], index: 1, kind: input, shape index: {}]
  %s2 = inlined_call_operand.hbm [shape: bf16[3,256,256], index: 2, kind: input, shape index: {}]
  %s3 = inlined_call_operand.hbm [shape: bf16[5,64,128], index: 3, kind: input, shape index: {}]
  %s4 = inlined_call_operand.vmem [shape: bf16[5,128,128], index: 4, kind: input, shape index: {}]
  %s5 = inlined_call_operand.hbm [shape: bf16[7,64,128], index: 5, kind: input, shape index: {}]
  %s6 = inlined_call_operand.hbm [shape: bf16[7,128,128], index: 6, kind: input, shape index: {}]
  %s7 = inlined_call_operand.vmem [shape: bf16[512,64], index: 7, kind: input, shape index: {}]
  %s8 = inlined_call_operand.vmem [shape: f32[7,256], index: 8, kind: input, shape index: {}]
  %s9 = inlined_call_operand.hbm [shape: f32[32,64], index: 9, kind: output, shape index: {}]
  %s10 = sld [smem:[#allocation0]]
  $region66: #{tpu_custom_call.1} parent=0
    _
  %s12 = ssub.s32 1, %s10
  %s13 = scalar_select 0, %s12, %s10
  $region1: #{tpu_custom_call.1} parent=0
    #allocation2 [shape = 'u8[98304]{0}', space=vmem, size = 0x18000, scoped, tag = 'input window, operand 1, single buffered']
    #allocation3 [shape = 's32[1]{0}', space=sflag, size = 0x4, scoped, tag = 'scoped memory for tpu_custom_call.1']
    #allocation4 [shape = 's32[1]{0}', space=sflag, size = 0x4, scoped, tag = 'scoped memory for tpu_custom_call.1']
    #allocation5 [shape = 'u8[393216]{0}', space=vmem, size = 0x60000, scoped, tag = 'input window, operand 2, single buffered']
    #allocation6 [shape = 's32[1]{0}', space=sflag, size = 0x4, scoped, tag = 'scoped memory for tpu_custom_call.1']
    #allocation7 [shape = 'u8[81920]{0}', space=vmem, size = 0x14000, scoped, tag = 'input window, operand 3, single buffered']
    #allocation8 [shape = 'u8[114688]{0}', space=vmem, size = 0x1c000, scoped, tag = 'input window, operand 5, single buffered']
    #allocation9 [shape = 's32[1]{0}', space=sflag, size = 0x4, scoped, tag = 'scoped memory for tpu_custom_call.1']
    #allocation10 [shape = 'u8[229376]{0}', space=vmem, size = 0x38000, scoped, tag = 'input window, operand 6, single buffered']
    #allocation11 [shape = 'u8[16384]{0}', space=vmem, size = 0x4000, scoped, tag = 'output window, operand 0, single buffered']
    %14 = vsyncpa [#allocation3], 0
    %15 = vsyncpa [#allocation6], 0
    %16 = vsyncpa [#allocation9], 0
    %17 = vsyncpa [#allocation4], 0
    // Predicated region
    $region2: #{tpu_custom_call.1} parent=1 // pred_check
      _
    $region3: #{tpu_custom_call.1} parent=1 // pred_check_branch
      %19 = sbr.rel (0) target = $region5
    $region4: #{tpu_custom_call.1} parent=1 // pred_region
      _
    $region5: #{tpu_custom_call.1} parent=1 // pred_fallthru
      _
    // Predicated region
    $region6: #{tpu_custom_call.1} parent=1 // pred_check
      _
    $region7: #{tpu_custom_call.1} parent=1 // pred_check_branch
      %21 = sbr.rel (0) target = $region9
    $region8: #{tpu_custom_call.1} parent=1 // pred_region
      %s23 = ssub.s32 3072, 3072
      %24 = vsyncadd [#allocation3], %s23
      %s25 = sshll.u32 [#allocation2], 4
      %s26 = int_to_ptr.vmem [resolvable:$true] %s25
      %31 = dma.hbm_to_vmem [thread:$0]  %s1, 3072, %s26, [#allocation3], 128, 128, 8
    $region9: #{tpu_custom_call.1} parent=1 // pred_fallthru
      _
    // Predicated region
    $region10: #{tpu_custom_call.1} parent=1 // pred_check
      _
    $region11: #{tpu_custom_call.1} parent=1 // pred_check_branch
      %33 = sbr.rel (0) target = $region13
    $region12: #{tpu_custom_call.1} parent=1 // pred_region
      %s35 = ssub.s32 12288, 12288
      %36 = vsyncadd [#allocation6], %s35
      %s37 = sshll.u32 [#allocation5], 4
      %s38 = int_to_ptr.vmem [resolvable:$true] %s37
      %43 = dma.hbm_to_vmem [thread:$0]  %s2, 12288, %s38, [#allocation6], 128, 128, 8
    $region13: #{tpu_custom_call.1} parent=1 // pred_fallthru
      _
    // Predicated region
    $region14: #{tpu_custom_call.1} parent=1 // pred_check
      _
    $region15: #{tpu_custom_call.1} parent=1 // pred_check_branch
      %45 = sbr.rel (0) target = $region17
    $region16: #{tpu_custom_call.1} parent=1 // pred_region
      %s47 = ssub.s32 2560, 2560
      %48 = vsyncadd [#allocation6], %s47
      %s49 = sshll.u32 [#allocation7], 4
      %s50 = int_to_ptr.vmem [resolvable:$true] %s49
      %55 = dma.hbm_to_vmem [thread:$0]  %s3, 2560, %s50, [#allocation6], 64, 64, 4
    $region17: #{tpu_custom_call.1} parent=1 // pred_fallthru
      _
    // Predicated region
    $region18: #{tpu_custom_call.1} parent=1 // pred_check
      _
    $region19: #{tpu_custom_call.1} parent=1 // pred_check_branch
      %57 = sbr.rel (0) target = $region21
    $region20: #{tpu_custom_call.1} parent=1 // pred_region
      _
    $region21: #{tpu_custom_call.1} parent=1 // pred_fallthru
      _
    // Predicated region
    $region22: #{tpu_custom_call.1} parent=1 // pred_check
      _
    $region23: #{tpu_custom_call.1} parent=1 // pred_check_branch
      %59 = sbr.rel (0) target = $region25
    $region24: #{tpu_custom_call.1} parent=1 // pred_region
      %s61 = ssub.s32 3584, 3584
      %62 = vsyncadd [#allocation9], %s61
      %s63 = sshll.u32 [#allocation8], 4
      %s64 = int_to_ptr.vmem [resolvable:$true] %s63
      %69 = dma.hbm_to_vmem [thread:$0]  %s5, 3584, %s64, [#allocation9], 64, 64, 4
    $region25: #{tpu_custom_call.1} parent=1 // pred_fallthru
      _
    // Predicated region
    $region26: #{tpu_custom_call.1} parent=1 // pred_check
      _
    $region27: #{tpu_custom_call.1} parent=1 // pred_check_branch
      %71 = sbr.rel (0) target = $region29
    $region28: #{tpu_custom_call.1} parent=1 // pred_region
      %s73 = ssub.s32 7168, 7168
      %74 = vsyncadd [#allocation9], %s73
      %s75 = sshll.u32 [#allocation10], 4
      %s76 = int_to_ptr.vmem [resolvable:$true] %s75
      %81 = dma.hbm_to_vmem [thread:$0]  %s6, 7168, %s76, [#allocation9], 64, 64, 4
    $region29: #{tpu_custom_call.1} parent=1 // pred_fallthru
      _
    // Predicated region
    $region30: #{tpu_custom_call.1} parent=1 // pred_check
      _
    $region31: #{tpu_custom_call.1} parent=1 // pred_check_branch
      %83 = sbr.rel (0) target = $region33
    $region32: #{tpu_custom_call.1} parent=1 // pred_region
      _
    $region33: #{tpu_custom_call.1} parent=1 // pred_fallthru
      _
    // Predicated region
    $region34: #{tpu_custom_call.1} parent=1 // pred_check
      _
    $region35: #{tpu_custom_call.1} parent=1 // pred_check_branch
      %85 = sbr.rel (0) target = $region37
    $region36: #{tpu_custom_call.1} parent=1 // pred_region
      _
    $region37: #{tpu_custom_call.1} parent=1 // pred_fallthru
      _
    // Predicated region
    $region38: #{tpu_custom_call.1} parent=1 // pred_check
      _
    $region39: #{tpu_custom_call.1} parent=1 // pred_check_branch
      %87 = sbr.rel (0) target = $region41
    $region40: #{tpu_custom_call.1} parent=1 // pred_region
      %88 = dma.done [#allocation3], 3072
    $region41: #{tpu_custom_call.1} parent=1 // pred_fallthru
      _
    // Predicated region
    $region42: #{tpu_custom_call.1} parent=1 // pred_check
      _
    $region43: #{tpu_custom_call.1} parent=1 // pred_check_branch
      %90 = sbr.rel (0) target = $region45
    $region44: #{tpu_custom_call.1} parent=1 // pred_region
      %91 = dma.done [#allocation6], 12288
    $region45: #{tpu_custom_call.1} parent=1 // pred_fallthru
      _
    // Predicated region
    $region46: #{tpu_custom_call.1} parent=1 // pred_check
      _
    $region47: #{tpu_custom_call.1} parent=1 // pred_check_branch
      %93 = sbr.rel (0) target = $region49
    $region48: #{tpu_custom_call.1} parent=1 // pred_region
      %94 = dma.done [#allocation6], 2560
    $region49: #{tpu_custom_call.1} parent=1 // pred_fallthru
      _
    // Predicated region
    $region50: #{tpu_custom_call.1} parent=1 // pred_check
      _
    $region51: #{tpu_custom_call.1} parent=1 // pred_check_branch
      %96 = sbr.rel (0) target = $region53
    $region52: #{tpu_custom_call.1} parent=1 // pred_region
      %97 = dma.done [#allocation9], 3584
    $region53: #{tpu_custom_call.1} parent=1 // pred_fallthru
      _
    // Predicated region
    $region54: #{tpu_custom_call.1} parent=1 // pred_check
      _
    $region55: #{tpu_custom_call.1} parent=1 // pred_check_branch
      %99 = sbr.rel (0) target = $region57
    $region56: #{tpu_custom_call.1} parent=1 // pred_region
      %100 = dma.done [#allocation9], 7168
    $region57: #{tpu_custom_call.1} parent=1 // pred_fallthru
      _
    %v102 = vld [vmem:[%s0] sm:$0xff]
    %v103 = vld [vmem:[%s0 + $0x8] sm:$0xff]
    %v104 = vld [vmem:[%s0 + $0x10] sm:$0xff]
    %v105 = vld [vmem:[%s0 + $0x18] sm:$0xff]
    %v106 = vrot.slane %v102, 5
    %v107 = vrot.slane %v103, 5
    %v108 = vrot.slane %v104, 5
    %v109 = vrot.slane %v105, 5
    %v110 = vlaneseq
    %v111 = vshrl.u32 %v110, 7
    %vm112 = vcmp.lt.s32.totalorder %v111, 3
    %v113 = vsel %vm112, %v108, %v109
    %v114 = vsel %vm112, %v107, %v108
    %v115 = vsel %vm112, %v106, %v107
    %v116 = vsel %vm112, %v109, %v106
    %v117 = vadd.s32 %v111, 8
    %v118 = vadd.s32 %v111, 16
    %v119 = vadd.s32 %v111, 24
    %vm120 = vcmp.lt.s32.totalorder %v111, 0
    %v121 = vsub.s32 0, %v111
    %v122 = vsel %vm120, %v121, %v111
    %v123 = vshrl.u32 %v122, 4
    %v124 = vand.u32 %v122, 15
    %v125 = vsub.s32 0, %v124
    %v126 = vsel %vm120, %v125, %v124
    %vm127 = vcmp.lt.s32.totalorder %v117, 0
    %v128 = vsub.s32 0, %v117
    %v129 = vsel %vm127, %v128, %v117
    %v130 = vshrl.u32 %v129, 4
    %v131 = vand.u32 %v129, 15
    %v132 = vsub.s32 0, %v131
    %v133 = vsel %vm127, %v132, %v131
    %vm134 = vcmp.lt.s32.totalorder %v118, 0
    %v135 = vsub.s32 0, %v118
    %v136 = vsel %vm134, %v135, %v118
    %v137 = vshrl.u32 %v136, 4
    %v138 = vand.u32 %v136, 15
    %v139 = vsub.s32 0, %v138
    %v140 = vsel %vm134, %v139, %v138
    %vm141 = vcmp.lt.s32.totalorder %v119, 0
    %v142 = vsub.s32 0, %v119
    %v143 = vsel %vm141, %v142, %v119
    %v144 = vshrl.u32 %v143, 4
    %v145 = vand.u32 %v143, 15
    %v146 = vsub.s32 0, %v145
    %v147 = vsel %vm141, %v146, %v145
    %vm148 = vcmp.ne.s32.totalorder %v126, 0
    %vm149 = vcmp.ne.s32.totalorder %v133, 0
    %vm150 = vcmp.ne.s32.totalorder %v140, 0
    %vm151 = vcmp.ne.s32.totalorder %v147, 0
    %vm152 = vcmp.lt.s32.totalorder %v126, 0
    %vm153 = vcmp.lt.s32.totalorder %v133, 0
    %vm154 = vcmp.lt.s32.totalorder %v140, 0
    %vm155 = vcmp.lt.s32.totalorder %v147, 0
    %vm156 = vmand %vm152, %vm148
    %vm157 = vmand %vm153, %vm149
    %vm158 = vmand %vm154, %vm150
    %vm159 = vmand %vm155, %vm151
    %v160 = vadd.s32 %v126, 16
    %v161 = vadd.s32 %v133, 16
    %v162 = vadd.s32 %v140, 16
    %v163 = vadd.s32 %v147, 16
    %v164 = vsel %vm156, %v160, %v126
    %v165 = vsel %vm157, %v161, %v133
    %v166 = vsel %vm158, %v162, %v140
    %v167 = vsel %vm159, %v163, %v147
    %vm168 = vcmp.ge.s32.totalorder %v164, 3
    %vm169 = vcmp.ge.s32.totalorder %v165, 3
    %vm170 = vcmp.ge.s32.totalorder %v166, 3
    %vm171 = vcmp.ge.s32.totalorder %v167, 3
    %v172 = vsel %vm168, %v116, 0.0
    %v173 = vsel %vm169, %v115, 0.0
    %v174 = vsel %vm170, %v114, 0.0
    %v175 = vsel %vm171, %v113, 0.0
    %v176 = vpack.c.bf16 %v173, %v172
    %v177 = vpack.c.bf16 %v175, %v174
    %v178 = vrot.slane %v102, 6
    %v179 = vrot.slane %v103, 6
    %v180 = vrot.slane %v104, 6
    %v181 = vrot.slane %v105, 6
    %vm182 = vcmp.lt.s32.totalorder %v111, 2
    %v183 = vsel %vm182, %v180, %v181
    %v184 = vsel %vm182, %v179, %v180
    %v185 = vsel %vm182, %v178, %v179
    %v186 = vsel %vm182, %v181, %v178
    %vm187 = vcmp.ge.s32.totalorder %v164, 2
    %vm188 = vcmp.ge.s32.totalorder %v165, 2
    %vm189 = vcmp.ge.s32.totalorder %v166, 2
    %vm190 = vcmp.ge.s32.totalorder %v167, 2
    %v191 = vsel %vm187, %v186, 0.0
    %v192 = vsel %vm188, %v185, 0.0
    %v193 = vsel %vm189, %v184, 0.0
    %v194 = vsel %vm190, %v183, 0.0
    %v195 = vpack.c.bf16 %v192, %v191
    %v196 = vpack.c.bf16 %v194, %v193
    %v197 = vrot.slane %v102, 7
    %v198 = vrot.slane %v103, 7
    %v199 = vrot.slane %v104, 7
    %v200 = vrot.slane %v105, 7
    %vm201 = vcmp.lt.s32.totalorder %v111, 1
    %v202 = vsel %vm201, %v199, %v200
    %v203 = vsel %vm201, %v198, %v199
    %v204 = vsel %vm201, %v197, %v198
    %v205 = vsel %vm201, %v200, %v197
    %vm206 = vcmp.ge.s32.totalorder %v164, 1
    %vm207 = vcmp.ge.s32.totalorder %v165, 1
    %vm208 = vcmp.ge.s32.totalorder %v166, 1
    %vm209 = vcmp.ge.s32.totalorder %v167, 1
    %v210 = vsel %vm206, %v205, 0.0
    %v211 = vsel %vm207, %v204, 0.0
    %v212 = vsel %vm208, %v203, 0.0
    %v213 = vsel %vm209, %v202, 0.0
    %v214 = vpack.c.bf16 %v211, %v210
    %v215 = vpack.c.bf16 %v213, %v212
    %v216 = vpack.c.bf16 %v103, %v102
    %v217 = vpack.c.bf16 %v105, %v104
    %v218 = vrot.slane %v102, 1
    %v219 = vrot.slane %v103, 1
    %v220 = vrot.slane %v104, 1
    %v221 = vrot.slane %v105, 1
    %vm222 = vcmp.lt.s32.totalorder %v111, 7
    %v223 = vsel %vm222, %v220, %v221
    %v224 = vsel %vm222, %v219, %v220
    %v225 = vsel %vm222, %v218, %v219
    %v226 = vsel %vm222, %v221, %v218
    %vm227 = vcmp.lt.s32.totalorder %v164, 15
    %vm228 = vcmp.lt.s32.totalorder %v165, 15
    %vm229 = vcmp.lt.s32.totalorder %v166, 15
    %vm230 = vcmp.lt.s32.totalorder %v167, 15
    %v231 = vsel %vm227, %v225, 0.0
    %v232 = vsel %vm228, %v224, 0.0
    %v233 = vsel %vm229, %v223, 0.0
    %v234 = vsel %vm230, %v226, 0.0
    %v235 = vpack.c.bf16 %v232, %v231
    %v236 = vpack.c.bf16 %v234, %v233
    %v237 = vrot.slane %v102, 2
    %v238 = vrot.slane %v103, 2
    %v239 = vrot.slane %v104, 2
    %v240 = vrot.slane %v105, 2
    %vm241 = vcmp.lt.s32.totalorder %v111, 6
    %v242 = vsel %vm241, %v239, %v240
    %v243 = vsel %vm241, %v238, %v239
    %v244 = vsel %vm241, %v237, %v238
    %v245 = vsel %vm241, %v240, %v237
    %vm246 = vcmp.lt.s32.totalorder %v164, 14
    %vm247 = vcmp.lt.s32.totalorder %v165, 14
    %vm248 = vcmp.lt.s32.totalorder %v166, 14
    %vm249 = vcmp.lt.s32.totalorder %v167, 14
    %v250 = vsel %vm246, %v244, 0.0
    %v251 = vsel %vm247, %v243, 0.0
    %v252 = vsel %vm248, %v242, 0.0
    %v253 = vsel %vm249, %v245, 0.0
    %v254 = vpack.c.bf16 %v251, %v250
    %v255 = vpack.c.bf16 %v253, %v252
    %v256 = vrot.slane %v102, 3
    %v257 = vrot.slane %v103, 3
    %v258 = vrot.slane %v104, 3
    %v259 = vrot.slane %v105, 3
    %vm260 = vcmp.lt.s32.totalorder %v111, 5
    %v261 = vsel %vm260, %v258, %v259
    %v262 = vsel %vm260, %v257, %v258
    %v263 = vsel %vm260, %v256, %v257
    %v264 = vsel %vm260, %v259, %v256
    %vm265 = vcmp.lt.s32.totalorder %v164, 13
    %vm266 = vcmp.lt.s32.totalorder %v165, 13
    %vm267 = vcmp.lt.s32.totalorder %v166, 13
    %vm268 = vcmp.lt.s32.totalorder %v167, 13
    %v269 = vsel %vm265, %v263, 0.0
    %v270 = vsel %vm266, %v262, 0.0
    %v271 = vsel %vm267, %v261, 0.0
    %v272 = vsel %vm268, %v264, 0.0
    %v273 = vpack.c.bf16 %v270, %v269
    %v274 = vpack.c.bf16 %v272, %v271
    %v275 = vld [vmem:[#allocation2] sm:$0xff]
    %v276 = vld [vmem:[#allocation2 + $0x8] sm:$0xff]
    %v277 = vld [vmem:[#allocation2 + $0x10] sm:$0xff]
    %v278 = vld [vmem:[#allocation2 + $0x18] sm:$0xff]
    %v279 = vld [vmem:[#allocation2 + $0x20] sm:$0xff]
    %v280 = vld [vmem:[#allocation2 + $0x28] sm:$0xff]
    %v281 = vld [vmem:[#allocation2 + $0x30] sm:$0xff]
    %v282 = vld [vmem:[#allocation2 + $0x38] sm:$0xff]
    %s283 = scalar_lea.vmem [#allocation2], 64
    %v284 = vld [vmem:[%s283] sm:$0xff]
    %v285 = vld [vmem:[%s283 + $0x8] sm:$0xff]
    %v286 = vld [vmem:[%s283 + $0x10] sm:$0xff]
    %v287 = vld [vmem:[%s283 + $0x18] sm:$0xff]
    %v288 = vld [vmem:[%s283 + $0x20] sm:$0xff]
    %v289 = vld [vmem:[%s283 + $0x28] sm:$0xff]
    %v290 = vld [vmem:[%s283 + $0x30] sm:$0xff]
    %v291 = vld [vmem:[%s283 + $0x38] sm:$0xff]
    %v300 = vunpack.c.l.b16 %v284
    %v301 = vunpack.c.h.b16 %v284
    %v302 = vunpack.c.l.b16 %v285
    %v303 = vunpack.c.h.b16 %v285
    %v304 = vunpack.c.l.b16 %v286
    %v305 = vunpack.c.h.b16 %v286
    %v306 = vunpack.c.l.b16 %v287
    %v307 = vunpack.c.h.b16 %v287
    %v308 = vunpack.c.l.b16 %v288
    %v309 = vunpack.c.h.b16 %v288
    %v310 = vunpack.c.l.b16 %v289
    %v311 = vunpack.c.h.b16 %v289
    %v312 = vunpack.c.l.b16 %v290
    %v313 = vunpack.c.h.b16 %v290
    %v314 = vunpack.c.l.b16 %v291
    %v315 = vunpack.c.h.b16 %v291
    %v316 = vpack.c.b16 %v302, %v300
    %v317 = vpack.c.b16 %v303, %v301
    %v318 = vpack.c.b16 %v306, %v304
    %v319 = vpack.c.b16 %v307, %v305
    %v320 = vpack.c.b16 %v310, %v308
    %v321 = vpack.c.b16 %v311, %v309
    %v322 = vpack.c.b16 %v314, %v312
    %v323 = vpack.c.b16 %v315, %v313
    %vm332 = vcmask 523264
    %v334 = vsel %vm332, %v216, 0
    %v337 = vsel %vm332, %v217, 0
    %339 = vmatprep.subr.bf16.mxu0 %v317
    %340 = vmatpush1.bf16.msra.mxu0 %v316
    %341 = vmatprep.subr.bf16.mxu0 %v319
    %342 = vmatpush1.bf16.msra.mxu0 %v318
    %343 = vmatprep.subr.bf16.mxu0 %v321
    %344 = vmatpush1.bf16.msra.mxu0 %v320
    %345 = vmatprep.subr.bf16.mxu0 %v323
    %346 = vmatpush1.bf16.msra.mxu0 %v322
    %347 = vmatprep.subr.bf16.mxu0 0
    %348 = vmatpush1.bf16.msra.mxu0 0
    %349 = vmatprep.subr.bf16.mxu0 0
    %350 = vmatpush1.bf16.msra.mxu0 0
    %351 = vmatprep.subr.bf16.mxu0 0
    %352 = vmatpush1.bf16.msra.mxu0 0
    %353 = vmatprep.subr.bf16.mxu0 0
    %354 = vmatpush1.bf16.msra.mxu0 0
    %355 = vmatprep.subr.bf16.mxu0 0
    %356 = vmatpush1.bf16.msra.mxu0 0
    %357 = vmatprep.subr.bf16.mxu0 0
    %358 = vmatpush1.bf16.msra.mxu0 0
    %359 = vmatprep.subr.bf16.mxu0 0
    %360 = vmatpush1.bf16.msra.mxu0 0
    %361 = vmatprep.subr.bf16.mxu0 0
    %362 = vmatpush1.bf16.msra.mxu0 0
    %363 = vmatprep.subr.bf16.mxu0 0
    %364 = vmatpush1.bf16.msra.mxu0 0
    %365 = vmatprep.subr.bf16.mxu0 0
    %366 = vmatpush1.bf16.msra.mxu0 0
    %367 = vmatprep.subr.bf16.mxu0 0
    %368 = vmatpush1.bf16.msra.mxu0 0
    %369 = vmatprep.subr.bf16.mxu0 0
    %370 = vmatpush1.bf16.msra.mxu0 0
    %371 = vmatprep.mubr.bf16.mxu0 0
    %372 = vmatmul.mubr.bf16.gmra.mrb[0].mxu0 %v334
    %v373 = vpop.f32.mrb[0].mxu0
    %v374 = vadd.f32 0.0, %v373
    %v375 = vpop.f32.mrb[0].mxu0
    %v376 = vadd.f32 0.0, %v375
    %v377 = vpop.f32.mrb[0].mxu0
    %v378 = vadd.f32 0.0, %v377
    %v379 = vpop.f32.mrb[0].mxu0
    %v380 = vadd.f32 0.0, %v379
    %381 = vmatprep.mubr.bf16.mxu0 0
    %382 = vmatmul.mubr.bf16.gmra.mrb[0].mxu0 %v337
    %v383 = vpop.f32.mrb[0].mxu0
    %v384 = vadd.f32 0.0, %v383
    %v385 = vpop.f32.mrb[0].mxu0
    %v386 = vadd.f32 0.0, %v385
    %v387 = vpop.f32.mrb[0].mxu0
    %v388 = vadd.f32 0.0, %v387
    %v389 = vpop.f32.mrb[0].mxu0
    %v390 = vadd.f32 0.0, %v389
    %391 = vdwg.mxu0
    %v400 = vunpack.c.l.b16 %v275
    %v401 = vunpack.c.h.b16 %v275
    %v402 = vunpack.c.l.b16 %v276
    %v403 = vunpack.c.h.b16 %v276
    %v404 = vunpack.c.l.b16 %v277
    %v405 = vunpack.c.h.b16 %v277
    %v406 = vunpack.c.l.b16 %v278
    %v407 = vunpack.c.h.b16 %v278
    %v408 = vunpack.c.l.b16 %v279
    %v409 = vunpack.c.h.b16 %v279
    %v410 = vunpack.c.l.b16 %v280
    %v411 = vunpack.c.h.b16 %v280
    %v412 = vunpack.c.l.b16 %v281
    %v413 = vunpack.c.h.b16 %v281
    %v414 = vunpack.c.l.b16 %v282
    %v415 = vunpack.c.h.b16 %v282
    %v416 = vpack.c.b16 %v402, %v400
    %v417 = vpack.c.b16 %v403, %v401
    %v418 = vpack.c.b16 %v406, %v404
    %v419 = vpack.c.b16 %v407, %v405
    %v420 = vpack.c.b16 %v410, %v408
    %v421 = vpack.c.b16 %v411, %v409
    %v422 = vpack.c.b16 %v414, %v412
    %v423 = vpack.c.b16 %v415, %v413
    %v433 = vsel %vm332, %v214, 0
    %v436 = vsel %vm332, %v215, 0
    %438 = vmatprep.subr.bf16.mxu0 %v417
    %439 = vmatpush1.bf16.msra.mxu0 %v416
    %440 = vmatprep.subr.bf16.mxu0 %v419
    %441 = vmatpush1.bf16.msra.mxu0 %v418
    %442 = vmatprep.subr.bf16.mxu0 %v421
    %443 = vmatpush1.bf16.msra.mxu0 %v420
    %444 = vmatprep.subr.bf16.mxu0 %v423
    %445 = vmatpush1.bf16.msra.mxu0 %v422
    %446 = vmatprep.subr.bf16.mxu0 0
    %447 = vmatpush1.bf16.msra.mxu0 0
    %448 = vmatprep.subr.bf16.mxu0 0
    %449 = vmatpush1.bf16.msra.mxu0 0
    %450 = vmatprep.subr.bf16.mxu0 0
    %451 = vmatpush1.bf16.msra.mxu0 0
    %452 = vmatprep.subr.bf16.mxu0 0
    %453 = vmatpush1.bf16.msra.mxu0 0
    %454 = vmatprep.subr.bf16.mxu0 0
    %455 = vmatpush1.bf16.msra.mxu0 0
    %456 = vmatprep.subr.bf16.mxu0 0
    %457 = vmatpush1.bf16.msra.mxu0 0
    %458 = vmatprep.subr.bf16.mxu0 0
    %459 = vmatpush1.bf16.msra.mxu0 0
    %460 = vmatprep.subr.bf16.mxu0 0
    %461 = vmatpush1.bf16.msra.mxu0 0
    %462 = vmatprep.subr.bf16.mxu0 0
    %463 = vmatpush1.bf16.msra.mxu0 0
    %464 = vmatprep.subr.bf16.mxu0 0
    %465 = vmatpush1.bf16.msra.mxu0 0
    %466 = vmatprep.subr.bf16.mxu0 0
    %467 = vmatpush1.bf16.msra.mxu0 0
    %468 = vmatprep.subr.bf16.mxu0 0
    %469 = vmatpush1.bf16.msra.mxu0 0
    %470 = vmatprep.mubr.bf16.mxu0 0
    %471 = vmatmul.mubr.bf16.gmra.mrb[0].mxu0 %v433
    %v472 = vpop.f32.mrb[0].mxu0
    %v473 = vadd.f32 %v374, %v472
    %v474 = vpop.f32.mrb[0].mxu0
    %v475 = vadd.f32 %v376, %v474
    %v476 = vpop.f32.mrb[0].mxu0
    %v477 = vadd.f32 %v378, %v476
    %v478 = vpop.f32.mrb[0].mxu0
    %v479 = vadd.f32 %v380, %v478
    %480 = vmatprep.mubr.bf16.mxu0 0
    %481 = vmatmul.mubr.bf16.gmra.mrb[0].mxu0 %v436
    %v482 = vpop.f32.mrb[0].mxu0
    %v483 = vadd.f32 %v384, %v482
    %v484 = vpop.f32.mrb[0].mxu0
    %v485 = vadd.f32 %v386, %v484
    %v486 = vpop.f32.mrb[0].mxu0
    %v487 = vadd.f32 %v388, %v486
    %v488 = vpop.f32.mrb[0].mxu0
    %v489 = vadd.f32 %v390, %v488
    %490 = vdwg.mxu0
    %s491 = scalar_lea.vmem [#allocation2], 128
    %v492 = vld [vmem:[%s491] sm:$0xff]
    %v493 = vld [vmem:[%s491 + $0x8] sm:$0xff]
    %v494 = vld [vmem:[%s491 + $0x10] sm:$0xff]
    %v495 = vld [vmem:[%s491 + $0x18] sm:$0xff]
    %v496 = vld [vmem:[%s491 + $0x20] sm:$0xff]
    %v497 = vld [vmem:[%s491 + $0x28] sm:$0xff]
    %v498 = vld [vmem:[%s491 + $0x30] sm:$0xff]
    %v499 = vld [vmem:[%s491 + $0x38] sm:$0xff]
    %v508 = vunpack.c.l.b16 %v492
    %v509 = vunpack.c.h.b16 %v492
    %v510 = vunpack.c.l.b16 %v493
    %v511 = vunpack.c.h.b16 %v493
    %v512 = vunpack.c.l.b16 %v494
    %v513 = vunpack.c.h.b16 %v494
    %v514 = vunpack.c.l.b16 %v495
    %v515 = vunpack.c.h.b16 %v495
    %v516 = vunpack.c.l.b16 %v496
    %v517 = vunpack.c.h.b16 %v496
    %v518 = vunpack.c.l.b16 %v497
    %v519 = vunpack.c.h.b16 %v497
    %v520 = vunpack.c.l.b16 %v498
    %v521 = vunpack.c.h.b16 %v498
    %v522 = vunpack.c.l.b16 %v499
    %v523 = vunpack.c.h.b16 %v499
    %v524 = vpack.c.b16 %v510, %v508
    %v525 = vpack.c.b16 %v511, %v509
    %v526 = vpack.c.b16 %v514, %v512
    %v527 = vpack.c.b16 %v515, %v513
    %v528 = vpack.c.b16 %v518, %v516
    %v529 = vpack.c.b16 %v519, %v517
    %v530 = vpack.c.b16 %v522, %v520
    %v531 = vpack.c.b16 %v523, %v521
    %v541 = vsel %vm332, %v235, 0
    %v544 = vsel %vm332, %v236, 0
    %546 = vmatprep.subr.bf16.mxu0 %v525
    %547 = vmatpush1.bf16.msra.mxu0 %v524
    %548 = vmatprep.subr.bf16.mxu0 %v527
    %549 = vmatpush1.bf16.msra.mxu0 %v526
    %550 = vmatprep.subr.bf16.mxu0 %v529
    %551 = vmatpush1.bf16.msra.mxu0 %v528
    %552 = vmatprep.subr.bf16.mxu0 %v531
    %553 = vmatpush1.bf16.msra.mxu0 %v530
    %554 = vmatprep.subr.bf16.mxu0 0
    %555 = vmatpush1.bf16.msra.mxu0 0
    %556 = vmatprep.subr.bf16.mxu0 0
    %557 = vmatpush1.bf16.msra.mxu0 0
    %558 = vmatprep.subr.bf16.mxu0 0
    %559 = vmatpush1.bf16.msra.mxu0 0
    %560 = vmatprep.subr.bf16.mxu0 0
    %561 = vmatpush1.bf16.msra.mxu0 0
    %562 = vmatprep.subr.bf16.mxu0 0
    %563 = vmatpush1.bf16.msra.mxu0 0
    %564 = vmatprep.subr.bf16.mxu0 0
    %565 = vmatpush1.bf16.msra.mxu0 0
    %566 = vmatprep.subr.bf16.mxu0 0
    %567 = vmatpush1.bf16.msra.mxu0 0
    %568 = vmatprep.subr.bf16.mxu0 0
    %569 = vmatpush1.bf16.msra.mxu0 0
    %570 = vmatprep.subr.bf16.mxu0 0
    %571 = vmatpush1.bf16.msra.mxu0 0
    %572 = vmatprep.subr.bf16.mxu0 0
    %573 = vmatpush1.bf16.msra.mxu0 0
    %574 = vmatprep.subr.bf16.mxu0 0
    %575 = vmatpush1.bf16.msra.mxu0 0
    %576 = vmatprep.subr.bf16.mxu0 0
    %577 = vmatpush1.bf16.msra.mxu0 0
    %578 = vmatprep.mubr.bf16.mxu0 0
    %579 = vmatmul.mubr.bf16.gmra.mrb[0].mxu0 %v541
    %v580 = vpop.f32.mrb[0].mxu0
    %v581 = vadd.f32 0.0, %v580
    %v582 = vpop.f32.mrb[0].mxu0
    %v583 = vadd.f32 0.0, %v582
    %v584 = vpop.f32.mrb[0].mxu0
    %v585 = vadd.f32 0.0, %v584
    %v586 = vpop.f32.mrb[0].mxu0
    %v587 = vadd.f32 0.0, %v586
    %588 = vmatprep.mubr.bf16.mxu0 0
    %589 = vmatmul.mubr.bf16.gmra.mrb[0].mxu0 %v544
    %v590 = vpop.f32.mrb[0].mxu0
    %v591 = vadd.f32 0.0, %v590
    %v592 = vpop.f32.mrb[0].mxu0
    %v593 = vadd.f32 0.0, %v592
    %v594 = vpop.f32.mrb[0].mxu0
    %v595 = vadd.f32 0.0, %v594
    %v596 = vpop.f32.mrb[0].mxu0
    %v597 = vadd.f32 0.0, %v596
    %598 = vdwg.mxu0
    %v599 = vadd.f32 %v473, %v581
    %v600 = vadd.f32 %v475, %v583
    %v601 = vadd.f32 %v477, %v585
    %v602 = vadd.f32 %v479, %v587
    %v603 = vadd.f32 %v483, %v591
    %v604 = vadd.f32 %v485, %v593
    %v605 = vadd.f32 %v487, %v595
    %v606 = vadd.f32 %v489, %v597
    %v607 = vld [vmem:[%s8] ss:$8 sm:$0x3]
    %v609 = vlaneseq
    %v610 = vshrl.u32 %v609, 7
    %v611 = vsub.s32 0, %v610
    %v612 = vrot.slane %v607, %v611
    %v613 = vlaneseq
    %v614 = vshrl.u32 %v613, 7
    %v615 = vsub.s32 1, %v614
    %v616 = vrot.slane %v607, %v615
    %v619 = vadd.f32 %v599, %v612
    %v620 = vadd.f32 %v600, %v616
    %v621 = vadd.f32 %v601, %v612
    %v622 = vadd.f32 %v602, %v616
    %v623 = vadd.f32 %v603, %v612
    %v624 = vadd.f32 %v604, %v616
    %v625 = vadd.f32 %v605, %v612
    %v626 = vadd.f32 %v606, %v616
    %vm627 = vcmp.gt.f32.partialorder %v619, 0.0
    %vm628 = vcmp.gt.f32.partialorder %v620, 0.0
    %vm629 = vcmp.gt.f32.partialorder %v621, 0.0
    %vm630 = vcmp.gt.f32.partialorder %v622, 0.0
    %vm631 = vcmp.gt.f32.partialorder %v623, 0.0
    %vm632 = vcmp.gt.f32.partialorder %v624, 0.0
    %vm633 = vcmp.gt.f32.partialorder %v625, 0.0
    %vm634 = vcmp.gt.f32.partialorder %v626, 0.0
    %v635 = vmul.f32 %v619, 0.3
    %v636 = vmul.f32 %v620, 0.3
    %v637 = vmul.f32 %v621, 0.3
    %v638 = vmul.f32 %v622, 0.3
    %v639 = vmul.f32 %v623, 0.3
    %v640 = vmul.f32 %v624, 0.3
    %v641 = vmul.f32 %v625, 0.3
    %v642 = vmul.f32 %v626, 0.3
    %v643 = vsel %vm627, %v619, %v635
    %v644 = vsel %vm628, %v620, %v636
    %v645 = vsel %vm629, %v621, %v637
    %v646 = vsel %vm630, %v622, %v638
    %v647 = vsel %vm631, %v623, %v639
    %v648 = vsel %vm632, %v624, %v640
    %v649 = vsel %vm633, %v625, %v641
    %v650 = vsel %vm634, %v626, %v642
    %v651 = vrot.slane %v643, 7
    %v652 = vrot.slane %v644, 7
    %v653 = vrot.slane %v645, 7
    %v654 = vrot.slane %v646, 7
    %v655 = vrot.slane %v647, 7
    %v656 = vrot.slane %v648, 7
    %v657 = vrot.slane %v649, 7
    %v658 = vrot.slane %v650, 7
    %v659 = vsel %vm201, %v655, %v657
    %v660 = vsel %vm201, %v656, %v658
    %v661 = vsel %vm201, %v653, %v655
    %v662 = vsel %vm201, %v654, %v656
    %v663 = vsel %vm201, %v651, %v653
    %v664 = vsel %vm201, %v652, %v654
    %v665 = vsel %vm201, %v657, %v651
    %v666 = vsel %vm201, %v658, %v652
    %v667 = vsel %vm206, %v665, 0.0
    %v668 = vsel %vm206, %v666, 0.0
    %v669 = vsel %vm207, %v663, 0.0
    %v670 = vsel %vm207, %v664, 0.0
    %v671 = vsel %vm208, %v661, 0.0
    %v672 = vsel %vm208, %v662, 0.0
    %v673 = vsel %vm209, %v659, 0.0
    %v674 = vsel %vm209, %v660, 0.0
    %v675 = vpack.c.bf16 %v669, %v667
    %v676 = vpack.c.bf16 %v670, %v668
    %v677 = vpack.c.bf16 %v673, %v671
    %v678 = vpack.c.bf16 %v674, %v672
    %v679 = vpack.c.bf16 %v645, %v643
    %v680 = vpack.c.bf16 %v646, %v644
    %v681 = vpack.c.bf16 %v649, %v647
    %v682 = vpack.c.bf16 %v650, %v648
    %v683 = vrot.slane %v643, 1
    %v684 = vrot.slane %v644, 1
    %v685 = vrot.slane %v645, 1
    %v686 = vrot.slane %v646, 1
    %v687 = vrot.slane %v647, 1
    %v688 = vrot.slane %v648, 1
    %v689 = vrot.slane %v649, 1
    %v690 = vrot.slane %v650, 1
    %v691 = vsel %vm222, %v687, %v689
    %v692 = vsel %vm222, %v688, %v690
    %v693 = vsel %vm222, %v685, %v687
    %v694 = vsel %vm222, %v686, %v688
    %v695 = vsel %vm222, %v683, %v685
    %v696 = vsel %vm222, %v684, %v686
    %v697 = vsel %vm222, %v689, %v683
    %v698 = vsel %vm222, %v690, %v684
    %v699 = vsel %vm227, %v695, 0.0
    %v700 = vsel %vm227, %v696, 0.0
    %v701 = vsel %vm228, %v693, 0.0
    %v702 = vsel %vm228, %v694, 0.0
    %v703 = vsel %vm229, %v691, 0.0
    %v704 = vsel %vm229, %v692, 0.0
    %v705 = vsel %vm230, %v697, 0.0
    %v706 = vsel %vm230, %v698, 0.0
    %v707 = vpack.c.bf16 %v701, %v699
    %v708 = vpack.c.bf16 %v702, %v700
    %v709 = vpack.c.bf16 %v705, %v703
    %v710 = vpack.c.bf16 %v706, %v704
    %v711 = vld [vmem:[#allocation5] sm:$0xff]
    %v712 = vld [vmem:[#allocation5 + $0x8] sm:$0xff]
    %v713 = vld [vmem:[#allocation5 + $0x10] sm:$0xff]
    %v714 = vld [vmem:[#allocation5 + $0x18] sm:$0xff]
    %v715 = vld [vmem:[#allocation5 + $0x20] sm:$0xff]
    %v716 = vld [vmem:[#allocation5 + $0x28] sm:$0xff]
    %v717 = vld [vmem:[#allocation5 + $0x30] sm:$0xff]
    %v718 = vld [vmem:[#allocation5 + $0x38] sm:$0xff]
    %v719 = vld [vmem:[#allocation5 + $0x40] sm:$0xff]
    %v720 = vld [vmem:[#allocation5 + $0x48] sm:$0xff]
    %v721 = vld [vmem:[#allocation5 + $0x50] sm:$0xff]
    %v722 = vld [vmem:[#allocation5 + $0x58] sm:$0xff]
    %v723 = vld [vmem:[#allocation5 + $0x60] sm:$0xff]
    %v724 = vld [vmem:[#allocation5 + $0x68] sm:$0xff]
    %v725 = vld [vmem:[#allocation5 + $0x70] sm:$0xff]
    %v726 = vld [vmem:[#allocation5 + $0x78] sm:$0xff]
    %v727 = vld [vmem:[#allocation5 + $0x80] sm:$0xff]
    %v728 = vld [vmem:[#allocation5 + $0x88] sm:$0xff]
    %v729 = vld [vmem:[#allocation5 + $0x90] sm:$0xff]
    %v730 = vld [vmem:[#allocation5 + $0x98] sm:$0xff]
    %v731 = vld [vmem:[#allocation5 + $0xa0] sm:$0xff]
    %v732 = vld [vmem:[#allocation5 + $0xa8] sm:$0xff]
    %v733 = vld [vmem:[#allocation5 + $0xb0] sm:$0xff]
    %v734 = vld [vmem:[#allocation5 + $0xb8] sm:$0xff]
    %v735 = vld [vmem:[#allocation5 + $0xc0] sm:$0xff]
    %v736 = vld [vmem:[#allocation5 + $0xc8] sm:$0xff]
    %v737 = vld [vmem:[#allocation5 + $0xd0] sm:$0xff]
    %v738 = vld [vmem:[#allocation5 + $0xd8] sm:$0xff]
    %v739 = vld [vmem:[#allocation5 + $0xe0] sm:$0xff]
    %v740 = vld [vmem:[#allocation5 + $0xe8] sm:$0xff]
    %v741 = vld [vmem:[#allocation5 + $0xf0] sm:$0xff]
    %v742 = vld [vmem:[#allocation5 + $0xf8] sm:$0xff]
    %s743 = scalar_lea.vmem [#allocation5], 256
    %v744 = vld [vmem:[%s743] sm:$0xff]
    %v745 = vld [vmem:[%s743 + $0x8] sm:$0xff]
    %v746 = vld [vmem:[%s743 + $0x10] sm:$0xff]
    %v747 = vld [vmem:[%s743 + $0x18] sm:$0xff]
    %v748 = vld [vmem:[%s743 + $0x20] sm:$0xff]
    %v749 = vld [vmem:[%s743 + $0x28] sm:$0xff]
    %v750 = vld [vmem:[%s743 + $0x30] sm:$0xff]
    %v751 = vld [vmem:[%s743 + $0x38] sm:$0xff]
    %v752 = vld [vmem:[%s743 + $0x40] sm:$0xff]
    %v753 = vld [vmem:[%s743 + $0x48] sm:$0xff]
    %v754 = vld [vmem:[%s743 + $0x50] sm:$0xff]
    %v755 = vld [vmem:[%s743 + $0x58] sm:$0xff]
    %v756 = vld [vmem:[%s743 + $0x60] sm:$0xff]
    %v757 = vld [vmem:[%s743 + $0x68] sm:$0xff]
    %v758 = vld [vmem:[%s743 + $0x70] sm:$0xff]
    %v759 = vld [vmem:[%s743 + $0x78] sm:$0xff]
    %v760 = vld [vmem:[%s743 + $0x80] sm:$0xff]
    %v761 = vld [vmem:[%s743 + $0x88] sm:$0xff]
    %v762 = vld [vmem:[%s743 + $0x90] sm:$0xff]
    %v763 = vld [vmem:[%s743 + $0x98] sm:$0xff]
    %v764 = vld [vmem:[%s743 + $0xa0] sm:$0xff]
    %v765 = vld [vmem:[%s743 + $0xa8] sm:$0xff]
    %v766 = vld [vmem:[%s743 + $0xb0] sm:$0xff]
    %v767 = vld [vmem:[%s743 + $0xb8] sm:$0xff]
    %v768 = vld [vmem:[%s743 + $0xc0] sm:$0xff]
    %v769 = vld [vmem:[%s743 + $0xc8] sm:$0xff]
    %v770 = vld [vmem:[%s743 + $0xd0] sm:$0xff]
    %v771 = vld [vmem:[%s743 + $0xd8] sm:$0xff]
    %v772 = vld [vmem:[%s743 + $0xe0] sm:$0xff]
    %v773 = vld [vmem:[%s743 + $0xe8] sm:$0xff]
    %v774 = vld [vmem:[%s743 + $0xf0] sm:$0xff]
    %v775 = vld [vmem:[%s743 + $0xf8] sm:$0xff]
    %v808 = vunpack.c.l.b16 %v744
    %v809 = vunpack.c.h.b16 %v744
    %v810 = vunpack.c.l.b16 %v745
    %v811 = vunpack.c.h.b16 %v745
    %v812 = vunpack.c.l.b16 %v746
    %v813 = vunpack.c.h.b16 %v746
    %v814 = vunpack.c.l.b16 %v747
    %v815 = vunpack.c.h.b16 %v747
    %v816 = vunpack.c.l.b16 %v748
    %v817 = vunpack.c.h.b16 %v748
    %v818 = vunpack.c.l.b16 %v749
    %v819 = vunpack.c.h.b16 %v749
    %v820 = vunpack.c.l.b16 %v750
    %v821 = vunpack.c.h.b16 %v750
    %v822 = vunpack.c.l.b16 %v751
    %v823 = vunpack.c.h.b16 %v751
    %v824 = vunpack.c.l.b16 %v752
    %v825 = vunpack.c.h.b16 %v752
    %v826 = vunpack.c.l.b16 %v753
    %v827 = vunpack.c.h.b16 %v753
    %v828 = vunpack.c.l.b16 %v754
    %v829 = vunpack.c.h.b16 %v754
    %v830 = vunpack.c.l.b16 %v755
    %v831 = vunpack.c.h.b16 %v755
    %v832 = vunpack.c.l.b16 %v756
    %v833 = vunpack.c.h.b16 %v756
    %v834 = vunpack.c.l.b16 %v757
    %v835 = vunpack.c.h.b16 %v757
    %v836 = vunpack.c.l.b16 %v758
    %v837 = vunpack.c.h.b16 %v758
    %v838 = vunpack.c.l.b16 %v759
    %v839 = vunpack.c.h.b16 %v759
    %v840 = vunpack.c.l.b16 %v760
    %v841 = vunpack.c.h.b16 %v760
    %v842 = vunpack.c.l.b16 %v761
    %v843 = vunpack.c.h.b16 %v761
    %v844 = vunpack.c.l.b16 %v762
    %v845 = vunpack.c.h.b16 %v762
    %v846 = vunpack.c.l.b16 %v763
    %v847 = vunpack.c.h.b16 %v763
    %v848 = vunpack.c.l.b16 %v764
    %v849 = vunpack.c.h.b16 %v764
    %v850 = vunpack.c.l.b16 %v765
    %v851 = vunpack.c.h.b16 %v765
    %v852 = vunpack.c.l.b16 %v766
    %v853 = vunpack.c.h.b16 %v766
    %v854 = vunpack.c.l.b16 %v767
    %v855 = vunpack.c.h.b16 %v767
    %v856 = vunpack.c.l.b16 %v768
    %v857 = vunpack.c.h.b16 %v768
    %v858 = vunpack.c.l.b16 %v769
    %v859 = vunpack.c.h.b16 %v769
    %v860 = vunpack.c.l.b16 %v770
    %v861 = vunpack.c.h.b16 %v770
    %v862 = vunpack.c.l.b16 %v771
    %v863 = vunpack.c.h.b16 %v771
    %v864 = vunpack.c.l.b16 %v772
    %v865 = vunpack.c.h.b16 %v772
    %v866 = vunpack.c.l.b16 %v773
    %v867 = vunpack.c.h.b16 %v773
    %v868 = vunpack.c.l.b16 %v774
    %v869 = vunpack.c.h.b16 %v774
    %v870 = vunpack.c.l.b16 %v775
    %v871 = vunpack.c.h.b16 %v775
    %v872 = vpack.c.b16 %v810, %v808
    %v873 = vpack.c.b16 %v811, %v809
    %v874 = vpack.c.b16 %v814, %v812
    %v875 = vpack.c.b16 %v815, %v813
    %v876 = vpack.c.b16 %v818, %v816
    %v877 = vpack.c.b16 %v819, %v817
    %v878 = vpack.c.b16 %v822, %v820
    %v879 = vpack.c.b16 %v823, %v821
    %v880 = vpack.c.b16 %v826, %v824
    %v881 = vpack.c.b16 %v827, %v825
    %v882 = vpack.c.b16 %v830, %v828
    %v883 = vpack.c.b16 %v831, %v829
    %v884 = vpack.c.b16 %v834, %v832
    %v885 = vpack.c.b16 %v835, %v833
    %v886 = vpack.c.b16 %v838, %v836
    %v887 = vpack.c.b16 %v839, %v837
    %v888 = vpack.c.b16 %v842, %v840
    %v889 = vpack.c.b16 %v843, %v841
    %v890 = vpack.c.b16 %v846, %v844
    %v891 = vpack.c.b16 %v847, %v845
    %v892 = vpack.c.b16 %v850, %v848
    %v893 = vpack.c.b16 %v851, %v849
    %v894 = vpack.c.b16 %v854, %v852
    %v895 = vpack.c.b16 %v855, %v853
    %v896 = vpack.c.b16 %v858, %v856
    %v897 = vpack.c.b16 %v859, %v857
    %v898 = vpack.c.b16 %v862, %v860
    %v899 = vpack.c.b16 %v863, %v861
    %v900 = vpack.c.b16 %v866, %v864
    %v901 = vpack.c.b16 %v867, %v865
    %v902 = vpack.c.b16 %v870, %v868
    %v903 = vpack.c.b16 %v871, %v869
    %936 = vmatprep.subr.bf16.mxu0 %v873
    %937 = vmatpush1.bf16.msra.mxu0 %v872
    %938 = vmatprep.subr.bf16.mxu0 %v875
    %939 = vmatpush1.bf16.msra.mxu0 %v874
    %940 = vmatprep.subr.bf16.mxu0 %v877
    %941 = vmatpush1.bf16.msra.mxu0 %v876
    %942 = vmatprep.subr.bf16.mxu0 %v879
    %943 = vmatpush1.bf16.msra.mxu0 %v878
    %944 = vmatprep.subr.bf16.mxu0 %v881
    %945 = vmatpush1.bf16.msra.mxu0 %v880
    %946 = vmatprep.subr.bf16.mxu0 %v883
    %947 = vmatpush1.bf16.msra.mxu0 %v882
    %948 = vmatprep.subr.bf16.mxu0 %v885
    %949 = vmatpush1.bf16.msra.mxu0 %v884
    %950 = vmatprep.subr.bf16.mxu0 %v887
    %951 = vmatpush1.bf16.msra.mxu0 %v886
    %952 = vmatprep.subr.bf16.mxu0 %v889
    %953 = vmatpush1.bf16.msra.mxu0 %v888
    %954 = vmatprep.subr.bf16.mxu0 %v891
    %955 = vmatpush1.bf16.msra.mxu0 %v890
    %956 = vmatprep.subr.bf16.mxu0 %v893
    %957 = vmatpush1.bf16.msra.mxu0 %v892
    %958 = vmatprep.subr.bf16.mxu0 %v895
    %959 = vmatpush1.bf16.msra.mxu0 %v894
    %960 = vmatprep.subr.bf16.mxu0 %v897
    %961 = vmatpush1.bf16.msra.mxu0 %v896
    %962 = vmatprep.subr.bf16.mxu0 %v899
    %963 = vmatpush1.bf16.msra.mxu0 %v898
    %964 = vmatprep.subr.bf16.mxu0 %v901
    %965 = vmatpush1.bf16.msra.mxu0 %v900
    %966 = vmatprep.subr.bf16.mxu0 %v903
    %967 = vmatpush1.bf16.msra.mxu0 %v902
    %968 = vmatprep.mubr.bf16.mxu0 %v680
    %969 = vmatmul.mubr.bf16.gmra.mrb[0].mxu0 %v679
    %v970 = vpop.f32.mrb[0].mxu0
    %v971 = vadd.f32 0.0, %v970
    %v972 = vpop.f32.mrb[0].mxu0
    %v973 = vadd.f32 0.0, %v972
    %v974 = vpop.f32.mrb[0].mxu0
    %v975 = vadd.f32 0.0, %v974
    %v976 = vpop.f32.mrb[0].mxu0
    %v977 = vadd.f32 0.0, %v976
    %978 = vmatprep.mubr.bf16.mxu0 %v682
    %979 = vmatmul.mubr.bf16.gmra.mrb[0].mxu0 %v681
    %v980 = vpop.f32.mrb[0].mxu0
    %v981 = vadd.f32 0.0, %v980
    %v982 = vpop.f32.mrb[0].mxu0
    %v983 = vadd.f32 0.0, %v982
    %v984 = vpop.f32.mrb[0].mxu0
    %v985 = vadd.f32 0.0, %v984
    %v986 = vpop.f32.mrb[0].mxu0
    %v987 = vadd.f32 0.0, %v986
    %988 = vdwg.mxu0
    %v1021 = vunpack.c.l.b16 %v711
    %v1022 = vunpack.c.h.b16 %v711
    %v1023 = vunpack.c.l.b16 %v712
    %v1024 = vunpack.c.h.b16 %v712
    %v1025 = vunpack.c.l.b16 %v713
    %v1026 = vunpack.c.h.b16 %v713
    %v1027 = vunpack.c.l.b16 %v714
    %v1028 = vunpack.c.h.b16 %v714
    %v1029 = vunpack.c.l.b16 %v715
    %v1030 = vunpack.c.h.b16 %v715
    %v1031 = vunpack.c.l.b16 %v716
    %v1032 = vunpack.c.h.b16 %v716
    %v1033 = vunpack.c.l.b16 %v717
    %v1034 = vunpack.c.h.b16 %v717
    %v1035 = vunpack.c.l.b16 %v718
    %v1036 = vunpack.c.h.b16 %v718
    %v1037 = vunpack.c.l.b16 %v719
    %v1038 = vunpack.c.h.b16 %v719
    %v1039 = vunpack.c.l.b16 %v720
    %v1040 = vunpack.c.h.b16 %v720
    %v1041 = vunpack.c.l.b16 %v721
    %v1042 = vunpack.c.h.b16 %v721
    %v1043 = vunpack.c.l.b16 %v722
    %v1044 = vunpack.c.h.b16 %v722
    %v1045 = vunpack.c.l.b16 %v723
    %v1046 = vunpack.c.h.b16 %v723
    %v1047 = vunpack.c.l.b16 %v724
    %v1048 = vunpack.c.h.b16 %v724
    %v1049 = vunpack.c.l.b16 %v725
    %v1050 = vunpack.c.h.b16 %v725
    %v1051 = vunpack.c.l.b16 %v726
    %v1052 = vunpack.c.h.b16 %v726
    %v1053 = vunpack.c.l.b16 %v727
    %v1054 = vunpack.c.h.b16 %v727
    %v1055 = vunpack.c.l.b16 %v728
    %v1056 = vunpack.c.h.b16 %v728
    %v1057 = vunpack.c.l.b16 %v729
    %v1058 = vunpack.c.h.b16 %v729
    %v1059 = vunpack.c.l.b16 %v730
    %v1060 = vunpack.c.h.b16 %v730
    %v1061 = vunpack.c.l.b16 %v731
    %v1062 = vunpack.c.h.b16 %v731
    %v1063 = vunpack.c.l.b16 %v732
    %v1064 = vunpack.c.h.b16 %v732
    %v1065 = vunpack.c.l.b16 %v733
    %v1066 = vunpack.c.h.b16 %v733
    %v1067 = vunpack.c.l.b16 %v734
    %v1068 = vunpack.c.h.b16 %v734
    %v1069 = vunpack.c.l.b16 %v735
    %v1070 = vunpack.c.h.b16 %v735
    %v1071 = vunpack.c.l.b16 %v736
    %v1072 = vunpack.c.h.b16 %v736
    %v1073 = vunpack.c.l.b16 %v737
    %v1074 = vunpack.c.h.b16 %v737
    %v1075 = vunpack.c.l.b16 %v738
    %v1076 = vunpack.c.h.b16 %v738
    %v1077 = vunpack.c.l.b16 %v739
    %v1078 = vunpack.c.h.b16 %v739
    %v1079 = vunpack.c.l.b16 %v740
    %v1080 = vunpack.c.h.b16 %v740
    %v1081 = vunpack.c.l.b16 %v741
    %v1082 = vunpack.c.h.b16 %v741
    %v1083 = vunpack.c.l.b16 %v742
    %v1084 = vunpack.c.h.b16 %v742
    %v1085 = vpack.c.b16 %v1023, %v1021
    %v1086 = vpack.c.b16 %v1024, %v1022
    %v1087 = vpack.c.b16 %v1027, %v1025
    %v1088 = vpack.c.b16 %v1028, %v1026
    %v1089 = vpack.c.b16 %v1031, %v1029
    %v1090 = vpack.c.b16 %v1032, %v1030
    %v1091 = vpack.c.b16 %v1035, %v1033
    %v1092 = vpack.c.b16 %v1036, %v1034
    %v1093 = vpack.c.b16 %v1039, %v1037
    %v1094 = vpack.c.b16 %v1040, %v1038
    %v1095 = vpack.c.b16 %v1043, %v1041
    %v1096 = vpack.c.b16 %v1044, %v1042
    %v1097 = vpack.c.b16 %v1047, %v1045
    %v1098 = vpack.c.b16 %v1048, %v1046
    %v1099 = vpack.c.b16 %v1051, %v1049
    %v1100 = vpack.c.b16 %v1052, %v1050
    %v1101 = vpack.c.b16 %v1055, %v1053
    %v1102 = vpack.c.b16 %v1056, %v1054
    %v1103 = vpack.c.b16 %v1059, %v1057
    %v1104 = vpack.c.b16 %v1060, %v1058
    %v1105 = vpack.c.b16 %v1063, %v1061
    %v1106 = vpack.c.b16 %v1064, %v1062
    %v1107 = vpack.c.b16 %v1067, %v1065
    %v1108 = vpack.c.b16 %v1068, %v1066
    %v1109 = vpack.c.b16 %v1071, %v1069
    %v1110 = vpack.c.b16 %v1072, %v1070
    %v1111 = vpack.c.b16 %v1075, %v1073
    %v1112 = vpack.c.b16 %v1076, %v1074
    %v1113 = vpack.c.b16 %v1079, %v1077
    %v1114 = vpack.c.b16 %v1080, %v1078
    %v1115 = vpack.c.b16 %v1083, %v1081
    %v1116 = vpack.c.b16 %v1084, %v1082
    %1149 = vmatprep.subr.bf16.mxu0 %v1086
    %1150 = vmatpush1.bf16.msra.mxu0 %v1085
    %1151 = vmatprep.subr.bf16.mxu0 %v1088
    %1152 = vmatpush1.bf16.msra.mxu0 %v1087
    %1153 = vmatprep.subr.bf16.mxu0 %v1090
    %1154 = vmatpush1.bf16.msra.mxu0 %v1089
    %1155 = vmatprep.subr.bf16.mxu0 %v1092
    %1156 = vmatpush1.bf16.msra.mxu0 %v1091
    %1157 = vmatprep.subr.bf16.mxu0 %v1094
    %1158 = vmatpush1.bf16.msra.mxu0 %v1093
    %1159 = vmatprep.subr.bf16.mxu0 %v1096
    %1160 = vmatpush1.bf16.msra.mxu0 %v1095
    %1161 = vmatprep.subr.bf16.mxu0 %v1098
    %1162 = vmatpush1.bf16.msra.mxu0 %v1097
    %1163 = vmatprep.subr.bf16.mxu0 %v1100
    %1164 = vmatpush1.bf16.msra.mxu0 %v1099
    %1165 = vmatprep.subr.bf16.mxu0 %v1102
    %1166 = vmatpush1.bf16.msra.mxu0 %v1101
    %1167 = vmatprep.subr.bf16.mxu0 %v1104
    %1168 = vmatpush1.bf16.msra.mxu0 %v1103
    %1169 = vmatprep.subr.bf16.mxu0 %v1106
    %1170 = vmatpush1.bf16.msra.mxu0 %v1105
    %1171 = vmatprep.subr.bf16.mxu0 %v1108
    %1172 = vmatpush1.bf16.msra.mxu0 %v1107
    %1173 = vmatprep.subr.bf16.mxu0 %v1110
    %1174 = vmatpush1.bf16.msra.mxu0 %v1109
    %1175 = vmatprep.subr.bf16.mxu0 %v1112
    %1176 = vmatpush1.bf16.msra.mxu0 %v1111
    %1177 = vmatprep.subr.bf16.mxu0 %v1114
    %1178 = vmatpush1.bf16.msra.mxu0 %v1113
    %1179 = vmatprep.subr.bf16.mxu0 %v1116
    %1180 = vmatpush1.bf16.msra.mxu0 %v1115
    %1181 = vmatprep.mubr.bf16.mxu0 %v676
    %1182 = vmatmul.mubr.bf16.gmra.mrb[0].mxu0 %v675
    %v1183 = vpop.f32.mrb[0].mxu0
    %v1184 = vadd.f32 %v971, %v1183
    %v1185 = vpop.f32.mrb[0].mxu0
    %v1186 = vadd.f32 %v973, %v1185
    %v1187 = vpop.f32.mrb[0].mxu0
    %v1188 = vadd.f32 %v975, %v1187
    %v1189 = vpop.f32.mrb[0].mxu0
    %v1190 = vadd.f32 %v977, %v1189
    %1191 = vmatprep.mubr.bf16.mxu0 %v678
    %1192 = vmatmul.mubr.bf16.gmra.mrb[0].mxu0 %v677
    %v1193 = vpop.f32.mrb[0].mxu0
    %v1194 = vadd.f32 %v981, %v1193
    %v1195 = vpop.f32.mrb[0].mxu0
    %v1196 = vadd.f32 %v983, %v1195
    %v1197 = vpop.f32.mrb[0].mxu0
    %v1198 = vadd.f32 %v985, %v1197
    %v1199 = vpop.f32.mrb[0].mxu0
    %v1200 = vadd.f32 %v987, %v1199
    %1201 = vdwg.mxu0
    %s1202 = scalar_lea.vmem [#allocation5], 512
    %v1203 = vld [vmem:[%s1202] sm:$0xff]
    %v1204 = vld [vmem:[%s1202 + $0x8] sm:$0xff]
    %v1205 = vld [vmem:[%s1202 + $0x10] sm:$0xff]
    %v1206 = vld [vmem:[%s1202 + $0x18] sm:$0xff]
    %v1207 = vld [vmem:[%s1202 + $0x20] sm:$0xff]
    %v1208 = vld [vmem:[%s1202 + $0x28] sm:$0xff]
    %v1209 = vld [vmem:[%s1202 + $0x30] sm:$0xff]
    %v1210 = vld [vmem:[%s1202 + $0x38] sm:$0xff]
    %v1211 = vld [vmem:[%s1202 + $0x40] sm:$0xff]
    %v1212 = vld [vmem:[%s1202 + $0x48] sm:$0xff]
    %v1213 = vld [vmem:[%s1202 + $0x50] sm:$0xff]
    %v1214 = vld [vmem:[%s1202 + $0x58] sm:$0xff]
    %v1215 = vld [vmem:[%s1202 + $0x60] sm:$0xff]
    %v1216 = vld [vmem:[%s1202 + $0x68] sm:$0xff]
    %v1217 = vld [vmem:[%s1202 + $0x70] sm:$0xff]
    %v1218 = vld [vmem:[%s1202 + $0x78] sm:$0xff]
    %v1219 = vld [vmem:[%s1202 + $0x80] sm:$0xff]
    %v1220 = vld [vmem:[%s1202 + $0x88] sm:$0xff]
    %v1221 = vld [vmem:[%s1202 + $0x90] sm:$0xff]
    %v1222 = vld [vmem:[%s1202 + $0x98] sm:$0xff]
    %v1223 = vld [vmem:[%s1202 + $0xa0] sm:$0xff]
    %v1224 = vld [vmem:[%s1202 + $0xa8] sm:$0xff]
    %v1225 = vld [vmem:[%s1202 + $0xb0] sm:$0xff]
    %v1226 = vld [vmem:[%s1202 + $0xb8] sm:$0xff]
    %v1227 = vld [vmem:[%s1202 + $0xc0] sm:$0xff]
    %v1228 = vld [vmem:[%s1202 + $0xc8] sm:$0xff]
    %v1229 = vld [vmem:[%s1202 + $0xd0] sm:$0xff]
    %v1230 = vld [vmem:[%s1202 + $0xd8] sm:$0xff]
    %v1231 = vld [vmem:[%s1202 + $0xe0] sm:$0xff]
    %v1232 = vld [vmem:[%s1202 + $0xe8] sm:$0xff]
    %v1233 = vld [vmem:[%s1202 + $0xf0] sm:$0xff]
    %v1234 = vld [vmem:[%s1202 + $0xf8] sm:$0xff]
    %v1267 = vunpack.c.l.b16 %v1203
    %v1268 = vunpack.c.h.b16 %v1203
    %v1269 = vunpack.c.l.b16 %v1204
    %v1270 = vunpack.c.h.b16 %v1204
    %v1271 = vunpack.c.l.b16 %v1205
    %v1272 = vunpack.c.h.b16 %v1205
    %v1273 = vunpack.c.l.b16 %v1206
    %v1274 = vunpack.c.h.b16 %v1206
    %v1275 = vunpack.c.l.b16 %v1207
    %v1276 = vunpack.c.h.b16 %v1207
    %v1277 = vunpack.c.l.b16 %v1208
    %v1278 = vunpack.c.h.b16 %v1208
    %v1279 = vunpack.c.l.b16 %v1209
    %v1280 = vunpack.c.h.b16 %v1209
    %v1281 = vunpack.c.l.b16 %v1210
    %v1282 = vunpack.c.h.b16 %v1210
    %v1283 = vunpack.c.l.b16 %v1211
    %v1284 = vunpack.c.h.b16 %v1211
    %v1285 = vunpack.c.l.b16 %v1212
    %v1286 = vunpack.c.h.b16 %v1212
    %v1287 = vunpack.c.l.b16 %v1213
    %v1288 = vunpack.c.h.b16 %v1213
    %v1289 = vunpack.c.l.b16 %v1214
    %v1290 = vunpack.c.h.b16 %v1214
    %v1291 = vunpack.c.l.b16 %v1215
    %v1292 = vunpack.c.h.b16 %v1215
    %v1293 = vunpack.c.l.b16 %v1216
    %v1294 = vunpack.c.h.b16 %v1216
    %v1295 = vunpack.c.l.b16 %v1217
    %v1296 = vunpack.c.h.b16 %v1217
    %v1297 = vunpack.c.l.b16 %v1218
    %v1298 = vunpack.c.h.b16 %v1218
    %v1299 = vunpack.c.l.b16 %v1219
    %v1300 = vunpack.c.h.b16 %v1219
    %v1301 = vunpack.c.l.b16 %v1220
    %v1302 = vunpack.c.h.b16 %v1220
    %v1303 = vunpack.c.l.b16 %v1221
    %v1304 = vunpack.c.h.b16 %v1221
    %v1305 = vunpack.c.l.b16 %v1222
    %v1306 = vunpack.c.h.b16 %v1222
    %v1307 = vunpack.c.l.b16 %v1223
    %v1308 = vunpack.c.h.b16 %v1223
    %v1309 = vunpack.c.l.b16 %v1224
    %v1310 = vunpack.c.h.b16 %v1224
    %v1311 = vunpack.c.l.b16 %v1225
    %v1312 = vunpack.c.h.b16 %v1225
    %v1313 = vunpack.c.l.b16 %v1226
    %v1314 = vunpack.c.h.b16 %v1226
    %v1315 = vunpack.c.l.b16 %v1227
    %v1316 = vunpack.c.h.b16 %v1227
    %v1317 = vunpack.c.l.b16 %v1228
    %v1318 = vunpack.c.h.b16 %v1228
    %v1319 = vunpack.c.l.b16 %v1229
    %v1320 = vunpack.c.h.b16 %v1229
    %v1321 = vunpack.c.l.b16 %v1230
    %v1322 = vunpack.c.h.b16 %v1230
    %v1323 = vunpack.c.l.b16 %v1231
    %v1324 = vunpack.c.h.b16 %v1231
    %v1325 = vunpack.c.l.b16 %v1232
    %v1326 = vunpack.c.h.b16 %v1232
    %v1327 = vunpack.c.l.b16 %v1233
    %v1328 = vunpack.c.h.b16 %v1233
    %v1329 = vunpack.c.l.b16 %v1234
    %v1330 = vunpack.c.h.b16 %v1234
    %v1331 = vpack.c.b16 %v1269, %v1267
    %v1332 = vpack.c.b16 %v1270, %v1268
    %v1333 = vpack.c.b16 %v1273, %v1271
    %v1334 = vpack.c.b16 %v1274, %v1272
    %v1335 = vpack.c.b16 %v1277, %v1275
    %v1336 = vpack.c.b16 %v1278, %v1276
    %v1337 = vpack.c.b16 %v1281, %v1279
    %v1338 = vpack.c.b16 %v1282, %v1280
    %v1339 = vpack.c.b16 %v1285, %v1283
    %v1340 = vpack.c.b16 %v1286, %v1284
    %v1341 = vpack.c.b16 %v1289, %v1287
    %v1342 = vpack.c.b16 %v1290, %v1288
    %v1343 = vpack.c.b16 %v1293, %v1291
    %v1344 = vpack.c.b16 %v1294, %v1292
    %v1345 = vpack.c.b16 %v1297, %v1295
    %v1346 = vpack.c.b16 %v1298, %v1296
    %v1347 = vpack.c.b16 %v1301, %v1299
    %v1348 = vpack.c.b16 %v1302, %v1300
    %v1349 = vpack.c.b16 %v1305, %v1303
    %v1350 = vpack.c.b16 %v1306, %v1304
    %v1351 = vpack.c.b16 %v1309, %v1307
    %v1352 = vpack.c.b16 %v1310, %v1308
    %v1353 = vpack.c.b16 %v1313, %v1311
    %v1354 = vpack.c.b16 %v1314, %v1312
    %v1355 = vpack.c.b16 %v1317, %v1315
    %v1356 = vpack.c.b16 %v1318, %v1316
    %v1357 = vpack.c.b16 %v1321, %v1319
    %v1358 = vpack.c.b16 %v1322, %v1320
    %v1359 = vpack.c.b16 %v1325, %v1323
    %v1360 = vpack.c.b16 %v1326, %v1324
    %v1361 = vpack.c.b16 %v1329, %v1327
    %v1362 = vpack.c.b16 %v1330, %v1328
    %1395 = vmatprep.subr.bf16.mxu0 %v1332
    %1396 = vmatpush1.bf16.msra.mxu0 %v1331
    %1397 = vmatprep.subr.bf16.mxu0 %v1334
    %1398 = vmatpush1.bf16.msra.mxu0 %v1333
    %1399 = vmatprep.subr.bf16.mxu0 %v1336
    %1400 = vmatpush1.bf16.msra.mxu0 %v1335
    %1401 = vmatprep.subr.bf16.mxu0 %v1338
    %1402 = vmatpush1.bf16.msra.mxu0 %v1337
    %1403 = vmatprep.subr.bf16.mxu0 %v1340
    %1404 = vmatpush1.bf16.msra.mxu0 %v1339
    %1405 = vmatprep.subr.bf16.mxu0 %v1342
    %1406 = vmatpush1.bf16.msra.mxu0 %v1341
    %1407 = vmatprep.subr.bf16.mxu0 %v1344
    %1408 = vmatpush1.bf16.msra.mxu0 %v1343
    %1409 = vmatprep.subr.bf16.mxu0 %v1346
    %1410 = vmatpush1.bf16.msra.mxu0 %v1345
    %1411 = vmatprep.subr.bf16.mxu0 %v1348
    %1412 = vmatpush1.bf16.msra.mxu0 %v1347
    %1413 = vmatprep.subr.bf16.mxu0 %v1350
    %1414 = vmatpush1.bf16.msra.mxu0 %v1349
    %1415 = vmatprep.subr.bf16.mxu0 %v1352
    %1416 = vmatpush1.bf16.msra.mxu0 %v1351
    %1417 = vmatprep.subr.bf16.mxu0 %v1354
    %1418 = vmatpush1.bf16.msra.mxu0 %v1353
    %1419 = vmatprep.subr.bf16.mxu0 %v1356
    %1420 = vmatpush1.bf16.msra.mxu0 %v1355
    %1421 = vmatprep.subr.bf16.mxu0 %v1358
    %1422 = vmatpush1.bf16.msra.mxu0 %v1357
    %1423 = vmatprep.subr.bf16.mxu0 %v1360
    %1424 = vmatpush1.bf16.msra.mxu0 %v1359
    %1425 = vmatprep.subr.bf16.mxu0 %v1362
    %1426 = vmatpush1.bf16.msra.mxu0 %v1361
    %1427 = vmatprep.mubr.bf16.mxu0 %v708
    %1428 = vmatmul.mubr.bf16.gmra.mrb[0].mxu0 %v707
    %v1429 = vpop.f32.mrb[0].mxu0
    %v1430 = vadd.f32 0.0, %v1429
    %v1431 = vpop.f32.mrb[0].mxu0
    %v1432 = vadd.f32 0.0, %v1431
    %v1433 = vpop.f32.mrb[0].mxu0
    %v1434 = vadd.f32 0.0, %v1433
    %v1435 = vpop.f32.mrb[0].mxu0
    %v1436 = vadd.f32 0.0, %v1435
    %1437 = vmatprep.mubr.bf16.mxu0 %v710
    %1438 = vmatmul.mubr.bf16.gmra.mrb[0].mxu0 %v709
    %v1439 = vpop.f32.mrb[0].mxu0
    %v1440 = vadd.f32 0.0, %v1439
    %v1441 = vpop.f32.mrb[0].mxu0
    %v1442 = vadd.f32 0.0, %v1441
    %v1443 = vpop.f32.mrb[0].mxu0
    %v1444 = vadd.f32 0.0, %v1443
    %v1445 = vpop.f32.mrb[0].mxu0
    %v1446 = vadd.f32 0.0, %v1445
    %1447 = vdwg.mxu0
    %v1448 = vadd.f32 %v1184, %v1430
    %v1449 = vadd.f32 %v1186, %v1432
    %v1450 = vadd.f32 %v1188, %v1434
    %v1451 = vadd.f32 %v1190, %v1436
    %v1452 = vadd.f32 %v1194, %v1440
    %v1453 = vadd.f32 %v1196, %v1442
    %v1454 = vadd.f32 %v1198, %v1444
    %v1455 = vadd.f32 %v1200, %v1446
    %s1456 = scalar_lea.vmem %s8, 1
    %v1457 = vld [vmem:[%s1456] ss:$8 sm:$0x3]
    %v1459 = vlaneseq
    %v1460 = vshrl.u32 %v1459, 7
    %v1461 = vsub.s32 0, %v1460
    %v1462 = vrot.slane %v1457, %v1461
    %v1463 = vlaneseq
    %v1464 = vshrl.u32 %v1463, 7
    %v1465 = vsub.s32 1, %v1464
    %v1466 = vrot.slane %v1457, %v1465
    %v1469 = vadd.f32 %v1448, %v1462
    %v1470 = vadd.f32 %v1449, %v1466
    %v1471 = vadd.f32 %v1450, %v1462
    %v1472 = vadd.f32 %v1451, %v1466
    %v1473 = vadd.f32 %v1452, %v1462
    %v1474 = vadd.f32 %v1453, %v1466
    %v1475 = vadd.f32 %v1454, %v1462
    %v1476 = vadd.f32 %v1455, %v1466
    %vm1477 = vcmp.gt.f32.partialorder %v1469, 0.0
    %vm1478 = vcmp.gt.f32.partialorder %v1470, 0.0
    %vm1479 = vcmp.gt.f32.partialorder %v1471, 0.0
    %vm1480 = vcmp.gt.f32.partialorder %v1472, 0.0
    %vm1481 = vcmp.gt.f32.partialorder %v1473, 0.0
    %vm1482 = vcmp.gt.f32.partialorder %v1474, 0.0
    %vm1483 = vcmp.gt.f32.partialorder %v1475, 0.0
    %vm1484 = vcmp.gt.f32.partialorder %v1476, 0.0
    %v1485 = vmul.f32 %v1469, 0.3
    %v1486 = vmul.f32 %v1470, 0.3
    %v1487 = vmul.f32 %v1471, 0.3
    %v1488 = vmul.f32 %v1472, 0.3
    %v1489 = vmul.f32 %v1473, 0.3
    %v1490 = vmul.f32 %v1474, 0.3
    %v1491 = vmul.f32 %v1475, 0.3
    %v1492 = vmul.f32 %v1476, 0.3
    %v1493 = vsel %vm1477, %v1469, %v1485
    %v1494 = vsel %vm1478, %v1470, %v1486
    %v1495 = vsel %vm1479, %v1471, %v1487
    %v1496 = vsel %vm1480, %v1472, %v1488
    %v1497 = vsel %vm1481, %v1473, %v1489
    %v1498 = vsel %vm1482, %v1474, %v1490
    %v1499 = vsel %vm1483, %v1475, %v1491
    %v1500 = vsel %vm1484, %v1476, %v1492
    %v1501 = vpack.c.bf16 %v1495, %v1493
    %v1502 = vpack.c.bf16 %v1496, %v1494
    %v1503 = vpack.c.bf16 %v1499, %v1497
    %v1504 = vpack.c.bf16 %v1500, %v1498
    %v1505 = vld [vmem:[%s7] sm:$0xf]
    %v1506 = vld [vmem:[%s7 + $0x4] sm:$0xf]
    %v1507 = vld [vmem:[%s7 + $0x8] sm:$0xf]
    %v1508 = vld [vmem:[%s7 + $0xc] sm:$0xf]
    %v1509 = vld [vmem:[%s7 + $0x10] sm:$0xf]
    %v1510 = vld [vmem:[%s7 + $0x14] sm:$0xf]
    %v1511 = vld [vmem:[%s7 + $0x18] sm:$0xf]
    %v1512 = vld [vmem:[%s7 + $0x1c] sm:$0xf]
    %v1513 = vld [vmem:[%s7 + $0x20] sm:$0xf]
    %v1514 = vld [vmem:[%s7 + $0x24] sm:$0xf]
    %v1515 = vld [vmem:[%s7 + $0x28] sm:$0xf]
    %v1516 = vld [vmem:[%s7 + $0x2c] sm:$0xf]
    %v1517 = vld [vmem:[%s7 + $0x30] sm:$0xf]
    %v1518 = vld [vmem:[%s7 + $0x34] sm:$0xf]
    %v1519 = vld [vmem:[%s7 + $0x38] sm:$0xf]
    %v1520 = vld [vmem:[%s7 + $0x3c] sm:$0xf]
    %v1521 = vld [vmem:[%s7 + $0x40] sm:$0xf]
    %v1522 = vld [vmem:[%s7 + $0x44] sm:$0xf]
    %v1523 = vld [vmem:[%s7 + $0x48] sm:$0xf]
    %v1524 = vld [vmem:[%s7 + $0x4c] sm:$0xf]
    %v1525 = vld [vmem:[%s7 + $0x50] sm:$0xf]
    %v1526 = vld [vmem:[%s7 + $0x54] sm:$0xf]
    %v1527 = vld [vmem:[%s7 + $0x58] sm:$0xf]
    %v1528 = vld [vmem:[%s7 + $0x5c] sm:$0xf]
    %v1529 = vld [vmem:[%s7 + $0x60] sm:$0xf]
    %v1530 = vld [vmem:[%s7 + $0x64] sm:$0xf]
    %v1531 = vld [vmem:[%s7 + $0x68] sm:$0xf]
    %v1532 = vld [vmem:[%s7 + $0x6c] sm:$0xf]
    %v1533 = vld [vmem:[%s7 + $0x70] sm:$0xf]
    %v1534 = vld [vmem:[%s7 + $0x74] sm:$0xf]
    %v1535 = vld [vmem:[%s7 + $0x78] sm:$0xf]
    %v1536 = vld [vmem:[%s7 + $0x7c] sm:$0xf]
    %v1537 = vld [vmem:[#allocation7] sm:$0xf]
    %v1538 = vld [vmem:[#allocation7 + $0x4] sm:$0xf]
    %v1539 = vld [vmem:[#allocation7 + $0x8] sm:$0xf]
    %v1540 = vld [vmem:[#allocation7 + $0xc] sm:$0xf]
    %v1541 = vld [vmem:[#allocation7 + $0x10] sm:$0xf]
    %v1542 = vld [vmem:[#allocation7 + $0x14] sm:$0xf]
    %v1543 = vld [vmem:[#allocation7 + $0x18] sm:$0xf]
    %v1544 = vld [vmem:[#allocation7 + $0x1c] sm:$0xf]
    %s1545 = scalar_lea.vmem [#allocation7], 32
    %v1546 = vld [vmem:[%s1545] sm:$0xf]
    %v1547 = vld [vmem:[%s1545 + $0x4] sm:$0xf]
    %v1548 = vld [vmem:[%s1545 + $0x8] sm:$0xf]
    %v1549 = vld [vmem:[%s1545 + $0xc] sm:$0xf]
    %v1550 = vld [vmem:[%s1545 + $0x10] sm:$0xf]
    %v1551 = vld [vmem:[%s1545 + $0x14] sm:$0xf]
    %v1552 = vld [vmem:[%s1545 + $0x18] sm:$0xf]
    %v1553 = vld [vmem:[%s1545 + $0x1c] sm:$0xf]
    %v1562 = vunpack.c.l.b16 %v1546
    %v1563 = vunpack.c.l.b16 %v1547
    %v1564 = vunpack.c.l.b16 %v1548
    %v1565 = vunpack.c.l.b16 %v1549
    %v1566 = vunpack.c.l.b16 %v1550
    %v1567 = vunpack.c.l.b16 %v1551
    %v1568 = vunpack.c.l.b16 %v1552
    %v1569 = vunpack.c.l.b16 %v1553
    %v1570 = vpack.c.b16 %v1563, %v1562
    %v1571 = vpack.c.b16 %v1565, %v1564
    %v1572 = vpack.c.b16 %v1567, %v1566
    %v1573 = vpack.c.b16 %v1569, %v1568
    %1578 = vmatprep.subr.bf16.mxu0 0
    %1579 = vmatpush1.bf16.msra.mxu0 %v1570
    %1580 = vmatprep.subr.bf16.mxu0 0
    %1581 = vmatpush1.bf16.msra.mxu0 %v1571
    %1582 = vmatprep.subr.bf16.mxu0 0
    %1583 = vmatpush1.bf16.msra.mxu0 %v1572
    %1584 = vmatprep.subr.bf16.mxu0 0
    %1585 = vmatpush1.bf16.msra.mxu0 %v1573
    %1586 = vmatprep.subr.bf16.mxu0 0
    %1587 = vmatpush1.bf16.msra.mxu0 0
    %1588 = vmatprep.subr.bf16.mxu0 0
    %1589 = vmatpush1.bf16.msra.mxu0 0
    %1590 = vmatprep.subr.bf16.mxu0 0
    %1591 = vmatpush1.bf16.msra.mxu0 0
    %1592 = vmatprep.subr.bf16.mxu0 0
    %1593 = vmatpush1.bf16.msra.mxu0 0
    %1594 = vmatprep.subr.bf16.mxu0 0
    %1595 = vmatpush1.bf16.msra.mxu0 0
    %1596 = vmatprep.subr.bf16.mxu0 0
    %1597 = vmatpush1.bf16.msra.mxu0 0
    %1598 = vmatprep.subr.bf16.mxu0 0
    %1599 = vmatpush1.bf16.msra.mxu0 0
    %1600 = vmatprep.subr.bf16.mxu0 0
    %1601 = vmatpush1.bf16.msra.mxu0 0
    %1602 = vmatprep.subr.bf16.mxu0 0
    %1603 = vmatpush1.bf16.msra.mxu0 0
    %1604 = vmatprep.subr.bf16.mxu0 0
    %1605 = vmatpush1.bf16.msra.mxu0 0
    %1606 = vmatprep.subr.bf16.mxu0 0
    %1607 = vmatpush1.bf16.msra.mxu0 0
    %1608 = vmatprep.subr.bf16.mxu0 0
    %1609 = vmatpush1.bf16.msra.mxu0 0
    %1610 = vmatprep.mubr.bf16.mxu0 0
    %1611 = vmatmul.mubr.bf16.gmra.mrb[0].mxu0 %v433
    %v1612 = vpop.f32.mrb[0].mxu0
    %v1613 = vadd.f32 0.0, %v1612
    %v1614 = vpop.f32.mrb[0].mxu0
    %v1615 = vpop.f32.mrb[0].mxu0
    %v1616 = vadd.f32 0.0, %v1615
    %v1617 = vpop.f32.mrb[0].mxu0
    %1618 = vmatprep.mubr.bf16.mxu0 0
    %1619 = vmatmul.mubr.bf16.gmra.mrb[0].mxu0 %v436
    %v1620 = vpop.f32.mrb[0].mxu0
    %v1621 = vadd.f32 0.0, %v1620
    %v1622 = vpop.f32.mrb[0].mxu0
    %v1623 = vpop.f32.mrb[0].mxu0
    %v1624 = vadd.f32 0.0, %v1623
    %v1625 = vpop.f32.mrb[0].mxu0
    %1626 = vdwg.mxu0
    %v1635 = vunpack.c.l.b16 %v1537
    %v1636 = vunpack.c.l.b16 %v1538
    %v1637 = vunpack.c.l.b16 %v1539
    %v1638 = vunpack.c.l.b16 %v1540
    %v1639 = vunpack.c.l.b16 %v1541
    %v1640 = vunpack.c.l.b16 %v1542
    %v1641 = vunpack.c.l.b16 %v1543
    %v1642 = vunpack.c.l.b16 %v1544
    %v1643 = vpack.c.b16 %v1636, %v1635
    %v1644 = vpack.c.b16 %v1638, %v1637
    %v1645 = vpack.c.b16 %v1640, %v1639
    %v1646 = vpack.c.b16 %v1642, %v1641
    %v1652 = vsel %vm332, %v195, 0
    %v1655 = vsel %vm332, %v196, 0
    %1657 = vmatprep.subr.bf16.mxu0 0
    %1658 = vmatpush1.bf16.msra.mxu0 %v1643
    %1659 = vmatprep.subr.bf16.mxu0 0
    %1660 = vmatpush1.bf16.msra.mxu0 %v1644
    %1661 = vmatprep.subr.bf16.mxu0 0
    %1662 = vmatpush1.bf16.msra.mxu0 %v1645
    %1663 = vmatprep.subr.bf16.mxu0 0
    %1664 = vmatpush1.bf16.msra.mxu0 %v1646
    %1665 = vmatprep.subr.bf16.mxu0 0
    %1666 = vmatpush1.bf16.msra.mxu0 0
    %1667 = vmatprep.subr.bf16.mxu0 0
    %1668 = vmatpush1.bf16.msra.mxu0 0
    %1669 = vmatprep.subr.bf16.mxu0 0
    %1670 = vmatpush1.bf16.msra.mxu0 0
    %1671 = vmatprep.subr.bf16.mxu0 0
    %1672 = vmatpush1.bf16.msra.mxu0 0
    %1673 = vmatprep.subr.bf16.mxu0 0
    %1674 = vmatpush1.bf16.msra.mxu0 0
    %1675 = vmatprep.subr.bf16.mxu0 0
    %1676 = vmatpush1.bf16.msra.mxu0 0
    %1677 = vmatprep.subr.bf16.mxu0 0
    %1678 = vmatpush1.bf16.msra.mxu0 0
    %1679 = vmatprep.subr.bf16.mxu0 0
    %1680 = vmatpush1.bf16.msra.mxu0 0
    %1681 = vmatprep.subr.bf16.mxu0 0
    %1682 = vmatpush1.bf16.msra.mxu0 0
    %1683 = vmatprep.subr.bf16.mxu0 0
    %1684 = vmatpush1.bf16.msra.mxu0 0
    %1685 = vmatprep.subr.bf16.mxu0 0
    %1686 = vmatpush1.bf16.msra.mxu0 0
    %1687 = vmatprep.subr.bf16.mxu0 0
    %1688 = vmatpush1.bf16.msra.mxu0 0
    %1689 = vmatprep.mubr.bf16.mxu0 0
    %1690 = vmatmul.mubr.bf16.gmra.mrb[0].mxu0 %v1652
    %v1691 = vpop.f32.mrb[0].mxu0
    %v1692 = vadd.f32 %v1613, %v1691
    %v1693 = vpop.f32.mrb[0].mxu0
    %v1694 = vpop.f32.mrb[0].mxu0
    %v1695 = vadd.f32 %v1616, %v1694
    %v1696 = vpop.f32.mrb[0].mxu0
    %1697 = vmatprep.mubr.bf16.mxu0 0
    %1698 = vmatmul.mubr.bf16.gmra.mrb[0].mxu0 %v1655
    %v1699 = vpop.f32.mrb[0].mxu0
    %v1700 = vadd.f32 %v1621, %v1699
    %v1701 = vpop.f32.mrb[0].mxu0
    %v1702 = vpop.f32.mrb[0].mxu0
    %v1703 = vadd.f32 %v1624, %v1702
    %v1704 = vpop.f32.mrb[0].mxu0
    %1705 = vdwg.mxu0
    %s1706 = scalar_lea.vmem [#allocation7], 64
    %v1707 = vld [vmem:[%s1706] sm:$0xf]
    %v1708 = vld [vmem:[%s1706 + $0x4] sm:$0xf]
    %v1709 = vld [vmem:[%s1706 + $0x8] sm:$0xf]
    %v1710 = vld [vmem:[%s1706 + $0xc] sm:$0xf]
    %v1711 = vld [vmem:[%s1706 + $0x10] sm:$0xf]
    %v1712 = vld [vmem:[%s1706 + $0x14] sm:$0xf]
    %v1713 = vld [vmem:[%s1706 + $0x18] sm:$0xf]
    %v1714 = vld [vmem:[%s1706 + $0x1c] sm:$0xf]
    %v1723 = vunpack.c.l.b16 %v1707
    %v1724 = vunpack.c.l.b16 %v1708
    %v1725 = vunpack.c.l.b16 %v1709
    %v1726 = vunpack.c.l.b16 %v1710
    %v1727 = vunpack.c.l.b16 %v1711
    %v1728 = vunpack.c.l.b16 %v1712
    %v1729 = vunpack.c.l.b16 %v1713
    %v1730 = vunpack.c.l.b16 %v1714
    %v1731 = vpack.c.b16 %v1724, %v1723
    %v1732 = vpack.c.b16 %v1726, %v1725
    %v1733 = vpack.c.b16 %v1728, %v1727
    %v1734 = vpack.c.b16 %v1730, %v1729
    %1739 = vmatprep.subr.bf16.mxu0 0
    %1740 = vmatpush1.bf16.msra.mxu0 %v1731
    %1741 = vmatprep.subr.bf16.mxu0 0
    %1742 = vmatpush1.bf16.msra.mxu0 %v1732
    %1743 = vmatprep.subr.bf16.mxu0 0
    %1744 = vmatpush1.bf16.msra.mxu0 %v1733
    %1745 = vmatprep.subr.bf16.mxu0 0
    %1746 = vmatpush1.bf16.msra.mxu0 %v1734
    %1747 = vmatprep.subr.bf16.mxu0 0
    %1748 = vmatpush1.bf16.msra.mxu0 0
    %1749 = vmatprep.subr.bf16.mxu0 0
    %1750 = vmatpush1.bf16.msra.mxu0 0
    %1751 = vmatprep.subr.bf16.mxu0 0
    %1752 = vmatpush1.bf16.msra.mxu0 0
    %1753 = vmatprep.subr.bf16.mxu0 0
    %1754 = vmatpush1.bf16.msra.mxu0 0
    %1755 = vmatprep.subr.bf16.mxu0 0
    %1756 = vmatpush1.bf16.msra.mxu0 0
    %1757 = vmatprep.subr.bf16.mxu0 0
    %1758 = vmatpush1.bf16.msra.mxu0 0
    %1759 = vmatprep.subr.bf16.mxu0 0
    %1760 = vmatpush1.bf16.msra.mxu0 0
    %1761 = vmatprep.subr.bf16.mxu0 0
    %1762 = vmatpush1.bf16.msra.mxu0 0
    %1763 = vmatprep.subr.bf16.mxu0 0
    %1764 = vmatpush1.bf16.msra.mxu0 0
    %1765 = vmatprep.subr.bf16.mxu0 0
    %1766 = vmatpush1.bf16.msra.mxu0 0
    %1767 = vmatprep.subr.bf16.mxu0 0
    %1768 = vmatpush1.bf16.msra.mxu0 0
    %1769 = vmatprep.subr.bf16.mxu0 0
    %1770 = vmatpush1.bf16.msra.mxu0 0
    %1771 = vmatprep.mubr.bf16.mxu0 0
    %1772 = vmatmul.mubr.bf16.gmra.mrb[0].mxu0 %v334
    %v1773 = vpop.f32.mrb[0].mxu0
    %v1774 = vadd.f32 0.0, %v1773
    %v1775 = vpop.f32.mrb[0].mxu0
    %v1776 = vpop.f32.mrb[0].mxu0
    %v1777 = vadd.f32 0.0, %v1776
    %v1778 = vpop.f32.mrb[0].mxu0
    %1779 = vmatprep.mubr.bf16.mxu0 0
    %1780 = vmatmul.mubr.bf16.gmra.mrb[0].mxu0 %v337
    %v1781 = vpop.f32.mrb[0].mxu0
    %v1782 = vadd.f32 0.0, %v1781
    %v1783 = vpop.f32.mrb[0].mxu0
    %v1784 = vpop.f32.mrb[0].mxu0
    %v1785 = vadd.f32 0.0, %v1784
    %v1786 = vpop.f32.mrb[0].mxu0
    %1787 = vdwg.mxu0
    %v1788 = vadd.f32 %v1692, %v1774
    %v1789 = vadd.f32 %v1695, %v1777
    %v1790 = vadd.f32 %v1700, %v1782
    %v1791 = vadd.f32 %v1703, %v1785
    %s1792 = scalar_lea.vmem [#allocation7], 96
    %v1793 = vld [vmem:[%s1792] sm:$0xf]
    %v1794 = vld [vmem:[%s1792 + $0x4] sm:$0xf]
    %v1795 = vld [vmem:[%s1792 + $0x8] sm:$0xf]
    %v1796 = vld [vmem:[%s1792 + $0xc] sm:$0xf]
    %v1797 = vld [vmem:[%s1792 + $0x10] sm:$0xf]
    %v1798 = vld [vmem:[%s1792 + $0x14] sm:$0xf]
    %v1799 = vld [vmem:[%s1792 + $0x18] sm:$0xf]
    %v1800 = vld [vmem:[%s1792 + $0x1c] sm:$0xf]
    %v1809 = vunpack.c.l.b16 %v1793
    %v1810 = vunpack.c.l.b16 %v1794
    %v1811 = vunpack.c.l.b16 %v1795
    %v1812 = vunpack.c.l.b16 %v1796
    %v1813 = vunpack.c.l.b16 %v1797
    %v1814 = vunpack.c.l.b16 %v1798
    %v1815 = vunpack.c.l.b16 %v1799
    %v1816 = vunpack.c.l.b16 %v1800
    %v1817 = vpack.c.b16 %v1810, %v1809
    %v1818 = vpack.c.b16 %v1812, %v1811
    %v1819 = vpack.c.b16 %v1814, %v1813
    %v1820 = vpack.c.b16 %v1816, %v1815
    %1825 = vmatprep.subr.bf16.mxu0 0
    %1826 = vmatpush1.bf16.msra.mxu0 %v1817
    %1827 = vmatprep.subr.bf16.mxu0 0
    %1828 = vmatpush1.bf16.msra.mxu0 %v1818
    %1829 = vmatprep.subr.bf16.mxu0 0
    %1830 = vmatpush1.bf16.msra.mxu0 %v1819
    %1831 = vmatprep.subr.bf16.mxu0 0
    %1832 = vmatpush1.bf16.msra.mxu0 %v1820
    %1833 = vmatprep.subr.bf16.mxu0 0
    %1834 = vmatpush1.bf16.msra.mxu0 0
    %1835 = vmatprep.subr.bf16.mxu0 0
    %1836 = vmatpush1.bf16.msra.mxu0 0
    %1837 = vmatprep.subr.bf16.mxu0 0
    %1838 = vmatpush1.bf16.msra.mxu0 0
    %1839 = vmatprep.subr.bf16.mxu0 0
    %1840 = vmatpush1.bf16.msra.mxu0 0
    %1841 = vmatprep.subr.bf16.mxu0 0
    %1842 = vmatpush1.bf16.msra.mxu0 0
    %1843 = vmatprep.subr.bf16.mxu0 0
    %1844 = vmatpush1.bf16.msra.mxu0 0
    %1845 = vmatprep.subr.bf16.mxu0 0
    %1846 = vmatpush1.bf16.msra.mxu0 0
    %1847 = vmatprep.subr.bf16.mxu0 0
    %1848 = vmatpush1.bf16.msra.mxu0 0
    %1849 = vmatprep.subr.bf16.mxu0 0
    %1850 = vmatpush1.bf16.msra.mxu0 0
    %1851 = vmatprep.subr.bf16.mxu0 0
    %1852 = vmatpush1.bf16.msra.mxu0 0
    %1853 = vmatprep.subr.bf16.mxu0 0
    %1854 = vmatpush1.bf16.msra.mxu0 0
    %1855 = vmatprep.subr.bf16.mxu0 0
    %1856 = vmatpush1.bf16.msra.mxu0 0
    %1857 = vmatprep.mubr.bf16.mxu0 0
    %1858 = vmatmul.mubr.bf16.gmra.mrb[0].mxu0 %v541
    %v1859 = vpop.f32.mrb[0].mxu0
    %v1860 = vadd.f32 0.0, %v1859
    %v1861 = vpop.f32.mrb[0].mxu0
    %v1862 = vpop.f32.mrb[0].mxu0
    %v1863 = vadd.f32 0.0, %v1862
    %v1864 = vpop.f32.mrb[0].mxu0
    %1865 = vmatprep.mubr.bf16.mxu0 0
    %1866 = vmatmul.mubr.bf16.gmra.mrb[0].mxu0 %v544
    %v1867 = vpop.f32.mrb[0].mxu0
    %v1868 = vadd.f32 0.0, %v1867
    %v1869 = vpop.f32.mrb[0].mxu0
    %v1870 = vpop.f32.mrb[0].mxu0
    %v1871 = vadd.f32 0.0, %v1870
    %v1872 = vpop.f32.mrb[0].mxu0
    %1873 = vdwg.mxu0
    %v1874 = vadd.f32 %v1788, %v1860
    %v1875 = vadd.f32 %v1789, %v1863
    %v1876 = vadd.f32 %v1790, %v1868
    %v1877 = vadd.f32 %v1791, %v1871
    %s1878 = scalar_lea.vmem [#allocation7], 128
    %v1879 = vld [vmem:[%s1878] sm:$0xf]
    %v1880 = vld [vmem:[%s1878 + $0x4] sm:$0xf]
    %v1881 = vld [vmem:[%s1878 + $0x8] sm:$0xf]
    %v1882 = vld [vmem:[%s1878 + $0xc] sm:$0xf]
    %v1883 = vld [vmem:[%s1878 + $0x10] sm:$0xf]
    %v1884 = vld [vmem:[%s1878 + $0x14] sm:$0xf]
    %v1885 = vld [vmem:[%s1878 + $0x18] sm:$0xf]
    %v1886 = vld [vmem:[%s1878 + $0x1c] sm:$0xf]
    %v1895 = vunpack.c.l.b16 %v1879
    %v1896 = vunpack.c.l.b16 %v1880
    %v1897 = vunpack.c.l.b16 %v1881
    %v1898 = vunpack.c.l.b16 %v1882
    %v1899 = vunpack.c.l.b16 %v1883
    %v1900 = vunpack.c.l.b16 %v1884
    %v1901 = vunpack.c.l.b16 %v1885
    %v1902 = vunpack.c.l.b16 %v1886
    %v1903 = vpack.c.b16 %v1896, %v1895
    %v1904 = vpack.c.b16 %v1898, %v1897
    %v1905 = vpack.c.b16 %v1900, %v1899
    %v1906 = vpack.c.b16 %v1902, %v1901
    %v1912 = vsel %vm332, %v254, 0
    %v1915 = vsel %vm332, %v255, 0
    %1917 = vmatprep.subr.bf16.mxu0 0
    %1918 = vmatpush1.bf16.msra.mxu0 %v1903
    %1919 = vmatprep.subr.bf16.mxu0 0
    %1920 = vmatpush1.bf16.msra.mxu0 %v1904
    %1921 = vmatprep.subr.bf16.mxu0 0
    %1922 = vmatpush1.bf16.msra.mxu0 %v1905
    %1923 = vmatprep.subr.bf16.mxu0 0
    %1924 = vmatpush1.bf16.msra.mxu0 %v1906
    %1925 = vmatprep.subr.bf16.mxu0 0
    %1926 = vmatpush1.bf16.msra.mxu0 0
    %1927 = vmatprep.subr.bf16.mxu0 0
    %1928 = vmatpush1.bf16.msra.mxu0 0
    %1929 = vmatprep.subr.bf16.mxu0 0
    %1930 = vmatpush1.bf16.msra.mxu0 0
    %1931 = vmatprep.subr.bf16.mxu0 0
    %1932 = vmatpush1.bf16.msra.mxu0 0
    %1933 = vmatprep.subr.bf16.mxu0 0
    %1934 = vmatpush1.bf16.msra.mxu0 0
    %1935 = vmatprep.subr.bf16.mxu0 0
    %1936 = vmatpush1.bf16.msra.mxu0 0
    %1937 = vmatprep.subr.bf16.mxu0 0
    %1938 = vmatpush1.bf16.msra.mxu0 0
    %1939 = vmatprep.subr.bf16.mxu0 0
    %1940 = vmatpush1.bf16.msra.mxu0 0
    %1941 = vmatprep.subr.bf16.mxu0 0
    %1942 = vmatpush1.bf16.msra.mxu0 0
    %1943 = vmatprep.subr.bf16.mxu0 0
    %1944 = vmatpush1.bf16.msra.mxu0 0
    %1945 = vmatprep.subr.bf16.mxu0 0
    %1946 = vmatpush1.bf16.msra.mxu0 0
    %1947 = vmatprep.subr.bf16.mxu0 0
    %1948 = vmatpush1.bf16.msra.mxu0 0
    %1949 = vmatprep.mubr.bf16.mxu0 0
    %1950 = vmatmul.mubr.bf16.gmra.mrb[0].mxu0 %v1912
    %v1951 = vpop.f32.mrb[0].mxu0
    %v1952 = vadd.f32 0.0, %v1951
    %v1953 = vpop.f32.mrb[0].mxu0
    %v1954 = vpop.f32.mrb[0].mxu0
    %v1955 = vadd.f32 0.0, %v1954
    %v1956 = vpop.f32.mrb[0].mxu0
    %1957 = vmatprep.mubr.bf16.mxu0 0
    %1958 = vmatmul.mubr.bf16.gmra.mrb[0].mxu0 %v1915
    %v1959 = vpop.f32.mrb[0].mxu0
    %v1960 = vadd.f32 0.0, %v1959
    %v1961 = vpop.f32.mrb[0].mxu0
    %v1962 = vpop.f32.mrb[0].mxu0
    %v1963 = vadd.f32 0.0, %v1962
    %v1964 = vpop.f32.mrb[0].mxu0
    %1965 = vdwg.mxu0
    %v1966 = vadd.f32 %v1874, %v1952
    %v1967 = vadd.f32 %v1875, %v1955
    %v1968 = vadd.f32 %v1876, %v1960
    %v1969 = vadd.f32 %v1877, %v1963
    %v1970 = vld [vmem:[%s8 + $0x2] ss:$0 sm:$0xff]
    %v1971 = vadd.f32 %v1966, %v1970
    %v1972 = vadd.f32 %v1967, %v1970
    %v1973 = vadd.f32 %v1968, %v1970
    %v1974 = vadd.f32 %v1969, %v1970
    %vm1975 = vcmp.gt.f32.partialorder %v1971, 0.0
    %vm1976 = vcmp.gt.f32.partialorder %v1972, 0.0
    %vm1977 = vcmp.gt.f32.partialorder %v1973, 0.0
    %vm1978 = vcmp.gt.f32.partialorder %v1974, 0.0
    %v1979 = vmul.f32 %v1971, 0.3
    %v1980 = vmul.f32 %v1972, 0.3
    %v1981 = vmul.f32 %v1973, 0.3
    %v1982 = vmul.f32 %v1974, 0.3
    %v1983 = vsel %vm1975, %v1971, %v1979
    %v1984 = vsel %vm1976, %v1972, %v1980
    %v1985 = vsel %vm1977, %v1973, %v1981
    %v1986 = vsel %vm1978, %v1974, %v1982
    %v1987 = vrot.slane %v1983, 6
    %v1988 = vrot.slane %v1984, 6
    %v1989 = vrot.slane %v1985, 6
    %v1990 = vrot.slane %v1986, 6
    %v1991 = vsel %vm182, %v1989, %v1990
    %v1992 = vsel %vm182, %v1988, %v1989
    %v1993 = vsel %vm182, %v1987, %v1988
    %v1994 = vsel %vm182, %v1990, %v1987
    %v1995 = vsel %vm187, %v1994, 0.0
    %v1996 = vsel %vm188, %v1993, 0.0
    %v1997 = vsel %vm189, %v1992, 0.0
    %v1998 = vsel %vm190, %v1991, 0.0
    %v1999 = vpack.c.bf16 %v1996, %v1995
    %v2000 = vpack.c.bf16 %v1998, %v1997
    %v2001 = vrot.slane %v1983, 7
    %v2002 = vrot.slane %v1984, 7
    %v2003 = vrot.slane %v1985, 7
    %v2004 = vrot.slane %v1986, 7
    %v2005 = vsel %vm201, %v2003, %v2004
    %v2006 = vsel %vm201, %v2002, %v2003
    %v2007 = vsel %vm201, %v2001, %v2002
    %v2008 = vsel %vm201, %v2004, %v2001
    %v2009 = vsel %vm206, %v2008, 0.0
    %v2010 = vsel %vm207, %v2007, 0.0
    %v2011 = vsel %vm208, %v2006, 0.0
    %v2012 = vsel %vm209, %v2005, 0.0
    %v2013 = vpack.c.bf16 %v2010, %v2009
    %v2014 = vpack.c.bf16 %v2012, %v2011
    %v2015 = vpack.c.bf16 %v1984, %v1983
    %v2016 = vpack.c.bf16 %v1986, %v1985
    %v2017 = vrot.slane %v1983, 1
    %v2018 = vrot.slane %v1984, 1
    %v2019 = vrot.slane %v1985, 1
    %v2020 = vrot.slane %v1986, 1
    %v2021 = vsel %vm222, %v2019, %v2020
    %v2022 = vsel %vm222, %v2018, %v2019
    %v2023 = vsel %vm222, %v2017, %v2018
    %v2024 = vsel %vm222, %v2020, %v2017
    %v2025 = vsel %vm227, %v2023, 0.0
    %v2026 = vsel %vm228, %v2022, 0.0
    %v2027 = vsel %vm229, %v2021, 0.0
    %v2028 = vsel %vm230, %v2024, 0.0
    %v2029 = vpack.c.bf16 %v2026, %v2025
    %v2030 = vpack.c.bf16 %v2028, %v2027
    %v2031 = vrot.slane %v1983, 2
    %v2032 = vrot.slane %v1984, 2
    %v2033 = vrot.slane %v1985, 2
    %v2034 = vrot.slane %v1986, 2
    %v2035 = vsel %vm241, %v2033, %v2034
    %v2036 = vsel %vm241, %v2032, %v2033
    %v2037 = vsel %vm241, %v2031, %v2032
    %v2038 = vsel %vm241, %v2034, %v2031
    %v2039 = vsel %vm246, %v2037, 0.0
    %v2040 = vsel %vm247, %v2036, 0.0
    %v2041 = vsel %vm248, %v2035, 0.0
    %v2042 = vsel %vm249, %v2038, 0.0
    %v2043 = vpack.c.bf16 %v2040, %v2039
    %v2044 = vpack.c.bf16 %v2042, %v2041
    %v2045 = vld [vmem:[%s4] sm:$0xf]
    %v2046 = vld [vmem:[%s4 + $0x4] sm:$0xf]
    %v2047 = vld [vmem:[%s4 + $0x8] sm:$0xf]
    %v2048 = vld [vmem:[%s4 + $0xc] sm:$0xf]
    %v2049 = vld [vmem:[%s4 + $0x10] sm:$0xf]
    %v2050 = vld [vmem:[%s4 + $0x14] sm:$0xf]
    %v2051 = vld [vmem:[%s4 + $0x18] sm:$0xf]
    %v2052 = vld [vmem:[%s4 + $0x1c] sm:$0xf]
    %v2053 = vld [vmem:[%s4 + $0x20] sm:$0xf]
    %v2054 = vld [vmem:[%s4 + $0x24] sm:$0xf]
    %v2055 = vld [vmem:[%s4 + $0x28] sm:$0xf]
    %v2056 = vld [vmem:[%s4 + $0x2c] sm:$0xf]
    %v2057 = vld [vmem:[%s4 + $0x30] sm:$0xf]
    %v2058 = vld [vmem:[%s4 + $0x34] sm:$0xf]
    %v2059 = vld [vmem:[%s4 + $0x38] sm:$0xf]
    %v2060 = vld [vmem:[%s4 + $0x3c] sm:$0xf]
    %s2061 = scalar_lea.vmem %s4, 64
    %v2062 = vld [vmem:[%s2061] sm:$0xf]
    %v2063 = vld [vmem:[%s2061 + $0x4] sm:$0xf]
    %v2064 = vld [vmem:[%s2061 + $0x8] sm:$0xf]
    %v2065 = vld [vmem:[%s2061 + $0xc] sm:$0xf]
    %v2066 = vld [vmem:[%s2061 + $0x10] sm:$0xf]
    %v2067 = vld [vmem:[%s2061 + $0x14] sm:$0xf]
    %v2068 = vld [vmem:[%s2061 + $0x18] sm:$0xf]
    %v2069 = vld [vmem:[%s2061 + $0x1c] sm:$0xf]
    %v2070 = vld [vmem:[%s2061 + $0x20] sm:$0xf]
    %v2071 = vld [vmem:[%s2061 + $0x24] sm:$0xf]
    %v2072 = vld [vmem:[%s2061 + $0x28] sm:$0xf]
    %v2073 = vld [vmem:[%s2061 + $0x2c] sm:$0xf]
    %v2074 = vld [vmem:[%s2061 + $0x30] sm:$0xf]
    %v2075 = vld [vmem:[%s2061 + $0x34] sm:$0xf]
    %v2076 = vld [vmem:[%s2061 + $0x38] sm:$0xf]
    %v2077 = vld [vmem:[%s2061 + $0x3c] sm:$0xf]
    %v2094 = vunpack.c.l.b16 %v2062
    %v2095 = vunpack.c.l.b16 %v2063
    %v2096 = vunpack.c.l.b16 %v2064
    %v2097 = vunpack.c.l.b16 %v2065
    %v2098 = vunpack.c.l.b16 %v2066
    %v2099 = vunpack.c.l.b16 %v2067
    %v2100 = vunpack.c.l.b16 %v2068
    %v2101 = vunpack.c.l.b16 %v2069
    %v2102 = vunpack.c.l.b16 %v2070
    %v2103 = vunpack.c.l.b16 %v2071
    %v2104 = vunpack.c.l.b16 %v2072
    %v2105 = vunpack.c.l.b16 %v2073
    %v2106 = vunpack.c.l.b16 %v2074
    %v2107 = vunpack.c.l.b16 %v2075
    %v2108 = vunpack.c.l.b16 %v2076
    %v2109 = vunpack.c.l.b16 %v2077
    %v2110 = vpack.c.b16 %v2095, %v2094
    %v2111 = vpack.c.b16 %v2097, %v2096
    %v2112 = vpack.c.b16 %v2099, %v2098
    %v2113 = vpack.c.b16 %v2101, %v2100
    %v2114 = vpack.c.b16 %v2103, %v2102
    %v2115 = vpack.c.b16 %v2105, %v2104
    %v2116 = vpack.c.b16 %v2107, %v2106
    %v2117 = vpack.c.b16 %v2109, %v2108
    %2126 = vmatprep.subr.bf16.mxu0 0
    %2127 = vmatpush1.bf16.msra.mxu0 %v2110
    %2128 = vmatprep.subr.bf16.mxu0 0
    %2129 = vmatpush1.bf16.msra.mxu0 %v2111
    %2130 = vmatprep.subr.bf16.mxu0 0
    %2131 = vmatpush1.bf16.msra.mxu0 %v2112
    %2132 = vmatprep.subr.bf16.mxu0 0
    %2133 = vmatpush1.bf16.msra.mxu0 %v2113
    %2134 = vmatprep.subr.bf16.mxu0 0
    %2135 = vmatpush1.bf16.msra.mxu0 %v2114
    %2136 = vmatprep.subr.bf16.mxu0 0
    %2137 = vmatpush1.bf16.msra.mxu0 %v2115
    %2138 = vmatprep.subr.bf16.mxu0 0
    %2139 = vmatpush1.bf16.msra.mxu0 %v2116
    %2140 = vmatprep.subr.bf16.mxu0 0
    %2141 = vmatpush1.bf16.msra.mxu0 %v2117
    %2142 = vmatprep.subr.bf16.mxu0 0
    %2143 = vmatpush1.bf16.msra.mxu0 0
    %2144 = vmatprep.subr.bf16.mxu0 0
    %2145 = vmatpush1.bf16.msra.mxu0 0
    %2146 = vmatprep.subr.bf16.mxu0 0
    %2147 = vmatpush1.bf16.msra.mxu0 0
    %2148 = vmatprep.subr.bf16.mxu0 0
    %2149 = vmatpush1.bf16.msra.mxu0 0
    %2150 = vmatprep.subr.bf16.mxu0 0
    %2151 = vmatpush1.bf16.msra.mxu0 0
    %2152 = vmatprep.subr.bf16.mxu0 0
    %2153 = vmatpush1.bf16.msra.mxu0 0
    %2154 = vmatprep.subr.bf16.mxu0 0
    %2155 = vmatpush1.bf16.msra.mxu0 0
    %2156 = vmatprep.subr.bf16.mxu0 0
    %2157 = vmatpush1.bf16.msra.mxu0 0
    %2158 = vmatprep.mubr.bf16.mxu0 0
    %2159 = vmatmul.mubr.bf16.gmra.mrb[0].mxu0 %v2013
    %v2160 = vpop.f32.mrb[0].mxu0
    %v2161 = vadd.f32 0.0, %v2160
    %v2162 = vpop.f32.mrb[0].mxu0
    %v2163 = vpop.f32.mrb[0].mxu0
    %v2164 = vadd.f32 0.0, %v2163
    %v2165 = vpop.f32.mrb[0].mxu0
    %2166 = vmatprep.mubr.bf16.mxu0 0
    %2167 = vmatmul.mubr.bf16.gmra.mrb[0].mxu0 %v2014
    %v2168 = vpop.f32.mrb[0].mxu0
    %v2169 = vadd.f32 0.0, %v2168
    %v2170 = vpop.f32.mrb[0].mxu0
    %v2171 = vpop.f32.mrb[0].mxu0
    %v2172 = vadd.f32 0.0, %v2171
    %v2173 = vpop.f32.mrb[0].mxu0
    %2174 = vdwg.mxu0
    %v2191 = vunpack.c.l.b16 %v2045
    %v2192 = vunpack.c.l.b16 %v2046
    %v2193 = vunpack.c.l.b16 %v2047
    %v2194 = vunpack.c.l.b16 %v2048
    %v2195 = vunpack.c.l.b16 %v2049
    %v2196 = vunpack.c.l.b16 %v2050
    %v2197 = vunpack.c.l.b16 %v2051
    %v2198 = vunpack.c.l.b16 %v2052
    %v2199 = vunpack.c.l.b16 %v2053
    %v2200 = vunpack.c.l.b16 %v2054
    %v2201 = vunpack.c.l.b16 %v2055
    %v2202 = vunpack.c.l.b16 %v2056
    %v2203 = vunpack.c.l.b16 %v2057
    %v2204 = vunpack.c.l.b16 %v2058
    %v2205 = vunpack.c.l.b16 %v2059
    %v2206 = vunpack.c.l.b16 %v2060
    %v2207 = vpack.c.b16 %v2192, %v2191
    %v2208 = vpack.c.b16 %v2194, %v2193
    %v2209 = vpack.c.b16 %v2196, %v2195
    %v2210 = vpack.c.b16 %v2198, %v2197
    %v2211 = vpack.c.b16 %v2200, %v2199
    %v2212 = vpack.c.b16 %v2202, %v2201
    %v2213 = vpack.c.b16 %v2204, %v2203
    %v2214 = vpack.c.b16 %v2206, %v2205
    %2223 = vmatprep.subr.bf16.mxu0 0
    %2224 = vmatpush1.bf16.msra.mxu0 %v2207
    %2225 = vmatprep.subr.bf16.mxu0 0
    %2226 = vmatpush1.bf16.msra.mxu0 %v2208
    %2227 = vmatprep.subr.bf16.mxu0 0
    %2228 = vmatpush1.bf16.msra.mxu0 %v2209
    %2229 = vmatprep.subr.bf16.mxu0 0
    %2230 = vmatpush1.bf16.msra.mxu0 %v2210
    %2231 = vmatprep.subr.bf16.mxu0 0
    %2232 = vmatpush1.bf16.msra.mxu0 %v2211
    %2233 = vmatprep.subr.bf16.mxu0 0
    %2234 = vmatpush1.bf16.msra.mxu0 %v2212
    %2235 = vmatprep.subr.bf16.mxu0 0
    %2236 = vmatpush1.bf16.msra.mxu0 %v2213
    %2237 = vmatprep.subr.bf16.mxu0 0
    %2238 = vmatpush1.bf16.msra.mxu0 %v2214
    %2239 = vmatprep.subr.bf16.mxu0 0
    %2240 = vmatpush1.bf16.msra.mxu0 0
    %2241 = vmatprep.subr.bf16.mxu0 0
    %2242 = vmatpush1.bf16.msra.mxu0 0
    %2243 = vmatprep.subr.bf16.mxu0 0
    %2244 = vmatpush1.bf16.msra.mxu0 0
    %2245 = vmatprep.subr.bf16.mxu0 0
    %2246 = vmatpush1.bf16.msra.mxu0 0
    %2247 = vmatprep.subr.bf16.mxu0 0
    %2248 = vmatpush1.bf16.msra.mxu0 0
    %2249 = vmatprep.subr.bf16.mxu0 0
    %2250 = vmatpush1.bf16.msra.mxu0 0
    %2251 = vmatprep.subr.bf16.mxu0 0
    %2252 = vmatpush1.bf16.msra.mxu0 0
    %2253 = vmatprep.subr.bf16.mxu0 0
    %2254 = vmatpush1.bf16.msra.mxu0 0
    %2255 = vmatprep.mubr.bf16.mxu0 0
    %2256 = vmatmul.mubr.bf16.gmra.mrb[0].mxu0 %v1999
    %v2257 = vpop.f32.mrb[0].mxu0
    %v2258 = vadd.f32 %v2161, %v2257
    %v2259 = vpop.f32.mrb[0].mxu0
    %v2260 = vpop.f32.mrb[0].mxu0
    %v2261 = vadd.f32 %v2164, %v2260
    %v2262 = vpop.f32.mrb[0].mxu0
    %2263 = vmatprep.mubr.bf16.mxu0 0
    %2264 = vmatmul.mubr.bf16.gmra.mrb[0].mxu0 %v2000
    %v2265 = vpop.f32.mrb[0].mxu0
    %v2266 = vadd.f32 %v2169, %v2265
    %v2267 = vpop.f32.mrb[0].mxu0
    %v2268 = vpop.f32.mrb[0].mxu0
    %v2269 = vadd.f32 %v2172, %v2268
    %v2270 = vpop.f32.mrb[0].mxu0
    %2271 = vdwg.mxu0
    %s2272 = scalar_lea.vmem %s4, 128
    %v2273 = vld [vmem:[%s2272] sm:$0xf]
    %v2274 = vld [vmem:[%s2272 + $0x4] sm:$0xf]
    %v2275 = vld [vmem:[%s2272 + $0x8] sm:$0xf]
    %v2276 = vld [vmem:[%s2272 + $0xc] sm:$0xf]
    %v2277 = vld [vmem:[%s2272 + $0x10] sm:$0xf]
    %v2278 = vld [vmem:[%s2272 + $0x14] sm:$0xf]
    %v2279 = vld [vmem:[%s2272 + $0x18] sm:$0xf]
    %v2280 = vld [vmem:[%s2272 + $0x1c] sm:$0xf]
    %v2281 = vld [vmem:[%s2272 + $0x20] sm:$0xf]
    %v2282 = vld [vmem:[%s2272 + $0x24] sm:$0xf]
    %v2283 = vld [vmem:[%s2272 + $0x28] sm:$0xf]
    %v2284 = vld [vmem:[%s2272 + $0x2c] sm:$0xf]
    %v2285 = vld [vmem:[%s2272 + $0x30] sm:$0xf]
    %v2286 = vld [vmem:[%s2272 + $0x34] sm:$0xf]
    %v2287 = vld [vmem:[%s2272 + $0x38] sm:$0xf]
    %v2288 = vld [vmem:[%s2272 + $0x3c] sm:$0xf]
    %v2305 = vunpack.c.l.b16 %v2273
    %v2306 = vunpack.c.l.b16 %v2274
    %v2307 = vunpack.c.l.b16 %v2275
    %v2308 = vunpack.c.l.b16 %v2276
    %v2309 = vunpack.c.l.b16 %v2277
    %v2310 = vunpack.c.l.b16 %v2278
    %v2311 = vunpack.c.l.b16 %v2279
    %v2312 = vunpack.c.l.b16 %v2280
    %v2313 = vunpack.c.l.b16 %v2281
    %v2314 = vunpack.c.l.b16 %v2282
    %v2315 = vunpack.c.l.b16 %v2283
    %v2316 = vunpack.c.l.b16 %v2284
    %v2317 = vunpack.c.l.b16 %v2285
    %v2318 = vunpack.c.l.b16 %v2286
    %v2319 = vunpack.c.l.b16 %v2287
    %v2320 = vunpack.c.l.b16 %v2288
    %v2321 = vpack.c.b16 %v2306, %v2305
    %v2322 = vpack.c.b16 %v2308, %v2307
    %v2323 = vpack.c.b16 %v2310, %v2309
    %v2324 = vpack.c.b16 %v2312, %v2311
    %v2325 = vpack.c.b16 %v2314, %v2313
    %v2326 = vpack.c.b16 %v2316, %v2315
    %v2327 = vpack.c.b16 %v2318, %v2317
    %v2328 = vpack.c.b16 %v2320, %v2319
    %2337 = vmatprep.subr.bf16.mxu0 0
    %2338 = vmatpush1.bf16.msra.mxu0 %v2321
    %2339 = vmatprep.subr.bf16.mxu0 0
    %2340 = vmatpush1.bf16.msra.mxu0 %v2322
    %2341 = vmatprep.subr.bf16.mxu0 0
    %2342 = vmatpush1.bf16.msra.mxu0 %v2323
    %2343 = vmatprep.subr.bf16.mxu0 0
    %2344 = vmatpush1.bf16.msra.mxu0 %v2324
    %2345 = vmatprep.subr.bf16.mxu0 0
    %2346 = vmatpush1.bf16.msra.mxu0 %v2325
    %2347 = vmatprep.subr.bf16.mxu0 0
    %2348 = vmatpush1.bf16.msra.mxu0 %v2326
    %2349 = vmatprep.subr.bf16.mxu0 0
    %2350 = vmatpush1.bf16.msra.mxu0 %v2327
    %2351 = vmatprep.subr.bf16.mxu0 0
    %2352 = vmatpush1.bf16.msra.mxu0 %v2328
    %2353 = vmatprep.subr.bf16.mxu0 0
    %2354 = vmatpush1.bf16.msra.mxu0 0
    %2355 = vmatprep.subr.bf16.mxu0 0
    %2356 = vmatpush1.bf16.msra.mxu0 0
    %2357 = vmatprep.subr.bf16.mxu0 0
    %2358 = vmatpush1.bf16.msra.mxu0 0
    %2359 = vmatprep.subr.bf16.mxu0 0
    %2360 = vmatpush1.bf16.msra.mxu0 0
    %2361 = vmatprep.subr.bf16.mxu0 0
    %2362 = vmatpush1.bf16.msra.mxu0 0
    %2363 = vmatprep.subr.bf16.mxu0 0
    %2364 = vmatpush1.bf16.msra.mxu0 0
    %2365 = vmatprep.subr.bf16.mxu0 0
    %2366 = vmatpush1.bf16.msra.mxu0 0
    %2367 = vmatprep.subr.bf16.mxu0 0
    %2368 = vmatpush1.bf16.msra.mxu0 0
    %2369 = vmatprep.mubr.bf16.mxu0 0
    %2370 = vmatmul.mubr.bf16.gmra.mrb[0].mxu0 %v2015
    %v2371 = vpop.f32.mrb[0].mxu0
    %v2372 = vadd.f32 0.0, %v2371
    %v2373 = vpop.f32.mrb[0].mxu0
    %v2374 = vpop.f32.mrb[0].mxu0
    %v2375 = vadd.f32 0.0, %v2374
    %v2376 = vpop.f32.mrb[0].mxu0
    %2377 = vmatprep.mubr.bf16.mxu0 0
    %2378 = vmatmul.mubr.bf16.gmra.mrb[0].mxu0 %v2016
    %v2379 = vpop.f32.mrb[0].mxu0
    %v2380 = vadd.f32 0.0, %v2379
    %v2381 = vpop.f32.mrb[0].mxu0
    %v2382 = vpop.f32.mrb[0].mxu0
    %v2383 = vadd.f32 0.0, %v2382
    %v2384 = vpop.f32.mrb[0].mxu0
    %2385 = vdwg.mxu0
    %v2386 = vadd.f32 %v2258, %v2372
    %v2387 = vadd.f32 %v2261, %v2375
    %v2388 = vadd.f32 %v2266, %v2380
    %v2389 = vadd.f32 %v2269, %v2383
    %s2390 = scalar_lea.vmem %s4, 192
    %v2391 = vld [vmem:[%s2390] sm:$0xf]
    %v2392 = vld [vmem:[%s2390 + $0x4] sm:$0xf]
    %v2393 = vld [vmem:[%s2390 + $0x8] sm:$0xf]
    %v2394 = vld [vmem:[%s2390 + $0xc] sm:$0xf]
    %v2395 = vld [vmem:[%s2390 + $0x10] sm:$0xf]
    %v2396 = vld [vmem:[%s2390 + $0x14] sm:$0xf]
    %v2397 = vld [vmem:[%s2390 + $0x18] sm:$0xf]
    %v2398 = vld [vmem:[%s2390 + $0x1c] sm:$0xf]
    %v2399 = vld [vmem:[%s2390 + $0x20] sm:$0xf]
    %v2400 = vld [vmem:[%s2390 + $0x24] sm:$0xf]
    %v2401 = vld [vmem:[%s2390 + $0x28] sm:$0xf]
    %v2402 = vld [vmem:[%s2390 + $0x2c] sm:$0xf]
    %v2403 = vld [vmem:[%s2390 + $0x30] sm:$0xf]
    %v2404 = vld [vmem:[%s2390 + $0x34] sm:$0xf]
    %v2405 = vld [vmem:[%s2390 + $0x38] sm:$0xf]
    %v2406 = vld [vmem:[%s2390 + $0x3c] sm:$0xf]
    %v2423 = vunpack.c.l.b16 %v2391
    %v2424 = vunpack.c.l.b16 %v2392
    %v2425 = vunpack.c.l.b16 %v2393
    %v2426 = vunpack.c.l.b16 %v2394
    %v2427 = vunpack.c.l.b16 %v2395
    %v2428 = vunpack.c.l.b16 %v2396
    %v2429 = vunpack.c.l.b16 %v2397
    %v2430 = vunpack.c.l.b16 %v2398
    %v2431 = vunpack.c.l.b16 %v2399
    %v2432 = vunpack.c.l.b16 %v2400
    %v2433 = vunpack.c.l.b16 %v2401
    %v2434 = vunpack.c.l.b16 %v2402
    %v2435 = vunpack.c.l.b16 %v2403
    %v2436 = vunpack.c.l.b16 %v2404
    %v2437 = vunpack.c.l.b16 %v2405
    %v2438 = vunpack.c.l.b16 %v2406
    %v2439 = vpack.c.b16 %v2424, %v2423
    %v2440 = vpack.c.b16 %v2426, %v2425
    %v2441 = vpack.c.b16 %v2428, %v2427
    %v2442 = vpack.c.b16 %v2430, %v2429
    %v2443 = vpack.c.b16 %v2432, %v2431
    %v2444 = vpack.c.b16 %v2434, %v2433
    %v2445 = vpack.c.b16 %v2436, %v2435
    %v2446 = vpack.c.b16 %v2438, %v2437
    %2455 = vmatprep.subr.bf16.mxu0 0
    %2456 = vmatpush1.bf16.msra.mxu0 %v2439
    %2457 = vmatprep.subr.bf16.mxu0 0
    %2458 = vmatpush1.bf16.msra.mxu0 %v2440
    %2459 = vmatprep.subr.bf16.mxu0 0
    %2460 = vmatpush1.bf16.msra.mxu0 %v2441
    %2461 = vmatprep.subr.bf16.mxu0 0
    %2462 = vmatpush1.bf16.msra.mxu0 %v2442
    %2463 = vmatprep.subr.bf16.mxu0 0
    %2464 = vmatpush1.bf16.msra.mxu0 %v2443
    %2465 = vmatprep.subr.bf16.mxu0 0
    %2466 = vmatpush1.bf16.msra.mxu0 %v2444
    %2467 = vmatprep.subr.bf16.mxu0 0
    %2468 = vmatpush1.bf16.msra.mxu0 %v2445
    %2469 = vmatprep.subr.bf16.mxu0 0
    %2470 = vmatpush1.bf16.msra.mxu0 %v2446
    %2471 = vmatprep.subr.bf16.mxu0 0
    %2472 = vmatpush1.bf16.msra.mxu0 0
    %2473 = vmatprep.subr.bf16.mxu0 0
    %2474 = vmatpush1.bf16.msra.mxu0 0
    %2475 = vmatprep.subr.bf16.mxu0 0
    %2476 = vmatpush1.bf16.msra.mxu0 0
    %2477 = vmatprep.subr.bf16.mxu0 0
    %2478 = vmatpush1.bf16.msra.mxu0 0
    %2479 = vmatprep.subr.bf16.mxu0 0
    %2480 = vmatpush1.bf16.msra.mxu0 0
    %2481 = vmatprep.subr.bf16.mxu0 0
    %2482 = vmatpush1.bf16.msra.mxu0 0
    %2483 = vmatprep.subr.bf16.mxu0 0
    %2484 = vmatpush1.bf16.msra.mxu0 0
    %2485 = vmatprep.subr.bf16.mxu0 0
    %2486 = vmatpush1.bf16.msra.mxu0 0
    %2487 = vmatprep.mubr.bf16.mxu0 0
    %2488 = vmatmul.mubr.bf16.gmra.mrb[0].mxu0 %v2029
    %v2489 = vpop.f32.mrb[0].mxu0
    %v2490 = vadd.f32 0.0, %v2489
    %v2491 = vpop.f32.mrb[0].mxu0
    %v2492 = vpop.f32.mrb[0].mxu0
    %v2493 = vadd.f32 0.0, %v2492
    %v2494 = vpop.f32.mrb[0].mxu0
    %2495 = vmatprep.mubr.bf16.mxu0 0
    %2496 = vmatmul.mubr.bf16.gmra.mrb[0].mxu0 %v2030
    %v2497 = vpop.f32.mrb[0].mxu0
    %v2498 = vadd.f32 0.0, %v2497
    %v2499 = vpop.f32.mrb[0].mxu0
    %v2500 = vpop.f32.mrb[0].mxu0
    %v2501 = vadd.f32 0.0, %v2500
    %v2502 = vpop.f32.mrb[0].mxu0
    %2503 = vdwg.mxu0
    %v2504 = vadd.f32 %v2386, %v2490
    %v2505 = vadd.f32 %v2387, %v2493
    %v2506 = vadd.f32 %v2388, %v2498
    %v2507 = vadd.f32 %v2389, %v2501
    %s2508 = scalar_lea.vmem %s4, 256
    %v2509 = vld [vmem:[%s2508] sm:$0xf]
    %v2510 = vld [vmem:[%s2508 + $0x4] sm:$0xf]
    %v2511 = vld [vmem:[%s2508 + $0x8] sm:$0xf]
    %v2512 = vld [vmem:[%s2508 + $0xc] sm:$0xf]
    %v2513 = vld [vmem:[%s2508 + $0x10] sm:$0xf]
    %v2514 = vld [vmem:[%s2508 + $0x14] sm:$0xf]
    %v2515 = vld [vmem:[%s2508 + $0x18] sm:$0xf]
    %v2516 = vld [vmem:[%s2508 + $0x1c] sm:$0xf]
    %v2517 = vld [vmem:[%s2508 + $0x20] sm:$0xf]
    %v2518 = vld [vmem:[%s2508 + $0x24] sm:$0xf]
    %v2519 = vld [vmem:[%s2508 + $0x28] sm:$0xf]
    %v2520 = vld [vmem:[%s2508 + $0x2c] sm:$0xf]
    %v2521 = vld [vmem:[%s2508 + $0x30] sm:$0xf]
    %v2522 = vld [vmem:[%s2508 + $0x34] sm:$0xf]
    %v2523 = vld [vmem:[%s2508 + $0x38] sm:$0xf]
    %v2524 = vld [vmem:[%s2508 + $0x3c] sm:$0xf]
    %v2541 = vunpack.c.l.b16 %v2509
    %v2542 = vunpack.c.l.b16 %v2510
    %v2543 = vunpack.c.l.b16 %v2511
    %v2544 = vunpack.c.l.b16 %v2512
    %v2545 = vunpack.c.l.b16 %v2513
    %v2546 = vunpack.c.l.b16 %v2514
    %v2547 = vunpack.c.l.b16 %v2515
    %v2548 = vunpack.c.l.b16 %v2516
    %v2549 = vunpack.c.l.b16 %v2517
    %v2550 = vunpack.c.l.b16 %v2518
    %v2551 = vunpack.c.l.b16 %v2519
    %v2552 = vunpack.c.l.b16 %v2520
    %v2553 = vunpack.c.l.b16 %v2521
    %v2554 = vunpack.c.l.b16 %v2522
    %v2555 = vunpack.c.l.b16 %v2523
    %v2556 = vunpack.c.l.b16 %v2524
    %v2557 = vpack.c.b16 %v2542, %v2541
    %v2558 = vpack.c.b16 %v2544, %v2543
    %v2559 = vpack.c.b16 %v2546, %v2545
    %v2560 = vpack.c.b16 %v2548, %v2547
    %v2561 = vpack.c.b16 %v2550, %v2549
    %v2562 = vpack.c.b16 %v2552, %v2551
    %v2563 = vpack.c.b16 %v2554, %v2553
    %v2564 = vpack.c.b16 %v2556, %v2555
    %2573 = vmatprep.subr.bf16.mxu0 0
    %2574 = vmatpush1.bf16.msra.mxu0 %v2557
    %2575 = vmatprep.subr.bf16.mxu0 0
    %2576 = vmatpush1.bf16.msra.mxu0 %v2558
    %2577 = vmatprep.subr.bf16.mxu0 0
    %2578 = vmatpush1.bf16.msra.mxu0 %v2559
    %2579 = vmatprep.subr.bf16.mxu0 0
    %2580 = vmatpush1.bf16.msra.mxu0 %v2560
    %2581 = vmatprep.subr.bf16.mxu0 0
    %2582 = vmatpush1.bf16.msra.mxu0 %v2561
    %2583 = vmatprep.subr.bf16.mxu0 0
    %2584 = vmatpush1.bf16.msra.mxu0 %v2562
    %2585 = vmatprep.subr.bf16.mxu0 0
    %2586 = vmatpush1.bf16.msra.mxu0 %v2563
    %2587 = vmatprep.subr.bf16.mxu0 0
    %2588 = vmatpush1.bf16.msra.mxu0 %v2564
    %2589 = vmatprep.subr.bf16.mxu0 0
    %2590 = vmatpush1.bf16.msra.mxu0 0
    %2591 = vmatprep.subr.bf16.mxu0 0
    %2592 = vmatpush1.bf16.msra.mxu0 0
    %2593 = vmatprep.subr.bf16.mxu0 0
    %2594 = vmatpush1.bf16.msra.mxu0 0
    %2595 = vmatprep.subr.bf16.mxu0 0
    %2596 = vmatpush1.bf16.msra.mxu0 0
    %2597 = vmatprep.subr.bf16.mxu0 0
    %2598 = vmatpush1.bf16.msra.mxu0 0
    %2599 = vmatprep.subr.bf16.mxu0 0
    %2600 = vmatpush1.bf16.msra.mxu0 0
    %2601 = vmatprep.subr.bf16.mxu0 0
    %2602 = vmatpush1.bf16.msra.mxu0 0
    %2603 = vmatprep.subr.bf16.mxu0 0
    %2604 = vmatpush1.bf16.msra.mxu0 0
    %2605 = vmatprep.mubr.bf16.mxu0 0
    %2606 = vmatmul.mubr.bf16.gmra.mrb[0].mxu0 %v2043
    %v2607 = vpop.f32.mrb[0].mxu0
    %v2608 = vadd.f32 0.0, %v2607
    %v2609 = vpop.f32.mrb[0].mxu0
    %v2610 = vpop.f32.mrb[0].mxu0
    %v2611 = vadd.f32 0.0, %v2610
    %v2612 = vpop.f32.mrb[0].mxu0
    %2613 = vmatprep.mubr.bf16.mxu0 0
    %2614 = vmatmul.mubr.bf16.gmra.mrb[0].mxu0 %v2044
    %v2615 = vpop.f32.mrb[0].mxu0
    %v2616 = vadd.f32 0.0, %v2615
    %v2617 = vpop.f32.mrb[0].mxu0
    %v2618 = vpop.f32.mrb[0].mxu0
    %v2619 = vadd.f32 0.0, %v2618
    %v2620 = vpop.f32.mrb[0].mxu0
    %2621 = vdwg.mxu0
    %v2622 = vadd.f32 %v2504, %v2608
    %v2623 = vadd.f32 %v2505, %v2611
    %v2624 = vadd.f32 %v2506, %v2616
    %v2625 = vadd.f32 %v2507, %v2619
    %v2626 = vld [vmem:[%s8 + $0x3] ss:$0 sm:$0xff]
    %v2627 = vadd.f32 %v2622, %v2626
    %v2628 = vadd.f32 %v2623, %v2626
    %v2629 = vadd.f32 %v2624, %v2626
    %v2630 = vadd.f32 %v2625, %v2626
    %vm2631 = vcmp.gt.f32.partialorder %v2627, 0.0
    %vm2632 = vcmp.gt.f32.partialorder %v2628, 0.0
    %vm2633 = vcmp.gt.f32.partialorder %v2629, 0.0
    %vm2634 = vcmp.gt.f32.partialorder %v2630, 0.0
    %v2635 = vmul.f32 %v2627, 0.3
    %v2636 = vmul.f32 %v2628, 0.3
    %v2637 = vmul.f32 %v2629, 0.3
    %v2638 = vmul.f32 %v2630, 0.3
    %v2639 = vsel %vm2631, %v2627, %v2635
    %v2640 = vsel %vm2632, %v2628, %v2636
    %v2641 = vsel %vm2633, %v2629, %v2637
    %v2642 = vsel %vm2634, %v2630, %v2638
    %v2643 = vpack.c.bf16 %v2640, %v2639
    %v2644 = vpack.c.bf16 %v2642, %v2641
    %v2645 = vld [vmem:[%s7 + $0x80] sm:$0xf]
    %v2646 = vld [vmem:[%s7 + $0x84] sm:$0xf]
    %v2647 = vld [vmem:[%s7 + $0x88] sm:$0xf]
    %v2648 = vld [vmem:[%s7 + $0x8c] sm:$0xf]
    %v2649 = vld [vmem:[%s7 + $0x90] sm:$0xf]
    %v2650 = vld [vmem:[%s7 + $0x94] sm:$0xf]
    %v2651 = vld [vmem:[%s7 + $0x98] sm:$0xf]
    %v2652 = vld [vmem:[%s7 + $0x9c] sm:$0xf]
    %v2653 = vld [vmem:[%s7 + $0xa0] sm:$0xf]
    %v2654 = vld [vmem:[%s7 + $0xa4] sm:$0xf]
    %v2655 = vld [vmem:[%s7 + $0xa8] sm:$0xf]
    %v2656 = vld [vmem:[%s7 + $0xac] sm:$0xf]
    %v2657 = vld [vmem:[%s7 + $0xb0] sm:$0xf]
    %v2658 = vld [vmem:[%s7 + $0xb4] sm:$0xf]
    %v2659 = vld [vmem:[%s7 + $0xb8] sm:$0xf]
    %v2660 = vld [vmem:[%s7 + $0xbc] sm:$0xf]
    %v2677 = vunpack.c.l.b16 %v2645
    %v2678 = vunpack.c.l.b16 %v2646
    %v2679 = vunpack.c.l.b16 %v2647
    %v2680 = vunpack.c.l.b16 %v2648
    %v2681 = vunpack.c.l.b16 %v2649
    %v2682 = vunpack.c.l.b16 %v2650
    %v2683 = vunpack.c.l.b16 %v2651
    %v2684 = vunpack.c.l.b16 %v2652
    %v2685 = vunpack.c.l.b16 %v2653
    %v2686 = vunpack.c.l.b16 %v2654
    %v2687 = vunpack.c.l.b16 %v2655
    %v2688 = vunpack.c.l.b16 %v2656
    %v2689 = vunpack.c.l.b16 %v2657
    %v2690 = vunpack.c.l.b16 %v2658
    %v2691 = vunpack.c.l.b16 %v2659
    %v2692 = vunpack.c.l.b16 %v2660
    %v2693 = vpack.c.b16 %v2678, %v2677
    %v2694 = vpack.c.b16 %v2680, %v2679
    %v2695 = vpack.c.b16 %v2682, %v2681
    %v2696 = vpack.c.b16 %v2684, %v2683
    %v2697 = vpack.c.b16 %v2686, %v2685
    %v2698 = vpack.c.b16 %v2688, %v2687
    %v2699 = vpack.c.b16 %v2690, %v2689
    %v2700 = vpack.c.b16 %v2692, %v2691
    %2709 = vmatprep.subr.bf16.mxu0 0
    %2710 = vmatpush1.bf16.msra.mxu0 %v2693
    %2711 = vmatprep.subr.bf16.mxu0 0
    %2712 = vmatpush1.bf16.msra.mxu0 %v2694
    %2713 = vmatprep.subr.bf16.mxu0 0
    %2714 = vmatpush1.bf16.msra.mxu0 %v2695
    %2715 = vmatprep.subr.bf16.mxu0 0
    %2716 = vmatpush1.bf16.msra.mxu0 %v2696
    %2717 = vmatprep.subr.bf16.mxu0 0
    %2718 = vmatpush1.bf16.msra.mxu0 %v2697
    %2719 = vmatprep.subr.bf16.mxu0 0
    %2720 = vmatpush1.bf16.msra.mxu0 %v2698
    %2721 = vmatprep.subr.bf16.mxu0 0
    %2722 = vmatpush1.bf16.msra.mxu0 %v2699
    %2723 = vmatprep.subr.bf16.mxu0 0
    %2724 = vmatpush1.bf16.msra.mxu0 %v2700
    %2725 = vmatprep.subr.bf16.mxu0 0
    %2726 = vmatpush1.bf16.msra.mxu0 0
    %2727 = vmatprep.subr.bf16.mxu0 0
    %2728 = vmatpush1.bf16.msra.mxu0 0
    %2729 = vmatprep.subr.bf16.mxu0 0
    %2730 = vmatpush1.bf16.msra.mxu0 0
    %2731 = vmatprep.subr.bf16.mxu0 0
    %2732 = vmatpush1.bf16.msra.mxu0 0
    %2733 = vmatprep.subr.bf16.mxu0 0
    %2734 = vmatpush1.bf16.msra.mxu0 0
    %2735 = vmatprep.subr.bf16.mxu0 0
    %2736 = vmatpush1.bf16.msra.mxu0 0
    %2737 = vmatprep.subr.bf16.mxu0 0
    %2738 = vmatpush1.bf16.msra.mxu0 0
    %2739 = vmatprep.subr.bf16.mxu0 0
    %2740 = vmatpush1.bf16.msra.mxu0 0
    %2741 = vmatprep.mubr.bf16.mxu0 0
    %2742 = vmatmul.mubr.bf16.gmra.mrb[0].mxu0 %v2643
    %v2743 = vpop.f32.mrb[0].mxu0
    %v2744 = vadd.f32 0.0, %v2743
    %v2745 = vpop.f32.mrb[0].mxu0
    %v2746 = vpop.f32.mrb[0].mxu0
    %v2747 = vadd.f32 0.0, %v2746
    %v2748 = vpop.f32.mrb[0].mxu0
    %2749 = vmatprep.mubr.bf16.mxu0 0
    %2750 = vmatmul.mubr.bf16.gmra.mrb[0].mxu0 %v2644
    %v2751 = vpop.f32.mrb[0].mxu0
    %v2752 = vadd.f32 0.0, %v2751
    %v2753 = vpop.f32.mrb[0].mxu0
    %v2754 = vpop.f32.mrb[0].mxu0
    %v2755 = vadd.f32 0.0, %v2754
    %v2756 = vpop.f32.mrb[0].mxu0
    %2757 = vdwg.mxu0
    %v2790 = vunpack.c.l.b16 %v1505
    %v2791 = vunpack.c.l.b16 %v1506
    %v2792 = vunpack.c.l.b16 %v1507
    %v2793 = vunpack.c.l.b16 %v1508
    %v2794 = vunpack.c.l.b16 %v1509
    %v2795 = vunpack.c.l.b16 %v1510
    %v2796 = vunpack.c.l.b16 %v1511
    %v2797 = vunpack.c.l.b16 %v1512
    %v2798 = vunpack.c.l.b16 %v1513
    %v2799 = vunpack.c.l.b16 %v1514
    %v2800 = vunpack.c.l.b16 %v1515
    %v2801 = vunpack.c.l.b16 %v1516
    %v2802 = vunpack.c.l.b16 %v1517
    %v2803 = vunpack.c.l.b16 %v1518
    %v2804 = vunpack.c.l.b16 %v1519
    %v2805 = vunpack.c.l.b16 %v1520
    %v2806 = vunpack.c.l.b16 %v1521
    %v2807 = vunpack.c.l.b16 %v1522
    %v2808 = vunpack.c.l.b16 %v1523
    %v2809 = vunpack.c.l.b16 %v1524
    %v2810 = vunpack.c.l.b16 %v1525
    %v2811 = vunpack.c.l.b16 %v1526
    %v2812 = vunpack.c.l.b16 %v1527
    %v2813 = vunpack.c.l.b16 %v1528
    %v2814 = vunpack.c.l.b16 %v1529
    %v2815 = vunpack.c.l.b16 %v1530
    %v2816 = vunpack.c.l.b16 %v1531
    %v2817 = vunpack.c.l.b16 %v1532
    %v2818 = vunpack.c.l.b16 %v1533
    %v2819 = vunpack.c.l.b16 %v1534
    %v2820 = vunpack.c.l.b16 %v1535
    %v2821 = vunpack.c.l.b16 %v1536
    %v2822 = vpack.c.b16 %v2791, %v2790
    %v2823 = vpack.c.b16 %v2793, %v2792
    %v2824 = vpack.c.b16 %v2795, %v2794
    %v2825 = vpack.c.b16 %v2797, %v2796
    %v2826 = vpack.c.b16 %v2799, %v2798
    %v2827 = vpack.c.b16 %v2801, %v2800
    %v2828 = vpack.c.b16 %v2803, %v2802
    %v2829 = vpack.c.b16 %v2805, %v2804
    %v2830 = vpack.c.b16 %v2807, %v2806
    %v2831 = vpack.c.b16 %v2809, %v2808
    %v2832 = vpack.c.b16 %v2811, %v2810
    %v2833 = vpack.c.b16 %v2813, %v2812
    %v2834 = vpack.c.b16 %v2815, %v2814
    %v2835 = vpack.c.b16 %v2817, %v2816
    %v2836 = vpack.c.b16 %v2819, %v2818
    %v2837 = vpack.c.b16 %v2821, %v2820
    %2854 = vmatprep.subr.bf16.mxu0 0
    %2855 = vmatpush1.bf16.msra.mxu0 %v2822
    %2856 = vmatprep.subr.bf16.mxu0 0
    %2857 = vmatpush1.bf16.msra.mxu0 %v2823
    %2858 = vmatprep.subr.bf16.mxu0 0
    %2859 = vmatpush1.bf16.msra.mxu0 %v2824
    %2860 = vmatprep.subr.bf16.mxu0 0
    %2861 = vmatpush1.bf16.msra.mxu0 %v2825
    %2862 = vmatprep.subr.bf16.mxu0 0
    %2863 = vmatpush1.bf16.msra.mxu0 %v2826
    %2864 = vmatprep.subr.bf16.mxu0 0
    %2865 = vmatpush1.bf16.msra.mxu0 %v2827
    %2866 = vmatprep.subr.bf16.mxu0 0
    %2867 = vmatpush1.bf16.msra.mxu0 %v2828
    %2868 = vmatprep.subr.bf16.mxu0 0
    %2869 = vmatpush1.bf16.msra.mxu0 %v2829
    %2870 = vmatprep.subr.bf16.mxu0 0
    %2871 = vmatpush1.bf16.msra.mxu0 %v2830
    %2872 = vmatprep.subr.bf16.mxu0 0
    %2873 = vmatpush1.bf16.msra.mxu0 %v2831
    %2874 = vmatprep.subr.bf16.mxu0 0
    %2875 = vmatpush1.bf16.msra.mxu0 %v2832
    %2876 = vmatprep.subr.bf16.mxu0 0
    %2877 = vmatpush1.bf16.msra.mxu0 %v2833
    %2878 = vmatprep.subr.bf16.mxu0 0
    %2879 = vmatpush1.bf16.msra.mxu0 %v2834
    %2880 = vmatprep.subr.bf16.mxu0 0
    %2881 = vmatpush1.bf16.msra.mxu0 %v2835
    %2882 = vmatprep.subr.bf16.mxu0 0
    %2883 = vmatpush1.bf16.msra.mxu0 %v2836
    %2884 = vmatprep.subr.bf16.mxu0 0
    %2885 = vmatpush1.bf16.msra.mxu0 %v2837
    %2886 = vmatprep.mubr.bf16.mxu0 %v1502
    %2887 = vmatmul.mubr.bf16.gmra.mrb[0].mxu0 %v1501
    %v2888 = vpop.f32.mrb[0].mxu0
    %v2889 = vadd.f32 %v2744, %v2888
    %v2890 = vpop.f32.mrb[0].mxu0
    %v2891 = vpop.f32.mrb[0].mxu0
    %v2892 = vadd.f32 %v2747, %v2891
    %v2893 = vpop.f32.mrb[0].mxu0
    %2894 = vmatprep.mubr.bf16.mxu0 %v1504
    %2895 = vmatmul.mubr.bf16.gmra.mrb[0].mxu0 %v1503
    %v2896 = vpop.f32.mrb[0].mxu0
    %v2897 = vadd.f32 %v2752, %v2896
    %v2898 = vpop.f32.mrb[0].mxu0
    %v2899 = vpop.f32.mrb[0].mxu0
    %v2900 = vadd.f32 %v2755, %v2899
    %v2901 = vpop.f32.mrb[0].mxu0
    %2902 = vdwg.mxu0
    %v2903 = vld [vmem:[#allocation8] sm:$0xf]
    %v2904 = vld [vmem:[#allocation8 + $0x4] sm:$0xf]
    %v2905 = vld [vmem:[#allocation8 + $0x8] sm:$0xf]
    %v2906 = vld [vmem:[#allocation8 + $0xc] sm:$0xf]
    %v2907 = vld [vmem:[#allocation8 + $0x10] sm:$0xf]
    %v2908 = vld [vmem:[#allocation8 + $0x14] sm:$0xf]
    %v2909 = vld [vmem:[#allocation8 + $0x18] sm:$0xf]
    %v2910 = vld [vmem:[#allocation8 + $0x1c] sm:$0xf]
    %s2911 = scalar_lea.vmem [#allocation8], 32
    %v2912 = vld [vmem:[%s2911] sm:$0xf]
    %v2913 = vld [vmem:[%s2911 + $0x4] sm:$0xf]
    %v2914 = vld [vmem:[%s2911 + $0x8] sm:$0xf]
    %v2915 = vld [vmem:[%s2911 + $0xc] sm:$0xf]
    %v2916 = vld [vmem:[%s2911 + $0x10] sm:$0xf]
    %v2917 = vld [vmem:[%s2911 + $0x14] sm:$0xf]
    %v2918 = vld [vmem:[%s2911 + $0x18] sm:$0xf]
    %v2919 = vld [vmem:[%s2911 + $0x1c] sm:$0xf]
    %v2928 = vunpack.c.l.b16 %v2912
    %v2929 = vunpack.c.l.b16 %v2913
    %v2930 = vunpack.c.l.b16 %v2914
    %v2931 = vunpack.c.l.b16 %v2915
    %v2932 = vunpack.c.l.b16 %v2916
    %v2933 = vunpack.c.l.b16 %v2917
    %v2934 = vunpack.c.l.b16 %v2918
    %v2935 = vunpack.c.l.b16 %v2919
    %v2936 = vpack.c.b16 %v2929, %v2928
    %v2937 = vpack.c.b16 %v2931, %v2930
    %v2938 = vpack.c.b16 %v2933, %v2932
    %v2939 = vpack.c.b16 %v2935, %v2934
    %2944 = vmatprep.subr.bf16.mxu0 0
    %2945 = vmatpush1.bf16.msra.mxu0 %v2936
    %2946 = vmatprep.subr.bf16.mxu0 0
    %2947 = vmatpush1.bf16.msra.mxu0 %v2937
    %2948 = vmatprep.subr.bf16.mxu0 0
    %2949 = vmatpush1.bf16.msra.mxu0 %v2938
    %2950 = vmatprep.subr.bf16.mxu0 0
    %2951 = vmatpush1.bf16.msra.mxu0 %v2939
    %2952 = vmatprep.subr.bf16.mxu0 0
    %2953 = vmatpush1.bf16.msra.mxu0 0
    %2954 = vmatprep.subr.bf16.mxu0 0
    %2955 = vmatpush1.bf16.msra.mxu0 0
    %2956 = vmatprep.subr.bf16.mxu0 0
    %2957 = vmatpush1.bf16.msra.mxu0 0
    %2958 = vmatprep.subr.bf16.mxu0 0
    %2959 = vmatpush1.bf16.msra.mxu0 0
    %2960 = vmatprep.subr.bf16.mxu0 0
    %2961 = vmatpush1.bf16.msra.mxu0 0
    %2962 = vmatprep.subr.bf16.mxu0 0
    %2963 = vmatpush1.bf16.msra.mxu0 0
    %2964 = vmatprep.subr.bf16.mxu0 0
    %2965 = vmatpush1.bf16.msra.mxu0 0
    %2966 = vmatprep.subr.bf16.mxu0 0
    %2967 = vmatpush1.bf16.msra.mxu0 0
    %2968 = vmatprep.subr.bf16.mxu0 0
    %2969 = vmatpush1.bf16.msra.mxu0 0
    %2970 = vmatprep.subr.bf16.mxu0 0
    %2971 = vmatpush1.bf16.msra.mxu0 0
    %2972 = vmatprep.subr.bf16.mxu0 0
    %2973 = vmatpush1.bf16.msra.mxu0 0
    %2974 = vmatprep.subr.bf16.mxu0 0
    %2975 = vmatpush1.bf16.msra.mxu0 0
    %2976 = vmatprep.mubr.bf16.mxu0 0
    %2977 = vmatmul.mubr.bf16.gmra.mrb[0].mxu0 %v1652
    %v2978 = vpop.f32.mrb[0].mxu0
    %v2979 = vadd.f32 0.0, %v2978
    %v2980 = vpop.f32.mrb[0].mxu0
    %v2981 = vpop.f32.mrb[0].mxu0
    %v2982 = vadd.f32 0.0, %v2981
    %v2983 = vpop.f32.mrb[0].mxu0
    %2984 = vmatprep.mubr.bf16.mxu0 0
    %2985 = vmatmul.mubr.bf16.gmra.mrb[0].mxu0 %v1655
    %v2986 = vpop.f32.mrb[0].mxu0
    %v2987 = vadd.f32 0.0, %v2986
    %v2988 = vpop.f32.mrb[0].mxu0
    %v2989 = vpop.f32.mrb[0].mxu0
    %v2990 = vadd.f32 0.0, %v2989
    %v2991 = vpop.f32.mrb[0].mxu0
    %2992 = vdwg.mxu0
    %v3001 = vunpack.c.l.b16 %v2903
    %v3002 = vunpack.c.l.b16 %v2904
    %v3003 = vunpack.c.l.b16 %v2905
    %v3004 = vunpack.c.l.b16 %v2906
    %v3005 = vunpack.c.l.b16 %v2907
    %v3006 = vunpack.c.l.b16 %v2908
    %v3007 = vunpack.c.l.b16 %v2909
    %v3008 = vunpack.c.l.b16 %v2910
    %v3009 = vpack.c.b16 %v3002, %v3001
    %v3010 = vpack.c.b16 %v3004, %v3003
    %v3011 = vpack.c.b16 %v3006, %v3005
    %v3012 = vpack.c.b16 %v3008, %v3007
    %v3018 = vsel %vm332, %v176, 0
    %v3021 = vsel %vm332, %v177, 0
    %3023 = vmatprep.subr.bf16.mxu0 0
    %3024 = vmatpush1.bf16.msra.mxu0 %v3009
    %3025 = vmatprep.subr.bf16.mxu0 0
    %3026 = vmatpush1.bf16.msra.mxu0 %v3010
    %3027 = vmatprep.subr.bf16.mxu0 0
    %3028 = vmatpush1.bf16.msra.mxu0 %v3011
    %3029 = vmatprep.subr.bf16.mxu0 0
    %3030 = vmatpush1.bf16.msra.mxu0 %v3012
    %3031 = vmatprep.subr.bf16.mxu0 0
    %3032 = vmatpush1.bf16.msra.mxu0 0
    %3033 = vmatprep.subr.bf16.mxu0 0
    %3034 = vmatpush1.bf16.msra.mxu0 0
    %3035 = vmatprep.subr.bf16.mxu0 0
    %3036 = vmatpush1.bf16.msra.mxu0 0
    %3037 = vmatprep.subr.bf16.mxu0 0
    %3038 = vmatpush1.bf16.msra.mxu0 0
    %3039 = vmatprep.subr.bf16.mxu0 0
    %3040 = vmatpush1.bf16.msra.mxu0 0
    %3041 = vmatprep.subr.bf16.mxu0 0
    %3042 = vmatpush1.bf16.msra.mxu0 0
    %3043 = vmatprep.subr.bf16.mxu0 0
    %3044 = vmatpush1.bf16.msra.mxu0 0
    %3045 = vmatprep.subr.bf16.mxu0 0
    %3046 = vmatpush1.bf16.msra.mxu0 0
    %3047 = vmatprep.subr.bf16.mxu0 0
    %3048 = vmatpush1.bf16.msra.mxu0 0
    %3049 = vmatprep.subr.bf16.mxu0 0
    %3050 = vmatpush1.bf16.msra.mxu0 0
    %3051 = vmatprep.subr.bf16.mxu0 0
    %3052 = vmatpush1.bf16.msra.mxu0 0
    %3053 = vmatprep.subr.bf16.mxu0 0
    %3054 = vmatpush1.bf16.msra.mxu0 0
    %3055 = vmatprep.mubr.bf16.mxu0 0
    %3056 = vmatmul.mubr.bf16.gmra.mrb[0].mxu0 %v3018
    %v3057 = vpop.f32.mrb[0].mxu0
    %v3058 = vadd.f32 %v2979, %v3057
    %v3059 = vpop.f32.mrb[0].mxu0
    %v3060 = vpop.f32.mrb[0].mxu0
    %v3061 = vadd.f32 %v2982, %v3060
    %v3062 = vpop.f32.mrb[0].mxu0
    %3063 = vmatprep.mubr.bf16.mxu0 0
    %3064 = vmatmul.mubr.bf16.gmra.mrb[0].mxu0 %v3021
    %v3065 = vpop.f32.mrb[0].mxu0
    %v3066 = vadd.f32 %v2987, %v3065
    %v3067 = vpop.f32.mrb[0].mxu0
    %v3068 = vpop.f32.mrb[0].mxu0
    %v3069 = vadd.f32 %v2990, %v3068
    %v3070 = vpop.f32.mrb[0].mxu0
    %3071 = vdwg.mxu0
    %s3072 = scalar_lea.vmem [#allocation8], 64
    %v3073 = vld [vmem:[%s3072] sm:$0xf]
    %v3074 = vld [vmem:[%s3072 + $0x4] sm:$0xf]
    %v3075 = vld [vmem:[%s3072 + $0x8] sm:$0xf]
    %v3076 = vld [vmem:[%s3072 + $0xc] sm:$0xf]
    %v3077 = vld [vmem:[%s3072 + $0x10] sm:$0xf]
    %v3078 = vld [vmem:[%s3072 + $0x14] sm:$0xf]
    %v3079 = vld [vmem:[%s3072 + $0x18] sm:$0xf]
    %v3080 = vld [vmem:[%s3072 + $0x1c] sm:$0xf]
    %v3089 = vunpack.c.l.b16 %v3073
    %v3090 = vunpack.c.l.b16 %v3074
    %v3091 = vunpack.c.l.b16 %v3075
    %v3092 = vunpack.c.l.b16 %v3076
    %v3093 = vunpack.c.l.b16 %v3077
    %v3094 = vunpack.c.l.b16 %v3078
    %v3095 = vunpack.c.l.b16 %v3079
    %v3096 = vunpack.c.l.b16 %v3080
    %v3097 = vpack.c.b16 %v3090, %v3089
    %v3098 = vpack.c.b16 %v3092, %v3091
    %v3099 = vpack.c.b16 %v3094, %v3093
    %v3100 = vpack.c.b16 %v3096, %v3095
    %3105 = vmatprep.subr.bf16.mxu0 0
    %3106 = vmatpush1.bf16.msra.mxu0 %v3097
    %3107 = vmatprep.subr.bf16.mxu0 0
    %3108 = vmatpush1.bf16.msra.mxu0 %v3098
    %3109 = vmatprep.subr.bf16.mxu0 0
    %3110 = vmatpush1.bf16.msra.mxu0 %v3099
    %3111 = vmatprep.subr.bf16.mxu0 0
    %3112 = vmatpush1.bf16.msra.mxu0 %v3100
    %3113 = vmatprep.subr.bf16.mxu0 0
    %3114 = vmatpush1.bf16.msra.mxu0 0
    %3115 = vmatprep.subr.bf16.mxu0 0
    %3116 = vmatpush1.bf16.msra.mxu0 0
    %3117 = vmatprep.subr.bf16.mxu0 0
    %3118 = vmatpush1.bf16.msra.mxu0 0
    %3119 = vmatprep.subr.bf16.mxu0 0
    %3120 = vmatpush1.bf16.msra.mxu0 0
    %3121 = vmatprep.subr.bf16.mxu0 0
    %3122 = vmatpush1.bf16.msra.mxu0 0
    %3123 = vmatprep.subr.bf16.mxu0 0
    %3124 = vmatpush1.bf16.msra.mxu0 0
    %3125 = vmatprep.subr.bf16.mxu0 0
    %3126 = vmatpush1.bf16.msra.mxu0 0
    %3127 = vmatprep.subr.bf16.mxu0 0
    %3128 = vmatpush1.bf16.msra.mxu0 0
    %3129 = vmatprep.subr.bf16.mxu0 0
    %3130 = vmatpush1.bf16.msra.mxu0 0
    %3131 = vmatprep.subr.bf16.mxu0 0
    %3132 = vmatpush1.bf16.msra.mxu0 0
    %3133 = vmatprep.subr.bf16.mxu0 0
    %3134 = vmatpush1.bf16.msra.mxu0 0
    %3135 = vmatprep.subr.bf16.mxu0 0
    %3136 = vmatpush1.bf16.msra.mxu0 0
    %3137 = vmatprep.mubr.bf16.mxu0 0
    %3138 = vmatmul.mubr.bf16.gmra.mrb[0].mxu0 %v433
    %v3139 = vpop.f32.mrb[0].mxu0
    %v3140 = vadd.f32 0.0, %v3139
    %v3141 = vpop.f32.mrb[0].mxu0
    %v3142 = vpop.f32.mrb[0].mxu0
    %v3143 = vadd.f32 0.0, %v3142
    %v3144 = vpop.f32.mrb[0].mxu0
    %3145 = vmatprep.mubr.bf16.mxu0 0
    %3146 = vmatmul.mubr.bf16.gmra.mrb[0].mxu0 %v436
    %v3147 = vpop.f32.mrb[0].mxu0
    %v3148 = vadd.f32 0.0, %v3147
    %v3149 = vpop.f32.mrb[0].mxu0
    %v3150 = vpop.f32.mrb[0].mxu0
    %v3151 = vadd.f32 0.0, %v3150
    %v3152 = vpop.f32.mrb[0].mxu0
    %3153 = vdwg.mxu0
    %v3154 = vadd.f32 %v3058, %v3140
    %v3155 = vadd.f32 %v3061, %v3143
    %v3156 = vadd.f32 %v3066, %v3148
    %v3157 = vadd.f32 %v3069, %v3151
    %s3158 = scalar_lea.vmem [#allocation8], 96
    %v3159 = vld [vmem:[%s3158] sm:$0xf]
    %v3160 = vld [vmem:[%s3158 + $0x4] sm:$0xf]
    %v3161 = vld [vmem:[%s3158 + $0x8] sm:$0xf]
    %v3162 = vld [vmem:[%s3158 + $0xc] sm:$0xf]
    %v3163 = vld [vmem:[%s3158 + $0x10] sm:$0xf]
    %v3164 = vld [vmem:[%s3158 + $0x14] sm:$0xf]
    %v3165 = vld [vmem:[%s3158 + $0x18] sm:$0xf]
    %v3166 = vld [vmem:[%s3158 + $0x1c] sm:$0xf]
    %v3175 = vunpack.c.l.b16 %v3159
    %v3176 = vunpack.c.l.b16 %v3160
    %v3177 = vunpack.c.l.b16 %v3161
    %v3178 = vunpack.c.l.b16 %v3162
    %v3179 = vunpack.c.l.b16 %v3163
    %v3180 = vunpack.c.l.b16 %v3164
    %v3181 = vunpack.c.l.b16 %v3165
    %v3182 = vunpack.c.l.b16 %v3166
    %v3183 = vpack.c.b16 %v3176, %v3175
    %v3184 = vpack.c.b16 %v3178, %v3177
    %v3185 = vpack.c.b16 %v3180, %v3179
    %v3186 = vpack.c.b16 %v3182, %v3181
    %3191 = vmatprep.subr.bf16.mxu0 0
    %3192 = vmatpush1.bf16.msra.mxu0 %v3183
    %3193 = vmatprep.subr.bf16.mxu0 0
    %3194 = vmatpush1.bf16.msra.mxu0 %v3184
    %3195 = vmatprep.subr.bf16.mxu0 0
    %3196 = vmatpush1.bf16.msra.mxu0 %v3185
    %3197 = vmatprep.subr.bf16.mxu0 0
    %3198 = vmatpush1.bf16.msra.mxu0 %v3186
    %3199 = vmatprep.subr.bf16.mxu0 0
    %3200 = vmatpush1.bf16.msra.mxu0 0
    %3201 = vmatprep.subr.bf16.mxu0 0
    %3202 = vmatpush1.bf16.msra.mxu0 0
    %3203 = vmatprep.subr.bf16.mxu0 0
    %3204 = vmatpush1.bf16.msra.mxu0 0
    %3205 = vmatprep.subr.bf16.mxu0 0
    %3206 = vmatpush1.bf16.msra.mxu0 0
    %3207 = vmatprep.subr.bf16.mxu0 0
    %3208 = vmatpush1.bf16.msra.mxu0 0
    %3209 = vmatprep.subr.bf16.mxu0 0
    %3210 = vmatpush1.bf16.msra.mxu0 0
    %3211 = vmatprep.subr.bf16.mxu0 0
    %3212 = vmatpush1.bf16.msra.mxu0 0
    %3213 = vmatprep.subr.bf16.mxu0 0
    %3214 = vmatpush1.bf16.msra.mxu0 0
    %3215 = vmatprep.subr.bf16.mxu0 0
    %3216 = vmatpush1.bf16.msra.mxu0 0
    %3217 = vmatprep.subr.bf16.mxu0 0
    %3218 = vmatpush1.bf16.msra.mxu0 0
    %3219 = vmatprep.subr.bf16.mxu0 0
    %3220 = vmatpush1.bf16.msra.mxu0 0
    %3221 = vmatprep.subr.bf16.mxu0 0
    %3222 = vmatpush1.bf16.msra.mxu0 0
    %3223 = vmatprep.mubr.bf16.mxu0 0
    %3224 = vmatmul.mubr.bf16.gmra.mrb[0].mxu0 %v334
    %v3225 = vpop.f32.mrb[0].mxu0
    %v3226 = vadd.f32 0.0, %v3225
    %v3227 = vpop.f32.mrb[0].mxu0
    %v3228 = vpop.f32.mrb[0].mxu0
    %v3229 = vadd.f32 0.0, %v3228
    %v3230 = vpop.f32.mrb[0].mxu0
    %3231 = vmatprep.mubr.bf16.mxu0 0
    %3232 = vmatmul.mubr.bf16.gmra.mrb[0].mxu0 %v337
    %v3233 = vpop.f32.mrb[0].mxu0
    %v3234 = vadd.f32 0.0, %v3233
    %v3235 = vpop.f32.mrb[0].mxu0
    %v3236 = vpop.f32.mrb[0].mxu0
    %v3237 = vadd.f32 0.0, %v3236
    %v3238 = vpop.f32.mrb[0].mxu0
    %3239 = vdwg.mxu0
    %v3240 = vadd.f32 %v3154, %v3226
    %v3241 = vadd.f32 %v3155, %v3229
    %v3242 = vadd.f32 %v3156, %v3234
    %v3243 = vadd.f32 %v3157, %v3237
    %s3244 = scalar_lea.vmem [#allocation8], 128
    %v3245 = vld [vmem:[%s3244] sm:$0xf]
    %v3246 = vld [vmem:[%s3244 + $0x4] sm:$0xf]
    %v3247 = vld [vmem:[%s3244 + $0x8] sm:$0xf]
    %v3248 = vld [vmem:[%s3244 + $0xc] sm:$0xf]
    %v3249 = vld [vmem:[%s3244 + $0x10] sm:$0xf]
    %v3250 = vld [vmem:[%s3244 + $0x14] sm:$0xf]
    %v3251 = vld [vmem:[%s3244 + $0x18] sm:$0xf]
    %v3252 = vld [vmem:[%s3244 + $0x1c] sm:$0xf]
    %v3261 = vunpack.c.l.b16 %v3245
    %v3262 = vunpack.c.l.b16 %v3246
    %v3263 = vunpack.c.l.b16 %v3247
    %v3264 = vunpack.c.l.b16 %v3248
    %v3265 = vunpack.c.l.b16 %v3249
    %v3266 = vunpack.c.l.b16 %v3250
    %v3267 = vunpack.c.l.b16 %v3251
    %v3268 = vunpack.c.l.b16 %v3252
    %v3269 = vpack.c.b16 %v3262, %v3261
    %v3270 = vpack.c.b16 %v3264, %v3263
    %v3271 = vpack.c.b16 %v3266, %v3265
    %v3272 = vpack.c.b16 %v3268, %v3267
    %3277 = vmatprep.subr.bf16.mxu0 0
    %3278 = vmatpush1.bf16.msra.mxu0 %v3269
    %3279 = vmatprep.subr.bf16.mxu0 0
    %3280 = vmatpush1.bf16.msra.mxu0 %v3270
    %3281 = vmatprep.subr.bf16.mxu0 0
    %3282 = vmatpush1.bf16.msra.mxu0 %v3271
    %3283 = vmatprep.subr.bf16.mxu0 0
    %3284 = vmatpush1.bf16.msra.mxu0 %v3272
    %3285 = vmatprep.subr.bf16.mxu0 0
    %3286 = vmatpush1.bf16.msra.mxu0 0
    %3287 = vmatprep.subr.bf16.mxu0 0
    %3288 = vmatpush1.bf16.msra.mxu0 0
    %3289 = vmatprep.subr.bf16.mxu0 0
    %3290 = vmatpush1.bf16.msra.mxu0 0
    %3291 = vmatprep.subr.bf16.mxu0 0
    %3292 = vmatpush1.bf16.msra.mxu0 0
    %3293 = vmatprep.subr.bf16.mxu0 0
    %3294 = vmatpush1.bf16.msra.mxu0 0
    %3295 = vmatprep.subr.bf16.mxu0 0
    %3296 = vmatpush1.bf16.msra.mxu0 0
    %3297 = vmatprep.subr.bf16.mxu0 0
    %3298 = vmatpush1.bf16.msra.mxu0 0
    %3299 = vmatprep.subr.bf16.mxu0 0
    %3300 = vmatpush1.bf16.msra.mxu0 0
    %3301 = vmatprep.subr.bf16.mxu0 0
    %3302 = vmatpush1.bf16.msra.mxu0 0
    %3303 = vmatprep.subr.bf16.mxu0 0
    %3304 = vmatpush1.bf16.msra.mxu0 0
    %3305 = vmatprep.subr.bf16.mxu0 0
    %3306 = vmatpush1.bf16.msra.mxu0 0
    %3307 = vmatprep.subr.bf16.mxu0 0
    %3308 = vmatpush1.bf16.msra.mxu0 0
    %3309 = vmatprep.mubr.bf16.mxu0 0
    %3310 = vmatmul.mubr.bf16.gmra.mrb[0].mxu0 %v541
    %v3311 = vpop.f32.mrb[0].mxu0
    %v3312 = vadd.f32 0.0, %v3311
    %v3313 = vpop.f32.mrb[0].mxu0
    %v3314 = vpop.f32.mrb[0].mxu0
    %v3315 = vadd.f32 0.0, %v3314
    %v3316 = vpop.f32.mrb[0].mxu0
    %3317 = vmatprep.mubr.bf16.mxu0 0
    %3318 = vmatmul.mubr.bf16.gmra.mrb[0].mxu0 %v544
    %v3319 = vpop.f32.mrb[0].mxu0
    %v3320 = vadd.f32 0.0, %v3319
    %v3321 = vpop.f32.mrb[0].mxu0
    %v3322 = vpop.f32.mrb[0].mxu0
    %v3323 = vadd.f32 0.0, %v3322
    %v3324 = vpop.f32.mrb[0].mxu0
    %3325 = vdwg.mxu0
    %v3326 = vadd.f32 %v3240, %v3312
    %v3327 = vadd.f32 %v3241, %v3315
    %v3328 = vadd.f32 %v3242, %v3320
    %v3329 = vadd.f32 %v3243, %v3323
    %s3330 = scalar_lea.vmem [#allocation8], 160
    %v3331 = vld [vmem:[%s3330] sm:$0xf]
    %v3332 = vld [vmem:[%s3330 + $0x4] sm:$0xf]
    %v3333 = vld [vmem:[%s3330 + $0x8] sm:$0xf]
    %v3334 = vld [vmem:[%s3330 + $0xc] sm:$0xf]
    %v3335 = vld [vmem:[%s3330 + $0x10] sm:$0xf]
    %v3336 = vld [vmem:[%s3330 + $0x14] sm:$0xf]
    %v3337 = vld [vmem:[%s3330 + $0x18] sm:$0xf]
    %v3338 = vld [vmem:[%s3330 + $0x1c] sm:$0xf]
    %v3347 = vunpack.c.l.b16 %v3331
    %v3348 = vunpack.c.l.b16 %v3332
    %v3349 = vunpack.c.l.b16 %v3333
    %v3350 = vunpack.c.l.b16 %v3334
    %v3351 = vunpack.c.l.b16 %v3335
    %v3352 = vunpack.c.l.b16 %v3336
    %v3353 = vunpack.c.l.b16 %v3337
    %v3354 = vunpack.c.l.b16 %v3338
    %v3355 = vpack.c.b16 %v3348, %v3347
    %v3356 = vpack.c.b16 %v3350, %v3349
    %v3357 = vpack.c.b16 %v3352, %v3351
    %v3358 = vpack.c.b16 %v3354, %v3353
    %3363 = vmatprep.subr.bf16.mxu0 0
    %3364 = vmatpush1.bf16.msra.mxu0 %v3355
    %3365 = vmatprep.subr.bf16.mxu0 0
    %3366 = vmatpush1.bf16.msra.mxu0 %v3356
    %3367 = vmatprep.subr.bf16.mxu0 0
    %3368 = vmatpush1.bf16.msra.mxu0 %v3357
    %3369 = vmatprep.subr.bf16.mxu0 0
    %3370 = vmatpush1.bf16.msra.mxu0 %v3358
    %3371 = vmatprep.subr.bf16.mxu0 0
    %3372 = vmatpush1.bf16.msra.mxu0 0
    %3373 = vmatprep.subr.bf16.mxu0 0
    %3374 = vmatpush1.bf16.msra.mxu0 0
    %3375 = vmatprep.subr.bf16.mxu0 0
    %3376 = vmatpush1.bf16.msra.mxu0 0
    %3377 = vmatprep.subr.bf16.mxu0 0
    %3378 = vmatpush1.bf16.msra.mxu0 0
    %3379 = vmatprep.subr.bf16.mxu0 0
    %3380 = vmatpush1.bf16.msra.mxu0 0
    %3381 = vmatprep.subr.bf16.mxu0 0
    %3382 = vmatpush1.bf16.msra.mxu0 0
    %3383 = vmatprep.subr.bf16.mxu0 0
    %3384 = vmatpush1.bf16.msra.mxu0 0
    %3385 = vmatprep.subr.bf16.mxu0 0
    %3386 = vmatpush1.bf16.msra.mxu0 0
    %3387 = vmatprep.subr.bf16.mxu0 0
    %3388 = vmatpush1.bf16.msra.mxu0 0
    %3389 = vmatprep.subr.bf16.mxu0 0
    %3390 = vmatpush1.bf16.msra.mxu0 0
    %3391 = vmatprep.subr.bf16.mxu0 0
    %3392 = vmatpush1.bf16.msra.mxu0 0
    %3393 = vmatprep.subr.bf16.mxu0 0
    %3394 = vmatpush1.bf16.msra.mxu0 0
    %3395 = vmatprep.mubr.bf16.mxu0 0
    %3396 = vmatmul.mubr.bf16.gmra.mrb[0].mxu0 %v1912
    %v3397 = vpop.f32.mrb[0].mxu0
    %v3398 = vadd.f32 0.0, %v3397
    %v3399 = vpop.f32.mrb[0].mxu0
    %v3400 = vpop.f32.mrb[0].mxu0
    %v3401 = vadd.f32 0.0, %v3400
    %v3402 = vpop.f32.mrb[0].mxu0
    %3403 = vmatprep.mubr.bf16.mxu0 0
    %3404 = vmatmul.mubr.bf16.gmra.mrb[0].mxu0 %v1915
    %v3405 = vpop.f32.mrb[0].mxu0
    %v3406 = vadd.f32 0.0, %v3405
    %v3407 = vpop.f32.mrb[0].mxu0
    %v3408 = vpop.f32.mrb[0].mxu0
    %v3409 = vadd.f32 0.0, %v3408
    %v3410 = vpop.f32.mrb[0].mxu0
    %3411 = vdwg.mxu0
    %v3412 = vadd.f32 %v3326, %v3398
    %v3413 = vadd.f32 %v3327, %v3401
    %v3414 = vadd.f32 %v3328, %v3406
    %v3415 = vadd.f32 %v3329, %v3409
    %s3416 = scalar_lea.vmem [#allocation8], 192
    %v3417 = vld [vmem:[%s3416] sm:$0xf]
    %v3418 = vld [vmem:[%s3416 + $0x4] sm:$0xf]
    %v3419 = vld [vmem:[%s3416 + $0x8] sm:$0xf]
    %v3420 = vld [vmem:[%s3416 + $0xc] sm:$0xf]
    %v3421 = vld [vmem:[%s3416 + $0x10] sm:$0xf]
    %v3422 = vld [vmem:[%s3416 + $0x14] sm:$0xf]
    %v3423 = vld [vmem:[%s3416 + $0x18] sm:$0xf]
    %v3424 = vld [vmem:[%s3416 + $0x1c] sm:$0xf]
    %v3433 = vunpack.c.l.b16 %v3417
    %v3434 = vunpack.c.l.b16 %v3418
    %v3435 = vunpack.c.l.b16 %v3419
    %v3436 = vunpack.c.l.b16 %v3420
    %v3437 = vunpack.c.l.b16 %v3421
    %v3438 = vunpack.c.l.b16 %v3422
    %v3439 = vunpack.c.l.b16 %v3423
    %v3440 = vunpack.c.l.b16 %v3424
    %v3441 = vpack.c.b16 %v3434, %v3433
    %v3442 = vpack.c.b16 %v3436, %v3435
    %v3443 = vpack.c.b16 %v3438, %v3437
    %v3444 = vpack.c.b16 %v3440, %v3439
    %v3450 = vsel %vm332, %v273, 0
    %v3453 = vsel %vm332, %v274, 0
    %3455 = vmatprep.subr.bf16.mxu0 0
    %3456 = vmatpush1.bf16.msra.mxu0 %v3441
    %3457 = vmatprep.subr.bf16.mxu0 0
    %3458 = vmatpush1.bf16.msra.mxu0 %v3442
    %3459 = vmatprep.subr.bf16.mxu0 0
    %3460 = vmatpush1.bf16.msra.mxu0 %v3443
    %3461 = vmatprep.subr.bf16.mxu0 0
    %3462 = vmatpush1.bf16.msra.mxu0 %v3444
    %3463 = vmatprep.subr.bf16.mxu0 0
    %3464 = vmatpush1.bf16.msra.mxu0 0
    %3465 = vmatprep.subr.bf16.mxu0 0
    %3466 = vmatpush1.bf16.msra.mxu0 0
    %3467 = vmatprep.subr.bf16.mxu0 0
    %3468 = vmatpush1.bf16.msra.mxu0 0
    %3469 = vmatprep.subr.bf16.mxu0 0
    %3470 = vmatpush1.bf16.msra.mxu0 0
    %3471 = vmatprep.subr.bf16.mxu0 0
    %3472 = vmatpush1.bf16.msra.mxu0 0
    %3473 = vmatprep.subr.bf16.mxu0 0
    %3474 = vmatpush1.bf16.msra.mxu0 0
    %3475 = vmatprep.subr.bf16.mxu0 0
    %3476 = vmatpush1.bf16.msra.mxu0 0
    %3477 = vmatprep.subr.bf16.mxu0 0
    %3478 = vmatpush1.bf16.msra.mxu0 0
    %3479 = vmatprep.subr.bf16.mxu0 0
    %3480 = vmatpush1.bf16.msra.mxu0 0
    %3481 = vmatprep.subr.bf16.mxu0 0
    %3482 = vmatpush1.bf16.msra.mxu0 0
    %3483 = vmatprep.subr.bf16.mxu0 0
    %3484 = vmatpush1.bf16.msra.mxu0 0
    %3485 = vmatprep.subr.bf16.mxu0 0
    %3486 = vmatpush1.bf16.msra.mxu0 0
    %3487 = vmatprep.mubr.bf16.mxu0 0
    %3488 = vmatmul.mubr.bf16.gmra.mrb[0].mxu0 %v3450
    %v3489 = vpop.f32.mrb[0].mxu0
    %v3490 = vadd.f32 0.0, %v3489
    %v3491 = vpop.f32.mrb[0].mxu0
    %v3492 = vpop.f32.mrb[0].mxu0
    %v3493 = vadd.f32 0.0, %v3492
    %v3494 = vpop.f32.mrb[0].mxu0
    %3495 = vmatprep.mubr.bf16.mxu0 0
    %3496 = vmatmul.mubr.bf16.gmra.mrb[0].mxu0 %v3453
    %v3497 = vpop.f32.mrb[0].mxu0
    %v3498 = vadd.f32 0.0, %v3497
    %v3499 = vpop.f32.mrb[0].mxu0
    %v3500 = vpop.f32.mrb[0].mxu0
    %v3501 = vadd.f32 0.0, %v3500
    %v3502 = vpop.f32.mrb[0].mxu0
    %3503 = vdwg.mxu0
    %v3504 = vadd.f32 %v3412, %v3490
    %v3505 = vadd.f32 %v3413, %v3493
    %v3506 = vadd.f32 %v3414, %v3498
    %v3507 = vadd.f32 %v3415, %v3501
    %v3508 = vld [vmem:[%s8 + $0x4] ss:$0 sm:$0xff]
    %v3509 = vadd.f32 %v3504, %v3508
    %v3510 = vadd.f32 %v3505, %v3508
    %v3511 = vadd.f32 %v3506, %v3508
    %v3512 = vadd.f32 %v3507, %v3508
    %vm3513 = vcmp.gt.f32.partialorder %v3509, 0.0
    %vm3514 = vcmp.gt.f32.partialorder %v3510, 0.0
    %vm3515 = vcmp.gt.f32.partialorder %v3511, 0.0
    %vm3516 = vcmp.gt.f32.partialorder %v3512, 0.0
    %v3517 = vmul.f32 %v3509, 0.3
    %v3518 = vmul.f32 %v3510, 0.3
    %v3519 = vmul.f32 %v3511, 0.3
    %v3520 = vmul.f32 %v3512, 0.3
    %v3521 = vsel %vm3513, %v3509, %v3517
    %v3522 = vsel %vm3514, %v3510, %v3518
    %v3523 = vsel %vm3515, %v3511, %v3519
    %v3524 = vsel %vm3516, %v3512, %v3520
    %v3525 = vrot.slane %v3521, 5
    %v3526 = vrot.slane %v3522, 5
    %v3527 = vrot.slane %v3523, 5
    %v3528 = vrot.slane %v3524, 5
    %v3529 = vsel %vm112, %v3527, %v3528
    %v3530 = vsel %vm112, %v3526, %v3527
    %v3531 = vsel %vm112, %v3525, %v3526
    %v3532 = vsel %vm112, %v3528, %v3525
    %v3533 = vsel %vm168, %v3532, 0.0
    %v3534 = vsel %vm169, %v3531, 0.0
    %v3535 = vsel %vm170, %v3530, 0.0
    %v3536 = vsel %vm171, %v3529, 0.0
    %v3537 = vpack.c.bf16 %v3534, %v3533
    %v3538 = vpack.c.bf16 %v3536, %v3535
    %v3539 = vrot.slane %v3521, 6
    %v3540 = vrot.slane %v3522, 6
    %v3541 = vrot.slane %v3523, 6
    %v3542 = vrot.slane %v3524, 6
    %v3543 = vsel %vm182, %v3541, %v3542
    %v3544 = vsel %vm182, %v3540, %v3541
    %v3545 = vsel %vm182, %v3539, %v3540
    %v3546 = vsel %vm182, %v3542, %v3539
    %v3547 = vsel %vm187, %v3546, 0.0
    %v3548 = vsel %vm188, %v3545, 0.0
    %v3549 = vsel %vm189, %v3544, 0.0
    %v3550 = vsel %vm190, %v3543, 0.0
    %v3551 = vpack.c.bf16 %v3548, %v3547
    %v3552 = vpack.c.bf16 %v3550, %v3549
    %v3553 = vrot.slane %v3521, 7
    %v3554 = vrot.slane %v3522, 7
    %v3555 = vrot.slane %v3523, 7
    %v3556 = vrot.slane %v3524, 7
    %v3557 = vsel %vm201, %v3555, %v3556
    %v3558 = vsel %vm201, %v3554, %v3555
    %v3559 = vsel %vm201, %v3553, %v3554
    %v3560 = vsel %vm201, %v3556, %v3553
    %v3561 = vsel %vm206, %v3560, 0.0
    %v3562 = vsel %vm207, %v3559, 0.0
    %v3563 = vsel %vm208, %v3558, 0.0
    %v3564 = vsel %vm209, %v3557, 0.0
    %v3565 = vpack.c.bf16 %v3562, %v3561
    %v3566 = vpack.c.bf16 %v3564, %v3563
    %v3567 = vpack.c.bf16 %v3522, %v3521
    %v3568 = vpack.c.bf16 %v3524, %v3523
    %v3569 = vrot.slane %v3521, 1
    %v3570 = vrot.slane %v3522, 1
    %v3571 = vrot.slane %v3523, 1
    %v3572 = vrot.slane %v3524, 1
    %v3573 = vsel %vm222, %v3571, %v3572
    %v3574 = vsel %vm222, %v3570, %v3571
    %v3575 = vsel %vm222, %v3569, %v3570
    %v3576 = vsel %vm222, %v3572, %v3569
    %v3577 = vsel %vm227, %v3575, 0.0
    %v3578 = vsel %vm228, %v3574, 0.0
    %v3579 = vsel %vm229, %v3573, 0.0
    %v3580 = vsel %vm230, %v3576, 0.0
    %v3581 = vpack.c.bf16 %v3578, %v3577
    %v3582 = vpack.c.bf16 %v3580, %v3579
    %v3583 = vrot.slane %v3521, 2
    %v3584 = vrot.slane %v3522, 2
    %v3585 = vrot.slane %v3523, 2
    %v3586 = vrot.slane %v3524, 2
    %v3587 = vsel %vm241, %v3585, %v3586
    %v3588 = vsel %vm241, %v3584, %v3585
    %v3589 = vsel %vm241, %v3583, %v3584
    %v3590 = vsel %vm241, %v3586, %v3583
    %v3591 = vsel %vm246, %v3589, 0.0
    %v3592 = vsel %vm247, %v3588, 0.0
    %v3593 = vsel %vm248, %v3587, 0.0
    %v3594 = vsel %vm249, %v3590, 0.0
    %v3595 = vpack.c.bf16 %v3592, %v3591
    %v3596 = vpack.c.bf16 %v3594, %v3593
    %v3597 = vrot.slane %v3521, 3
    %v3598 = vrot.slane %v3522, 3
    %v3599 = vrot.slane %v3523, 3
    %v3600 = vrot.slane %v3524, 3
    %v3601 = vsel %vm260, %v3599, %v3600
    %v3602 = vsel %vm260, %v3598, %v3599
    %v3603 = vsel %vm260, %v3597, %v3598
    %v3604 = vsel %vm260, %v3600, %v3597
    %v3605 = vsel %vm265, %v3603, 0.0
    %v3606 = vsel %vm266, %v3602, 0.0
    %v3607 = vsel %vm267, %v3601, 0.0
    %v3608 = vsel %vm268, %v3604, 0.0
    %v3609 = vpack.c.bf16 %v3606, %v3605
    %v3610 = vpack.c.bf16 %v3608, %v3607
    %v3611 = vld [vmem:[#allocation10] sm:$0xf]
    %v3612 = vld [vmem:[#allocation10 + $0x4] sm:$0xf]
    %v3613 = vld [vmem:[#allocation10 + $0x8] sm:$0xf]
    %v3614 = vld [vmem:[#allocation10 + $0xc] sm:$0xf]
    %v3615 = vld [vmem:[#allocation10 + $0x10] sm:$0xf]
    %v3616 = vld [vmem:[#allocation10 + $0x14] sm:$0xf]
    %v3617 = vld [vmem:[#allocation10 + $0x18] sm:$0xf]
    %v3618 = vld [vmem:[#allocation10 + $0x1c] sm:$0xf]
    %v3619 = vld [vmem:[#allocation10 + $0x20] sm:$0xf]
    %v3620 = vld [vmem:[#allocation10 + $0x24] sm:$0xf]
    %v3621 = vld [vmem:[#allocation10 + $0x28] sm:$0xf]
    %v3622 = vld [vmem:[#allocation10 + $0x2c] sm:$0xf]
    %v3623 = vld [vmem:[#allocation10 + $0x30] sm:$0xf]
    %v3624 = vld [vmem:[#allocation10 + $0x34] sm:$0xf]
    %v3625 = vld [vmem:[#allocation10 + $0x38] sm:$0xf]
    %v3626 = vld [vmem:[#allocation10 + $0x3c] sm:$0xf]
    %s3627 = scalar_lea.vmem [#allocation10], 64
    %v3628 = vld [vmem:[%s3627] sm:$0xf]
    %v3629 = vld [vmem:[%s3627 + $0x4] sm:$0xf]
    %v3630 = vld [vmem:[%s3627 + $0x8] sm:$0xf]
    %v3631 = vld [vmem:[%s3627 + $0xc] sm:$0xf]
    %v3632 = vld [vmem:[%s3627 + $0x10] sm:$0xf]
    %v3633 = vld [vmem:[%s3627 + $0x14] sm:$0xf]
    %v3634 = vld [vmem:[%s3627 + $0x18] sm:$0xf]
    %v3635 = vld [vmem:[%s3627 + $0x1c] sm:$0xf]
    %v3636 = vld [vmem:[%s3627 + $0x20] sm:$0xf]
    %v3637 = vld [vmem:[%s3627 + $0x24] sm:$0xf]
    %v3638 = vld [vmem:[%s3627 + $0x28] sm:$0xf]
    %v3639 = vld [vmem:[%s3627 + $0x2c] sm:$0xf]
    %v3640 = vld [vmem:[%s3627 + $0x30] sm:$0xf]
    %v3641 = vld [vmem:[%s3627 + $0x34] sm:$0xf]
    %v3642 = vld [vmem:[%s3627 + $0x38] sm:$0xf]
    %v3643 = vld [vmem:[%s3627 + $0x3c] sm:$0xf]
    %v3660 = vunpack.c.l.b16 %v3628
    %v3661 = vunpack.c.l.b16 %v3629
    %v3662 = vunpack.c.l.b16 %v3630
    %v3663 = vunpack.c.l.b16 %v3631
    %v3664 = vunpack.c.l.b16 %v3632
    %v3665 = vunpack.c.l.b16 %v3633
    %v3666 = vunpack.c.l.b16 %v3634
    %v3667 = vunpack.c.l.b16 %v3635
    %v3668 = vunpack.c.l.b16 %v3636
    %v3669 = vunpack.c.l.b16 %v3637
    %v3670 = vunpack.c.l.b16 %v3638
    %v3671 = vunpack.c.l.b16 %v3639
    %v3672 = vunpack.c.l.b16 %v3640
    %v3673 = vunpack.c.l.b16 %v3641
    %v3674 = vunpack.c.l.b16 %v3642
    %v3675 = vunpack.c.l.b16 %v3643
    %v3676 = vpack.c.b16 %v3661, %v3660
    %v3677 = vpack.c.b16 %v3663, %v3662
    %v3678 = vpack.c.b16 %v3665, %v3664
    %v3679 = vpack.c.b16 %v3667, %v3666
    %v3680 = vpack.c.b16 %v3669, %v3668
    %v3681 = vpack.c.b16 %v3671, %v3670
    %v3682 = vpack.c.b16 %v3673, %v3672
    %v3683 = vpack.c.b16 %v3675, %v3674
    %3692 = vmatprep.subr.bf16.mxu0 0
    %3693 = vmatpush1.bf16.msra.mxu0 %v3676
    %3694 = vmatprep.subr.bf16.mxu0 0
    %3695 = vmatpush1.bf16.msra.mxu0 %v3677
    %3696 = vmatprep.subr.bf16.mxu0 0
    %3697 = vmatpush1.bf16.msra.mxu0 %v3678
    %3698 = vmatprep.subr.bf16.mxu0 0
    %3699 = vmatpush1.bf16.msra.mxu0 %v3679
    %3700 = vmatprep.subr.bf16.mxu0 0
    %3701 = vmatpush1.bf16.msra.mxu0 %v3680
    %3702 = vmatprep.subr.bf16.mxu0 0
    %3703 = vmatpush1.bf16.msra.mxu0 %v3681
    %3704 = vmatprep.subr.bf16.mxu0 0
    %3705 = vmatpush1.bf16.msra.mxu0 %v3682
    %3706 = vmatprep.subr.bf16.mxu0 0
    %3707 = vmatpush1.bf16.msra.mxu0 %v3683
    %3708 = vmatprep.subr.bf16.mxu0 0
    %3709 = vmatpush1.bf16.msra.mxu0 0
    %3710 = vmatprep.subr.bf16.mxu0 0
    %3711 = vmatpush1.bf16.msra.mxu0 0
    %3712 = vmatprep.subr.bf16.mxu0 0
    %3713 = vmatpush1.bf16.msra.mxu0 0
    %3714 = vmatprep.subr.bf16.mxu0 0
    %3715 = vmatpush1.bf16.msra.mxu0 0
    %3716 = vmatprep.subr.bf16.mxu0 0
    %3717 = vmatpush1.bf16.msra.mxu0 0
    %3718 = vmatprep.subr.bf16.mxu0 0
    %3719 = vmatpush1.bf16.msra.mxu0 0
    %3720 = vmatprep.subr.bf16.mxu0 0
    %3721 = vmatpush1.bf16.msra.mxu0 0
    %3722 = vmatprep.subr.bf16.mxu0 0
    %3723 = vmatpush1.bf16.msra.mxu0 0
    %3724 = vmatprep.mubr.bf16.mxu0 0
    %3725 = vmatmul.mubr.bf16.gmra.mrb[0].mxu0 %v3551
    %v3726 = vpop.f32.mrb[0].mxu0
    %v3727 = vadd.f32 0.0, %v3726
    %v3728 = vpop.f32.mrb[0].mxu0
    %v3729 = vpop.f32.mrb[0].mxu0
    %v3730 = vadd.f32 0.0, %v3729
    %v3731 = vpop.f32.mrb[0].mxu0
    %3732 = vmatprep.mubr.bf16.mxu0 0
    %3733 = vmatmul.mubr.bf16.gmra.mrb[0].mxu0 %v3552
    %v3734 = vpop.f32.mrb[0].mxu0
    %v3735 = vadd.f32 0.0, %v3734
    %v3736 = vpop.f32.mrb[0].mxu0
    %v3737 = vpop.f32.mrb[0].mxu0
    %v3738 = vadd.f32 0.0, %v3737
    %v3739 = vpop.f32.mrb[0].mxu0
    %3740 = vdwg.mxu0
    %v3757 = vunpack.c.l.b16 %v3611
    %v3758 = vunpack.c.l.b16 %v3612
    %v3759 = vunpack.c.l.b16 %v3613
    %v3760 = vunpack.c.l.b16 %v3614
    %v3761 = vunpack.c.l.b16 %v3615
    %v3762 = vunpack.c.l.b16 %v3616
    %v3763 = vunpack.c.l.b16 %v3617
    %v3764 = vunpack.c.l.b16 %v3618
    %v3765 = vunpack.c.l.b16 %v3619
    %v3766 = vunpack.c.l.b16 %v3620
    %v3767 = vunpack.c.l.b16 %v3621
    %v3768 = vunpack.c.l.b16 %v3622
    %v3769 = vunpack.c.l.b16 %v3623
    %v3770 = vunpack.c.l.b16 %v3624
    %v3771 = vunpack.c.l.b16 %v3625
    %v3772 = vunpack.c.l.b16 %v3626
    %v3773 = vpack.c.b16 %v3758, %v3757
    %v3774 = vpack.c.b16 %v3760, %v3759
    %v3775 = vpack.c.b16 %v3762, %v3761
    %v3776 = vpack.c.b16 %v3764, %v3763
    %v3777 = vpack.c.b16 %v3766, %v3765
    %v3778 = vpack.c.b16 %v3768, %v3767
    %v3779 = vpack.c.b16 %v3770, %v3769
    %v3780 = vpack.c.b16 %v3772, %v3771
    %3789 = vmatprep.subr.bf16.mxu0 0
    %3790 = vmatpush1.bf16.msra.mxu0 %v3773
    %3791 = vmatprep.subr.bf16.mxu0 0
    %3792 = vmatpush1.bf16.msra.mxu0 %v3774
    %3793 = vmatprep.subr.bf16.mxu0 0
    %3794 = vmatpush1.bf16.msra.mxu0 %v3775
    %3795 = vmatprep.subr.bf16.mxu0 0
    %3796 = vmatpush1.bf16.msra.mxu0 %v3776
    %3797 = vmatprep.subr.bf16.mxu0 0
    %3798 = vmatpush1.bf16.msra.mxu0 %v3777
    %3799 = vmatprep.subr.bf16.mxu0 0
    %3800 = vmatpush1.bf16.msra.mxu0 %v3778
    %3801 = vmatprep.subr.bf16.mxu0 0
    %3802 = vmatpush1.bf16.msra.mxu0 %v3779
    %3803 = vmatprep.subr.bf16.mxu0 0
    %3804 = vmatpush1.bf16.msra.mxu0 %v3780
    %3805 = vmatprep.subr.bf16.mxu0 0
    %3806 = vmatpush1.bf16.msra.mxu0 0
    %3807 = vmatprep.subr.bf16.mxu0 0
    %3808 = vmatpush1.bf16.msra.mxu0 0
    %3809 = vmatprep.subr.bf16.mxu0 0
    %3810 = vmatpush1.bf16.msra.mxu0 0
    %3811 = vmatprep.subr.bf16.mxu0 0
    %3812 = vmatpush1.bf16.msra.mxu0 0
    %3813 = vmatprep.subr.bf16.mxu0 0
    %3814 = vmatpush1.bf16.msra.mxu0 0
    %3815 = vmatprep.subr.bf16.mxu0 0
    %3816 = vmatpush1.bf16.msra.mxu0 0
    %3817 = vmatprep.subr.bf16.mxu0 0
    %3818 = vmatpush1.bf16.msra.mxu0 0
    %3819 = vmatprep.subr.bf16.mxu0 0
    %3820 = vmatpush1.bf16.msra.mxu0 0
    %3821 = vmatprep.mubr.bf16.mxu0 0
    %3822 = vmatmul.mubr.bf16.gmra.mrb[0].mxu0 %v3537
    %v3823 = vpop.f32.mrb[0].mxu0
    %v3824 = vadd.f32 %v3727, %v3823
    %v3825 = vpop.f32.mrb[0].mxu0
    %v3826 = vpop.f32.mrb[0].mxu0
    %v3827 = vadd.f32 %v3730, %v3826
    %v3828 = vpop.f32.mrb[0].mxu0
    %3829 = vmatprep.mubr.bf16.mxu0 0
    %3830 = vmatmul.mubr.bf16.gmra.mrb[0].mxu0 %v3538
    %v3831 = vpop.f32.mrb[0].mxu0
    %v3832 = vadd.f32 %v3735, %v3831
    %v3833 = vpop.f32.mrb[0].mxu0
    %v3834 = vpop.f32.mrb[0].mxu0
    %v3835 = vadd.f32 %v3738, %v3834
    %v3836 = vpop.f32.mrb[0].mxu0
    %3837 = vdwg.mxu0
    %s3838 = scalar_lea.vmem [#allocation10], 128
    %v3839 = vld [vmem:[%s3838] sm:$0xf]
    %v3840 = vld [vmem:[%s3838 + $0x4] sm:$0xf]
    %v3841 = vld [vmem:[%s3838 + $0x8] sm:$0xf]
    %v3842 = vld [vmem:[%s3838 + $0xc] sm:$0xf]
    %v3843 = vld [vmem:[%s3838 + $0x10] sm:$0xf]
    %v3844 = vld [vmem:[%s3838 + $0x14] sm:$0xf]
    %v3845 = vld [vmem:[%s3838 + $0x18] sm:$0xf]
    %v3846 = vld [vmem:[%s3838 + $0x1c] sm:$0xf]
    %v3847 = vld [vmem:[%s3838 + $0x20] sm:$0xf]
    %v3848 = vld [vmem:[%s3838 + $0x24] sm:$0xf]
    %v3849 = vld [vmem:[%s3838 + $0x28] sm:$0xf]
    %v3850 = vld [vmem:[%s3838 + $0x2c] sm:$0xf]
    %v3851 = vld [vmem:[%s3838 + $0x30] sm:$0xf]
    %v3852 = vld [vmem:[%s3838 + $0x34] sm:$0xf]
    %v3853 = vld [vmem:[%s3838 + $0x38] sm:$0xf]
    %v3854 = vld [vmem:[%s3838 + $0x3c] sm:$0xf]
    %v3871 = vunpack.c.l.b16 %v3839
    %v3872 = vunpack.c.l.b16 %v3840
    %v3873 = vunpack.c.l.b16 %v3841
    %v3874 = vunpack.c.l.b16 %v3842
    %v3875 = vunpack.c.l.b16 %v3843
    %v3876 = vunpack.c.l.b16 %v3844
    %v3877 = vunpack.c.l.b16 %v3845
    %v3878 = vunpack.c.l.b16 %v3846
    %v3879 = vunpack.c.l.b16 %v3847
    %v3880 = vunpack.c.l.b16 %v3848
    %v3881 = vunpack.c.l.b16 %v3849
    %v3882 = vunpack.c.l.b16 %v3850
    %v3883 = vunpack.c.l.b16 %v3851
    %v3884 = vunpack.c.l.b16 %v3852
    %v3885 = vunpack.c.l.b16 %v3853
    %v3886 = vunpack.c.l.b16 %v3854
    %v3887 = vpack.c.b16 %v3872, %v3871
    %v3888 = vpack.c.b16 %v3874, %v3873
    %v3889 = vpack.c.b16 %v3876, %v3875
    %v3890 = vpack.c.b16 %v3878, %v3877
    %v3891 = vpack.c.b16 %v3880, %v3879
    %v3892 = vpack.c.b16 %v3882, %v3881
    %v3893 = vpack.c.b16 %v3884, %v3883
    %v3894 = vpack.c.b16 %v3886, %v3885
    %3903 = vmatprep.subr.bf16.mxu0 0
    %3904 = vmatpush1.bf16.msra.mxu0 %v3887
    %3905 = vmatprep.subr.bf16.mxu0 0
    %3906 = vmatpush1.bf16.msra.mxu0 %v3888
    %3907 = vmatprep.subr.bf16.mxu0 0
    %3908 = vmatpush1.bf16.msra.mxu0 %v3889
    %3909 = vmatprep.subr.bf16.mxu0 0
    %3910 = vmatpush1.bf16.msra.mxu0 %v3890
    %3911 = vmatprep.subr.bf16.mxu0 0
    %3912 = vmatpush1.bf16.msra.mxu0 %v3891
    %3913 = vmatprep.subr.bf16.mxu0 0
    %3914 = vmatpush1.bf16.msra.mxu0 %v3892
    %3915 = vmatprep.subr.bf16.mxu0 0
    %3916 = vmatpush1.bf16.msra.mxu0 %v3893
    %3917 = vmatprep.subr.bf16.mxu0 0
    %3918 = vmatpush1.bf16.msra.mxu0 %v3894
    %3919 = vmatprep.subr.bf16.mxu0 0
    %3920 = vmatpush1.bf16.msra.mxu0 0
    %3921 = vmatprep.subr.bf16.mxu0 0
    %3922 = vmatpush1.bf16.msra.mxu0 0
    %3923 = vmatprep.subr.bf16.mxu0 0
    %3924 = vmatpush1.bf16.msra.mxu0 0
    %3925 = vmatprep.subr.bf16.mxu0 0
    %3926 = vmatpush1.bf16.msra.mxu0 0
    %3927 = vmatprep.subr.bf16.mxu0 0
    %3928 = vmatpush1.bf16.msra.mxu0 0
    %3929 = vmatprep.subr.bf16.mxu0 0
    %3930 = vmatpush1.bf16.msra.mxu0 0
    %3931 = vmatprep.subr.bf16.mxu0 0
    %3932 = vmatpush1.bf16.msra.mxu0 0
    %3933 = vmatprep.subr.bf16.mxu0 0
    %3934 = vmatpush1.bf16.msra.mxu0 0
    %3935 = vmatprep.mubr.bf16.mxu0 0
    %3936 = vmatmul.mubr.bf16.gmra.mrb[0].mxu0 %v3565
    %v3937 = vpop.f32.mrb[0].mxu0
    %v3938 = vadd.f32 0.0, %v3937
    %v3939 = vpop.f32.mrb[0].mxu0
    %v3940 = vpop.f32.mrb[0].mxu0
    %v3941 = vadd.f32 0.0, %v3940
    %v3942 = vpop.f32.mrb[0].mxu0
    %3943 = vmatprep.mubr.bf16.mxu0 0
    %3944 = vmatmul.mubr.bf16.gmra.mrb[0].mxu0 %v3566
    %v3945 = vpop.f32.mrb[0].mxu0
    %v3946 = vadd.f32 0.0, %v3945
    %v3947 = vpop.f32.mrb[0].mxu0
    %v3948 = vpop.f32.mrb[0].mxu0
    %v3949 = vadd.f32 0.0, %v3948
    %v3950 = vpop.f32.mrb[0].mxu0
    %3951 = vdwg.mxu0
    %v3952 = vadd.f32 %v3824, %v3938
    %v3953 = vadd.f32 %v3827, %v3941
    %v3954 = vadd.f32 %v3832, %v3946
    %v3955 = vadd.f32 %v3835, %v3949
    %s3956 = scalar_lea.vmem [#allocation10], 192
    %v3957 = vld [vmem:[%s3956] sm:$0xf]
    %v3958 = vld [vmem:[%s3956 + $0x4] sm:$0xf]
    %v3959 = vld [vmem:[%s3956 + $0x8] sm:$0xf]
    %v3960 = vld [vmem:[%s3956 + $0xc] sm:$0xf]
    %v3961 = vld [vmem:[%s3956 + $0x10] sm:$0xf]
    %v3962 = vld [vmem:[%s3956 + $0x14] sm:$0xf]
    %v3963 = vld [vmem:[%s3956 + $0x18] sm:$0xf]
    %v3964 = vld [vmem:[%s3956 + $0x1c] sm:$0xf]
    %v3965 = vld [vmem:[%s3956 + $0x20] sm:$0xf]
    %v3966 = vld [vmem:[%s3956 + $0x24] sm:$0xf]
    %v3967 = vld [vmem:[%s3956 + $0x28] sm:$0xf]
    %v3968 = vld [vmem:[%s3956 + $0x2c] sm:$0xf]
    %v3969 = vld [vmem:[%s3956 + $0x30] sm:$0xf]
    %v3970 = vld [vmem:[%s3956 + $0x34] sm:$0xf]
    %v3971 = vld [vmem:[%s3956 + $0x38] sm:$0xf]
    %v3972 = vld [vmem:[%s3956 + $0x3c] sm:$0xf]
    %v3989 = vunpack.c.l.b16 %v3957
    %v3990 = vunpack.c.l.b16 %v3958
    %v3991 = vunpack.c.l.b16 %v3959
    %v3992 = vunpack.c.l.b16 %v3960
    %v3993 = vunpack.c.l.b16 %v3961
    %v3994 = vunpack.c.l.b16 %v3962
    %v3995 = vunpack.c.l.b16 %v3963
    %v3996 = vunpack.c.l.b16 %v3964
    %v3997 = vunpack.c.l.b16 %v3965
    %v3998 = vunpack.c.l.b16 %v3966
    %v3999 = vunpack.c.l.b16 %v3967
    %v4000 = vunpack.c.l.b16 %v3968
    %v4001 = vunpack.c.l.b16 %v3969
    %v4002 = vunpack.c.l.b16 %v3970
    %v4003 = vunpack.c.l.b16 %v3971
    %v4004 = vunpack.c.l.b16 %v3972
    %v4005 = vpack.c.b16 %v3990, %v3989
    %v4006 = vpack.c.b16 %v3992, %v3991
    %v4007 = vpack.c.b16 %v3994, %v3993
    %v4008 = vpack.c.b16 %v3996, %v3995
    %v4009 = vpack.c.b16 %v3998, %v3997
    %v4010 = vpack.c.b16 %v4000, %v3999
    %v4011 = vpack.c.b16 %v4002, %v4001
    %v4012 = vpack.c.b16 %v4004, %v4003
    %4021 = vmatprep.subr.bf16.mxu0 0
    %4022 = vmatpush1.bf16.msra.mxu0 %v4005
    %4023 = vmatprep.subr.bf16.mxu0 0
    %4024 = vmatpush1.bf16.msra.mxu0 %v4006
    %4025 = vmatprep.subr.bf16.mxu0 0
    %4026 = vmatpush1.bf16.msra.mxu0 %v4007
    %4027 = vmatprep.subr.bf16.mxu0 0
    %4028 = vmatpush1.bf16.msra.mxu0 %v4008
    %4029 = vmatprep.subr.bf16.mxu0 0
    %4030 = vmatpush1.bf16.msra.mxu0 %v4009
    %4031 = vmatprep.subr.bf16.mxu0 0
    %4032 = vmatpush1.bf16.msra.mxu0 %v4010
    %4033 = vmatprep.subr.bf16.mxu0 0
    %4034 = vmatpush1.bf16.msra.mxu0 %v4011
    %4035 = vmatprep.subr.bf16.mxu0 0
    %4036 = vmatpush1.bf16.msra.mxu0 %v4012
    %4037 = vmatprep.subr.bf16.mxu0 0
    %4038 = vmatpush1.bf16.msra.mxu0 0
    %4039 = vmatprep.subr.bf16.mxu0 0
    %4040 = vmatpush1.bf16.msra.mxu0 0
    %4041 = vmatprep.subr.bf16.mxu0 0
    %4042 = vmatpush1.bf16.msra.mxu0 0
    %4043 = vmatprep.subr.bf16.mxu0 0
    %4044 = vmatpush1.bf16.msra.mxu0 0
    %4045 = vmatprep.subr.bf16.mxu0 0
    %4046 = vmatpush1.bf16.msra.mxu0 0
    %4047 = vmatprep.subr.bf16.mxu0 0
    %4048 = vmatpush1.bf16.msra.mxu0 0
    %4049 = vmatprep.subr.bf16.mxu0 0
    %4050 = vmatpush1.bf16.msra.mxu0 0
    %4051 = vmatprep.subr.bf16.mxu0 0
    %4052 = vmatpush1.bf16.msra.mxu0 0
    %4053 = vmatprep.mubr.bf16.mxu0 0
    %4054 = vmatmul.mubr.bf16.gmra.mrb[0].mxu0 %v3567
    %v4055 = vpop.f32.mrb[0].mxu0
    %v4056 = vadd.f32 0.0, %v4055
    %v4057 = vpop.f32.mrb[0].mxu0
    %v4058 = vpop.f32.mrb[0].mxu0
    %v4059 = vadd.f32 0.0, %v4058
    %v4060 = vpop.f32.mrb[0].mxu0
    %4061 = vmatprep.mubr.bf16.mxu0 0
    %4062 = vmatmul.mubr.bf16.gmra.mrb[0].mxu0 %v3568
    %v4063 = vpop.f32.mrb[0].mxu0
    %v4064 = vadd.f32 0.0, %v4063
    %v4065 = vpop.f32.mrb[0].mxu0
    %v4066 = vpop.f32.mrb[0].mxu0
    %v4067 = vadd.f32 0.0, %v4066
    %v4068 = vpop.f32.mrb[0].mxu0
    %4069 = vdwg.mxu0
    %v4070 = vadd.f32 %v3952, %v4056
    %v4071 = vadd.f32 %v3953, %v4059
    %v4072 = vadd.f32 %v3954, %v4064
    %v4073 = vadd.f32 %v3955, %v4067
    %s4074 = scalar_lea.vmem [#allocation10], 256
    %v4075 = vld [vmem:[%s4074] sm:$0xf]
    %v4076 = vld [vmem:[%s4074 + $0x4] sm:$0xf]
    %v4077 = vld [vmem:[%s4074 + $0x8] sm:$0xf]
    %v4078 = vld [vmem:[%s4074 + $0xc] sm:$0xf]
    %v4079 = vld [vmem:[%s4074 + $0x10] sm:$0xf]
    %v4080 = vld [vmem:[%s4074 + $0x14] sm:$0xf]
    %v4081 = vld [vmem:[%s4074 + $0x18] sm:$0xf]
    %v4082 = vld [vmem:[%s4074 + $0x1c] sm:$0xf]
    %v4083 = vld [vmem:[%s4074 + $0x20] sm:$0xf]
    %v4084 = vld [vmem:[%s4074 + $0x24] sm:$0xf]
    %v4085 = vld [vmem:[%s4074 + $0x28] sm:$0xf]
    %v4086 = vld [vmem:[%s4074 + $0x2c] sm:$0xf]
    %v4087 = vld [vmem:[%s4074 + $0x30] sm:$0xf]
    %v4088 = vld [vmem:[%s4074 + $0x34] sm:$0xf]
    %v4089 = vld [vmem:[%s4074 + $0x38] sm:$0xf]
    %v4090 = vld [vmem:[%s4074 + $0x3c] sm:$0xf]
    %v4107 = vunpack.c.l.b16 %v4075
    %v4108 = vunpack.c.l.b16 %v4076
    %v4109 = vunpack.c.l.b16 %v4077
    %v4110 = vunpack.c.l.b16 %v4078
    %v4111 = vunpack.c.l.b16 %v4079
    %v4112 = vunpack.c.l.b16 %v4080
    %v4113 = vunpack.c.l.b16 %v4081
    %v4114 = vunpack.c.l.b16 %v4082
    %v4115 = vunpack.c.l.b16 %v4083
    %v4116 = vunpack.c.l.b16 %v4084
    %v4117 = vunpack.c.l.b16 %v4085
    %v4118 = vunpack.c.l.b16 %v4086
    %v4119 = vunpack.c.l.b16 %v4087
    %v4120 = vunpack.c.l.b16 %v4088
    %v4121 = vunpack.c.l.b16 %v4089
    %v4122 = vunpack.c.l.b16 %v4090
    %v4123 = vpack.c.b16 %v4108, %v4107
    %v4124 = vpack.c.b16 %v4110, %v4109
    %v4125 = vpack.c.b16 %v4112, %v4111
    %v4126 = vpack.c.b16 %v4114, %v4113
    %v4127 = vpack.c.b16 %v4116, %v4115
    %v4128 = vpack.c.b16 %v4118, %v4117
    %v4129 = vpack.c.b16 %v4120, %v4119
    %v4130 = vpack.c.b16 %v4122, %v4121
    %4139 = vmatprep.subr.bf16.mxu0 0
    %4140 = vmatpush1.bf16.msra.mxu0 %v4123
    %4141 = vmatprep.subr.bf16.mxu0 0
    %4142 = vmatpush1.bf16.msra.mxu0 %v4124
    %4143 = vmatprep.subr.bf16.mxu0 0
    %4144 = vmatpush1.bf16.msra.mxu0 %v4125
    %4145 = vmatprep.subr.bf16.mxu0 0
    %4146 = vmatpush1.bf16.msra.mxu0 %v4126
    %4147 = vmatprep.subr.bf16.mxu0 0
    %4148 = vmatpush1.bf16.msra.mxu0 %v4127
    %4149 = vmatprep.subr.bf16.mxu0 0
    %4150 = vmatpush1.bf16.msra.mxu0 %v4128
    %4151 = vmatprep.subr.bf16.mxu0 0
    %4152 = vmatpush1.bf16.msra.mxu0 %v4129
    %4153 = vmatprep.subr.bf16.mxu0 0
    %4154 = vmatpush1.bf16.msra.mxu0 %v4130
    %4155 = vmatprep.subr.bf16.mxu0 0
    %4156 = vmatpush1.bf16.msra.mxu0 0
    %4157 = vmatprep.subr.bf16.mxu0 0
    %4158 = vmatpush1.bf16.msra.mxu0 0
    %4159 = vmatprep.subr.bf16.mxu0 0
    %4160 = vmatpush1.bf16.msra.mxu0 0
    %4161 = vmatprep.subr.bf16.mxu0 0
    %4162 = vmatpush1.bf16.msra.mxu0 0
    %4163 = vmatprep.subr.bf16.mxu0 0
    %4164 = vmatpush1.bf16.msra.mxu0 0
    %4165 = vmatprep.subr.bf16.mxu0 0
    %4166 = vmatpush1.bf16.msra.mxu0 0
    %4167 = vmatprep.subr.bf16.mxu0 0
    %4168 = vmatpush1.bf16.msra.mxu0 0
    %4169 = vmatprep.subr.bf16.mxu0 0
    %4170 = vmatpush1.bf16.msra.mxu0 0
    %4171 = vmatprep.mubr.bf16.mxu0 0
    %4172 = vmatmul.mubr.bf16.gmra.mrb[0].mxu0 %v3581
    %v4173 = vpop.f32.mrb[0].mxu0
    %v4174 = vadd.f32 0.0, %v4173
    %v4175 = vpop.f32.mrb[0].mxu0
    %v4176 = vpop.f32.mrb[0].mxu0
    %v4177 = vadd.f32 0.0, %v4176
    %v4178 = vpop.f32.mrb[0].mxu0
    %4179 = vmatprep.mubr.bf16.mxu0 0
    %4180 = vmatmul.mubr.bf16.gmra.mrb[0].mxu0 %v3582
    %v4181 = vpop.f32.mrb[0].mxu0
    %v4182 = vadd.f32 0.0, %v4181
    %v4183 = vpop.f32.mrb[0].mxu0
    %v4184 = vpop.f32.mrb[0].mxu0
    %v4185 = vadd.f32 0.0, %v4184
    %v4186 = vpop.f32.mrb[0].mxu0
    %4187 = vdwg.mxu0
    %v4188 = vadd.f32 %v4070, %v4174
    %v4189 = vadd.f32 %v4071, %v4177
    %v4190 = vadd.f32 %v4072, %v4182
    %v4191 = vadd.f32 %v4073, %v4185
    %s4192 = scalar_lea.vmem [#allocation10], 320
    %v4193 = vld [vmem:[%s4192] sm:$0xf]
    %v4194 = vld [vmem:[%s4192 + $0x4] sm:$0xf]
    %v4195 = vld [vmem:[%s4192 + $0x8] sm:$0xf]
    %v4196 = vld [vmem:[%s4192 + $0xc] sm:$0xf]
    %v4197 = vld [vmem:[%s4192 + $0x10] sm:$0xf]
    %v4198 = vld [vmem:[%s4192 + $0x14] sm:$0xf]
    %v4199 = vld [vmem:[%s4192 + $0x18] sm:$0xf]
    %v4200 = vld [vmem:[%s4192 + $0x1c] sm:$0xf]
    %v4201 = vld [vmem:[%s4192 + $0x20] sm:$0xf]
    %v4202 = vld [vmem:[%s4192 + $0x24] sm:$0xf]
    %v4203 = vld [vmem:[%s4192 + $0x28] sm:$0xf]
    %v4204 = vld [vmem:[%s4192 + $0x2c] sm:$0xf]
    %v4205 = vld [vmem:[%s4192 + $0x30] sm:$0xf]
    %v4206 = vld [vmem:[%s4192 + $0x34] sm:$0xf]
    %v4207 = vld [vmem:[%s4192 + $0x38] sm:$0xf]
    %v4208 = vld [vmem:[%s4192 + $0x3c] sm:$0xf]
    %v4225 = vunpack.c.l.b16 %v4193
    %v4226 = vunpack.c.l.b16 %v4194
    %v4227 = vunpack.c.l.b16 %v4195
    %v4228 = vunpack.c.l.b16 %v4196
    %v4229 = vunpack.c.l.b16 %v4197
    %v4230 = vunpack.c.l.b16 %v4198
    %v4231 = vunpack.c.l.b16 %v4199
    %v4232 = vunpack.c.l.b16 %v4200
    %v4233 = vunpack.c.l.b16 %v4201
    %v4234 = vunpack.c.l.b16 %v4202
    %v4235 = vunpack.c.l.b16 %v4203
    %v4236 = vunpack.c.l.b16 %v4204
    %v4237 = vunpack.c.l.b16 %v4205
    %v4238 = vunpack.c.l.b16 %v4206
    %v4239 = vunpack.c.l.b16 %v4207
    %v4240 = vunpack.c.l.b16 %v4208
    %v4241 = vpack.c.b16 %v4226, %v4225
    %v4242 = vpack.c.b16 %v4228, %v4227
    %v4243 = vpack.c.b16 %v4230, %v4229
    %v4244 = vpack.c.b16 %v4232, %v4231
    %v4245 = vpack.c.b16 %v4234, %v4233
    %v4246 = vpack.c.b16 %v4236, %v4235
    %v4247 = vpack.c.b16 %v4238, %v4237
    %v4248 = vpack.c.b16 %v4240, %v4239
    %4257 = vmatprep.subr.bf16.mxu0 0
    %4258 = vmatpush1.bf16.msra.mxu0 %v4241
    %4259 = vmatprep.subr.bf16.mxu0 0
    %4260 = vmatpush1.bf16.msra.mxu0 %v4242
    %4261 = vmatprep.subr.bf16.mxu0 0
    %4262 = vmatpush1.bf16.msra.mxu0 %v4243
    %4263 = vmatprep.subr.bf16.mxu0 0
    %4264 = vmatpush1.bf16.msra.mxu0 %v4244
    %4265 = vmatprep.subr.bf16.mxu0 0
    %4266 = vmatpush1.bf16.msra.mxu0 %v4245
    %4267 = vmatprep.subr.bf16.mxu0 0
    %4268 = vmatpush1.bf16.msra.mxu0 %v4246
    %4269 = vmatprep.subr.bf16.mxu0 0
    %4270 = vmatpush1.bf16.msra.mxu0 %v4247
    %4271 = vmatprep.subr.bf16.mxu0 0
    %4272 = vmatpush1.bf16.msra.mxu0 %v4248
    %4273 = vmatprep.subr.bf16.mxu0 0
    %4274 = vmatpush1.bf16.msra.mxu0 0
    %4275 = vmatprep.subr.bf16.mxu0 0
    %4276 = vmatpush1.bf16.msra.mxu0 0
    %4277 = vmatprep.subr.bf16.mxu0 0
    %4278 = vmatpush1.bf16.msra.mxu0 0
    %4279 = vmatprep.subr.bf16.mxu0 0
    %4280 = vmatpush1.bf16.msra.mxu0 0
    %4281 = vmatprep.subr.bf16.mxu0 0
    %4282 = vmatpush1.bf16.msra.mxu0 0
    %4283 = vmatprep.subr.bf16.mxu0 0
    %4284 = vmatpush1.bf16.msra.mxu0 0
    %4285 = vmatprep.subr.bf16.mxu0 0
    %4286 = vmatpush1.bf16.msra.mxu0 0
    %4287 = vmatprep.subr.bf16.mxu0 0
    %4288 = vmatpush1.bf16.msra.mxu0 0
    %4289 = vmatprep.mubr.bf16.mxu0 0
    %4290 = vmatmul.mubr.bf16.gmra.mrb[0].mxu0 %v3595
    %v4291 = vpop.f32.mrb[0].mxu0
    %v4292 = vadd.f32 0.0, %v4291
    %v4293 = vpop.f32.mrb[0].mxu0
    %v4294 = vpop.f32.mrb[0].mxu0
    %v4295 = vadd.f32 0.0, %v4294
    %v4296 = vpop.f32.mrb[0].mxu0
    %4297 = vmatprep.mubr.bf16.mxu0 0
    %4298 = vmatmul.mubr.bf16.gmra.mrb[0].mxu0 %v3596
    %v4299 = vpop.f32.mrb[0].mxu0
    %v4300 = vadd.f32 0.0, %v4299
    %v4301 = vpop.f32.mrb[0].mxu0
    %v4302 = vpop.f32.mrb[0].mxu0
    %v4303 = vadd.f32 0.0, %v4302
    %v4304 = vpop.f32.mrb[0].mxu0
    %4305 = vdwg.mxu0
    %v4306 = vadd.f32 %v4188, %v4292
    %v4307 = vadd.f32 %v4189, %v4295
    %v4308 = vadd.f32 %v4190, %v4300
    %v4309 = vadd.f32 %v4191, %v4303
    %s4310 = scalar_lea.vmem [#allocation10], 384
    %v4311 = vld [vmem:[%s4310] sm:$0xf]
    %v4312 = vld [vmem:[%s4310 + $0x4] sm:$0xf]
    %v4313 = vld [vmem:[%s4310 + $0x8] sm:$0xf]
    %v4314 = vld [vmem:[%s4310 + $0xc] sm:$0xf]
    %v4315 = vld [vmem:[%s4310 + $0x10] sm:$0xf]
    %v4316 = vld [vmem:[%s4310 + $0x14] sm:$0xf]
    %v4317 = vld [vmem:[%s4310 + $0x18] sm:$0xf]
    %v4318 = vld [vmem:[%s4310 + $0x1c] sm:$0xf]
    %v4319 = vld [vmem:[%s4310 + $0x20] sm:$0xf]
    %v4320 = vld [vmem:[%s4310 + $0x24] sm:$0xf]
    %v4321 = vld [vmem:[%s4310 + $0x28] sm:$0xf]
    %v4322 = vld [vmem:[%s4310 + $0x2c] sm:$0xf]
    %v4323 = vld [vmem:[%s4310 + $0x30] sm:$0xf]
    %v4324 = vld [vmem:[%s4310 + $0x34] sm:$0xf]
    %v4325 = vld [vmem:[%s4310 + $0x38] sm:$0xf]
    %v4326 = vld [vmem:[%s4310 + $0x3c] sm:$0xf]
    %v4343 = vunpack.c.l.b16 %v4311
    %v4344 = vunpack.c.l.b16 %v4312
    %v4345 = vunpack.c.l.b16 %v4313
    %v4346 = vunpack.c.l.b16 %v4314
    %v4347 = vunpack.c.l.b16 %v4315
    %v4348 = vunpack.c.l.b16 %v4316
    %v4349 = vunpack.c.l.b16 %v4317
    %v4350 = vunpack.c.l.b16 %v4318
    %v4351 = vunpack.c.l.b16 %v4319
    %v4352 = vunpack.c.l.b16 %v4320
    %v4353 = vunpack.c.l.b16 %v4321
    %v4354 = vunpack.c.l.b16 %v4322
    %v4355 = vunpack.c.l.b16 %v4323
    %v4356 = vunpack.c.l.b16 %v4324
    %v4357 = vunpack.c.l.b16 %v4325
    %v4358 = vunpack.c.l.b16 %v4326
    %v4359 = vpack.c.b16 %v4344, %v4343
    %v4360 = vpack.c.b16 %v4346, %v4345
    %v4361 = vpack.c.b16 %v4348, %v4347
    %v4362 = vpack.c.b16 %v4350, %v4349
    %v4363 = vpack.c.b16 %v4352, %v4351
    %v4364 = vpack.c.b16 %v4354, %v4353
    %v4365 = vpack.c.b16 %v4356, %v4355
    %v4366 = vpack.c.b16 %v4358, %v4357
    %4375 = vmatprep.subr.bf16.mxu0 0
    %4376 = vmatpush1.bf16.msra.mxu0 %v4359
    %4377 = vmatprep.subr.bf16.mxu0 0
    %4378 = vmatpush1.bf16.msra.mxu0 %v4360
    %4379 = vmatprep.subr.bf16.mxu0 0
    %4380 = vmatpush1.bf16.msra.mxu0 %v4361
    %4381 = vmatprep.subr.bf16.mxu0 0
    %4382 = vmatpush1.bf16.msra.mxu0 %v4362
    %4383 = vmatprep.subr.bf16.mxu0 0
    %4384 = vmatpush1.bf16.msra.mxu0 %v4363
    %4385 = vmatprep.subr.bf16.mxu0 0
    %4386 = vmatpush1.bf16.msra.mxu0 %v4364
    %4387 = vmatprep.subr.bf16.mxu0 0
    %4388 = vmatpush1.bf16.msra.mxu0 %v4365
    %4389 = vmatprep.subr.bf16.mxu0 0
    %4390 = vmatpush1.bf16.msra.mxu0 %v4366
    %4391 = vmatprep.subr.bf16.mxu0 0
    %4392 = vmatpush1.bf16.msra.mxu0 0
    %4393 = vmatprep.subr.bf16.mxu0 0
    %4394 = vmatpush1.bf16.msra.mxu0 0
    %4395 = vmatprep.subr.bf16.mxu0 0
    %4396 = vmatpush1.bf16.msra.mxu0 0
    %4397 = vmatprep.subr.bf16.mxu0 0
    %4398 = vmatpush1.bf16.msra.mxu0 0
    %4399 = vmatprep.subr.bf16.mxu0 0
    %4400 = vmatpush1.bf16.msra.mxu0 0
    %4401 = vmatprep.subr.bf16.mxu0 0
    %4402 = vmatpush1.bf16.msra.mxu0 0
    %4403 = vmatprep.subr.bf16.mxu0 0
    %4404 = vmatpush1.bf16.msra.mxu0 0
    %4405 = vmatprep.subr.bf16.mxu0 0
    %4406 = vmatpush1.bf16.msra.mxu0 0
    %4407 = vmatprep.mubr.bf16.mxu0 0
    %4408 = vmatmul.mubr.bf16.gmra.mrb[0].mxu0 %v3609
    %v4409 = vpop.f32.mrb[0].mxu0
    %v4410 = vadd.f32 0.0, %v4409
    %v4411 = vpop.f32.mrb[0].mxu0
    %v4412 = vpop.f32.mrb[0].mxu0
    %v4413 = vadd.f32 0.0, %v4412
    %v4414 = vpop.f32.mrb[0].mxu0
    %4415 = vmatprep.mubr.bf16.mxu0 0
    %4416 = vmatmul.mubr.bf16.gmra.mrb[0].mxu0 %v3610
    %v4417 = vpop.f32.mrb[0].mxu0
    %v4418 = vadd.f32 0.0, %v4417
    %v4419 = vpop.f32.mrb[0].mxu0
    %v4420 = vpop.f32.mrb[0].mxu0
    %v4421 = vadd.f32 0.0, %v4420
    %v4422 = vpop.f32.mrb[0].mxu0
    %4423 = vdwg.mxu0
    %v4424 = vadd.f32 %v4306, %v4410
    %v4425 = vadd.f32 %v4307, %v4413
    %v4426 = vadd.f32 %v4308, %v4418
    %v4427 = vadd.f32 %v4309, %v4421
    %v4428 = vld [vmem:[%s8 + $0x5] ss:$0 sm:$0xff]
    %v4429 = vadd.f32 %v4424, %v4428
    %v4430 = vadd.f32 %v4425, %v4428
    %v4431 = vadd.f32 %v4426, %v4428
    %v4432 = vadd.f32 %v4427, %v4428
    %vm4433 = vcmp.gt.f32.partialorder %v4429, 0.0
    %vm4434 = vcmp.gt.f32.partialorder %v4430, 0.0
    %vm4435 = vcmp.gt.f32.partialorder %v4431, 0.0
    %vm4436 = vcmp.gt.f32.partialorder %v4432, 0.0
    %v4437 = vmul.f32 %v4429, 0.3
    %v4438 = vmul.f32 %v4430, 0.3
    %v4439 = vmul.f32 %v4431, 0.3
    %v4440 = vmul.f32 %v4432, 0.3
    %v4441 = vsel %vm4433, %v4429, %v4437
    %v4442 = vsel %vm4434, %v4430, %v4438
    %v4443 = vsel %vm4435, %v4431, %v4439
    %v4444 = vsel %vm4436, %v4432, %v4440
    %v4445 = vpack.c.bf16 %v4442, %v4441
    %v4446 = vpack.c.bf16 %v4444, %v4443
    %v4447 = vld [vmem:[%s7 + $0xc0] sm:$0xf]
    %v4448 = vld [vmem:[%s7 + $0xc4] sm:$0xf]
    %v4449 = vld [vmem:[%s7 + $0xc8] sm:$0xf]
    %v4450 = vld [vmem:[%s7 + $0xcc] sm:$0xf]
    %v4451 = vld [vmem:[%s7 + $0xd0] sm:$0xf]
    %v4452 = vld [vmem:[%s7 + $0xd4] sm:$0xf]
    %v4453 = vld [vmem:[%s7 + $0xd8] sm:$0xf]
    %v4454 = vld [vmem:[%s7 + $0xdc] sm:$0xf]
    %v4455 = vld [vmem:[%s7 + $0xe0] sm:$0xf]
    %v4456 = vld [vmem:[%s7 + $0xe4] sm:$0xf]
    %v4457 = vld [vmem:[%s7 + $0xe8] sm:$0xf]
    %v4458 = vld [vmem:[%s7 + $0xec] sm:$0xf]
    %v4459 = vld [vmem:[%s7 + $0xf0] sm:$0xf]
    %v4460 = vld [vmem:[%s7 + $0xf4] sm:$0xf]
    %v4461 = vld [vmem:[%s7 + $0xf8] sm:$0xf]
    %v4462 = vld [vmem:[%s7 + $0xfc] sm:$0xf]
    %v4479 = vunpack.c.l.b16 %v4447
    %v4480 = vunpack.c.l.b16 %v4448
    %v4481 = vunpack.c.l.b16 %v4449
    %v4482 = vunpack.c.l.b16 %v4450
    %v4483 = vunpack.c.l.b16 %v4451
    %v4484 = vunpack.c.l.b16 %v4452
    %v4485 = vunpack.c.l.b16 %v4453
    %v4486 = vunpack.c.l.b16 %v4454
    %v4487 = vunpack.c.l.b16 %v4455
    %v4488 = vunpack.c.l.b16 %v4456
    %v4489 = vunpack.c.l.b16 %v4457
    %v4490 = vunpack.c.l.b16 %v4458
    %v4491 = vunpack.c.l.b16 %v4459
    %v4492 = vunpack.c.l.b16 %v4460
    %v4493 = vunpack.c.l.b16 %v4461
    %v4494 = vunpack.c.l.b16 %v4462
    %v4495 = vpack.c.b16 %v4480, %v4479
    %v4496 = vpack.c.b16 %v4482, %v4481
    %v4497 = vpack.c.b16 %v4484, %v4483
    %v4498 = vpack.c.b16 %v4486, %v4485
    %v4499 = vpack.c.b16 %v4488, %v4487
    %v4500 = vpack.c.b16 %v4490, %v4489
    %v4501 = vpack.c.b16 %v4492, %v4491
    %v4502 = vpack.c.b16 %v4494, %v4493
    %4511 = vmatprep.subr.bf16.mxu0 0
    %4512 = vmatpush1.bf16.msra.mxu0 %v4495
    %4513 = vmatprep.subr.bf16.mxu0 0
    %4514 = vmatpush1.bf16.msra.mxu0 %v4496
    %4515 = vmatprep.subr.bf16.mxu0 0
    %4516 = vmatpush1.bf16.msra.mxu0 %v4497
    %4517 = vmatprep.subr.bf16.mxu0 0
    %4518 = vmatpush1.bf16.msra.mxu0 %v4498
    %4519 = vmatprep.subr.bf16.mxu0 0
    %4520 = vmatpush1.bf16.msra.mxu0 %v4499
    %4521 = vmatprep.subr.bf16.mxu0 0
    %4522 = vmatpush1.bf16.msra.mxu0 %v4500
    %4523 = vmatprep.subr.bf16.mxu0 0
    %4524 = vmatpush1.bf16.msra.mxu0 %v4501
    %4525 = vmatprep.subr.bf16.mxu0 0
    %4526 = vmatpush1.bf16.msra.mxu0 %v4502
    %4527 = vmatprep.subr.bf16.mxu0 0
    %4528 = vmatpush1.bf16.msra.mxu0 0
    %4529 = vmatprep.subr.bf16.mxu0 0
    %4530 = vmatpush1.bf16.msra.mxu0 0
    %4531 = vmatprep.subr.bf16.mxu0 0
    %4532 = vmatpush1.bf16.msra.mxu0 0
    %4533 = vmatprep.subr.bf16.mxu0 0
    %4534 = vmatpush1.bf16.msra.mxu0 0
    %4535 = vmatprep.subr.bf16.mxu0 0
    %4536 = vmatpush1.bf16.msra.mxu0 0
    %4537 = vmatprep.subr.bf16.mxu0 0
    %4538 = vmatpush1.bf16.msra.mxu0 0
    %4539 = vmatprep.subr.bf16.mxu0 0
    %4540 = vmatpush1.bf16.msra.mxu0 0
    %4541 = vmatprep.subr.bf16.mxu0 0
    %4542 = vmatpush1.bf16.msra.mxu0 0
    %4543 = vmatprep.mubr.bf16.mxu0 0
    %4544 = vmatmul.mubr.bf16.gmra.mrb[0].mxu0 %v4445
    %v4545 = vpop.f32.mrb[0].mxu0
    %v4546 = vadd.f32 0.0, %v4545
    %v4547 = vpop.f32.mrb[0].mxu0
    %v4548 = vpop.f32.mrb[0].mxu0
    %v4549 = vadd.f32 0.0, %v4548
    %v4550 = vpop.f32.mrb[0].mxu0
    %4551 = vmatprep.mubr.bf16.mxu0 0
    %4552 = vmatmul.mubr.bf16.gmra.mrb[0].mxu0 %v4446
    %v4553 = vpop.f32.mrb[0].mxu0
    %v4554 = vadd.f32 0.0, %v4553
    %v4555 = vpop.f32.mrb[0].mxu0
    %v4556 = vpop.f32.mrb[0].mxu0
    %v4557 = vadd.f32 0.0, %v4556
    %v4558 = vpop.f32.mrb[0].mxu0
    %4559 = vdwg.mxu0
    %v4560 = vadd.f32 %v2889, %v4546
    %v4561 = vadd.f32 %v2892, %v4549
    %v4562 = vadd.f32 %v2897, %v4554
    %v4563 = vadd.f32 %v2900, %v4557
    %v4564 = vld [vmem:[%s8 + $0x6] ss:$0 sm:$0xff]
    %v4565 = vadd.f32 %v4560, %v4564
    %v4566 = vadd.f32 %v4561, %v4564
    %v4567 = vadd.f32 %v4562, %v4564
    %v4568 = vadd.f32 %v4563, %v4564
    %v4569 = vadd.f32 %v4565, %v102
    %v4570 = vadd.f32 %v4566, %v103
    %v4571 = vadd.f32 %v4567, %v104
    %v4572 = vadd.f32 %v4568, %v105
    %vm4573 = vcmp.gt.f32.partialorder %v4569, 0.0
    %vm4574 = vcmp.gt.f32.partialorder %v4570, 0.0
    %vm4575 = vcmp.gt.f32.partialorder %v4571, 0.0
    %vm4576 = vcmp.gt.f32.partialorder %v4572, 0.0
    %v4577 = vmul.f32 %v4569, 0.3
    %v4578 = vmul.f32 %v4570, 0.3
    %v4579 = vmul.f32 %v4571, 0.3
    %v4580 = vmul.f32 %v4572, 0.3
    %v4581 = vsel %vm4573, %v4569, %v4577
    %v4582 = vsel %vm4574, %v4570, %v4578
    %v4583 = vsel %vm4575, %v4571, %v4579
    %v4584 = vsel %vm4576, %v4572, %v4580
    %4585 = vst.msk [vmem:[#allocation11] sm:$0xff] %vm332, %v4581
    %4586 = vst.msk [vmem:[#allocation11 + $0x8] sm:$0xff] %vm332, %v4582
    %4587 = vst.msk [vmem:[#allocation11 + $0x10] sm:$0xff] %vm332, %v4583
    %4588 = vst.msk [vmem:[#allocation11 + $0x18] sm:$0xff] %vm332, %v4584
    // Predicated region
    $region58: #{tpu_custom_call.1} parent=1 // pred_check
      _
    $region59: #{tpu_custom_call.1} parent=1 // pred_check_branch
      %4590 = sbr.rel (0) target = $region61
    $region60: #{tpu_custom_call.1} parent=1 // pred_region
      %s4592 = ssub.s32 512, 512
      %4593 = vsyncadd [#allocation4], %s4592
      %s4594 = sshll.u32 [#allocation11], 4
      %s4595 = int_to_ptr.vmem [resolvable:$true] %s4594
      %4600 = dma.vmem_to_hbm [thread:$0]  %s4595, 512, %s9, [#allocation4], 128, 128, 8
    $region61: #{tpu_custom_call.1} parent=1 // pred_fallthru
      _
    // Predicated region
    $region62: #{tpu_custom_call.1} parent=1 // pred_check
      _
    $region63: #{tpu_custom_call.1} parent=1 // pred_check_branch
      %4602 = sbr.rel (0) target = $region65
    $region64: #{tpu_custom_call.1} parent=1 // pred_region
      %4603 = dma.done [#allocation4], 512
    $region65: #{tpu_custom_call.1} parent=1 // pred_fallthru
      _
    %4604 = vsyncpa [#allocation3], 1
    %4605 = vsyncpa [#allocation6], 1
    %4606 = vsyncpa [#allocation9], 1
    %4607 = vsyncpa [#allocation4], 1

</llo_original>
